<compile_context>
chip_gen: v6e
topology: v6e:2x2x1
jax: 0.10.0
libtpu: 0.0.40
codegen_flags: <defaults>
</compile_context>

<pallas_src>
import functools
import math

import jax
import jax.numpy as jnp
from jax.experimental import pallas as pl
from jax.experimental.pallas import tpu as pltpu

LN_EPS = 1e-5

PARAM_ORDER = ('small', 'qkv_b', 'f1b', 'qkv_w', 'pw', 'f1w', 'f2w')
# 'small' packs rows: [ln1_w, ln1_b, ln2_w, ln2_b, proj_b, fc2_b] -> (6, C)


def fused_blocks_kernel(x_ref, small_ref, qkvb_ref, f1b_ref,
                        qkvw_ref, pw_ref, f1w_ref, f2w_ref,
                        out_ref, *, num_heads):
    """One grid step = one transformer Block applied to Bt batch elements.

    grid = (B // Bt, L).  The output block index only depends on the batch
    coordinate, so the (Bt, N, C) residual stream stays resident in VMEM across
    the innermost "arbitrary" layer axis; per-layer weights are streamed.
    """
    layer = pl.program_id(1)

    # Layer 0: seed the VMEM-resident residual stream from the kernel input.
    @pl.when(layer == 0)
    def _():
        out_ref[...] = x_ref[...]

    x = out_ref[...]                             # (Bt, N, C) float32 residual stream
    Bt, N, C = x.shape
    D = C // num_heads
    bf16 = jnp.bfloat16

    x2 = x.reshape(Bt * N, C)                    # flatten batch block for LN / projections
    small = small_ref[0]                         # (6, C) f32: ln1_w, ln1_b, ln2_w, ln2_b, pb, f2b

    def layernorm(z, w, b):                      # f32 statistics (matches nn.LayerNorm)
        mu = jnp.mean(z, axis=-1, keepdims=True)
        var = jnp.mean(jnp.square(z - mu), axis=-1, keepdims=True)
        return (z - mu) * jax.lax.rsqrt(var + LN_EPS) * w + b

    # ---- Attention branch: x1 = x + proj(softmax(q k^T) v) -----------------
    xn_b = layernorm(x2, small[0:1], small[1:2]).astype(bf16)
    # Single fused QKV matmul (softmax scale pre-folded into the q columns/bias).
    qkv = (jnp.dot(xn_b, qkvw_ref[0], preferred_element_type=jnp.float32)
           + qkvb_ref[0])                        # (Bt*N, 3C) f32

    o_heads = []
    for h in range(num_heads):                   # small H; per-head score tile bounded to (Bt, N, N)
        q_h = qkv[:, h * D:(h + 1) * D].reshape(Bt, N, D).astype(bf16)
        k_h = qkv[:, C + h * D:C + (h + 1) * D].reshape(Bt, N, D).astype(bf16)
        v_h = qkv[:, 2 * C + h * D:2 * C + (h + 1) * D].reshape(Bt, N, D).astype(bf16)

        s = jnp.einsum('bnd,bmd->bnm', q_h, k_h,
                       preferred_element_type=jnp.float32)          # (Bt, N, N) f32
        s = s - jnp.max(s, axis=-1, keepdims=True)
        p = jnp.exp(s)
        p = p * pl.reciprocal(jnp.sum(p, axis=-1, keepdims=True), approx=True)

        o_h = jnp.einsum('bnm,bmd->bnd', p.astype(bf16), v_h,
                         preferred_element_type=jnp.float32)         # (Bt, N, D) f32
        o_heads.append(o_h.reshape(Bt * N, D).astype(bf16))

    o_cat = jnp.concatenate(o_heads, axis=-1)                        # (Bt*N, C) bf16
    attn_out = (jnp.dot(o_cat, pw_ref[0], preferred_element_type=jnp.float32)
                + small[4:5])                                        # single output projection
    x1 = x2 + attn_out

    # ---- MLP branch: x2 = x1 + fc2(gelu(fc1(LN2(x1)))) ----------------------
    xn2_b = layernorm(x1, small[2:3], small[3:4]).astype(bf16)
    hid = (jnp.dot(xn2_b, f1w_ref[0], preferred_element_type=jnp.float32)
           + f1b_ref[0])
    hid = jax.nn.gelu(hid, approximate=True)          # tanh GELU (EUP path)
    mlp_out = (jnp.dot(hid.astype(bf16), f2w_ref[0], preferred_element_type=jnp.float32)
               + small[5:6])

    out_ref[...] = (x1 + mlp_out).reshape(Bt, N, C)


def prepare_layer_params(p, num_heads):
    """Convert one Block's natural (in, out)-layout f32 params to kernel layout:
    softmax scale folded into the q columns, matmul weights cast to bf16, and
    the ten tiny LN / bias tensors packed into two small arrays."""
    C = p['ln1_w'].shape[0]
    D = C // num_heads
    scale = D ** -0.5
    bf16 = jnp.bfloat16

    col_scale = jnp.concatenate([jnp.full((C,), scale, jnp.float32),
                                 jnp.ones((2 * C,), jnp.float32)])
    qkv_w = p['qkv_w'] * col_scale               # (C, 3C), q columns pre-scaled
    qkv_b = p['qkv_b'] * col_scale               # (3C,)

    small = jnp.stack([p['ln1_w'], p['ln1_b'], p['ln2_w'], p['ln2_b'],
                       p['proj_b'], p['fc2_b']]).astype(jnp.float32)   # (6, C)

    return {
        'small': small,
        'qkv_b': qkv_b.reshape(1, 3 * C).astype(jnp.float32),
        'f1b': p['fc1_b'].reshape(1, -1).astype(jnp.float32),
        'qkv_w': qkv_w.astype(bf16),
        'pw': p['proj_w'].astype(bf16),
        'f1w': p['fc1_w'].astype(bf16),
        'f2w': p['fc2_w'].astype(bf16),
    }


def _pick_batch_block(B, cap=4):
    """Largest Bt <= cap dividing B while keeping >= 2 parallel grid steps."""
    for bt in range(min(B, cap), 0, -1):
        if B % bt == 0 and B // bt >= 2:
            return bt
    return min(B, cap) if B % min(B, cap) == 0 else 1


def transformer_layer(x, all_params, num_heads, batch_block=None):
    """TransformerLayer.forward: the whole stack of Blocks in one pallas_call."""
    x = x.astype(jnp.float32)                    # keep the residual stream / LN stats in f32
    B, N, C = x.shape
    L = len(all_params)
    assert C % num_heads == 0

    Bt = batch_block if batch_block is not None else _pick_batch_block(B)
    assert B % Bt == 0

    prepared = [prepare_layer_params(p, num_heads) for p in all_params]
    stacked = [jnp.stack([pp[k] for pp in prepared]) for k in PARAM_ORDER]

    in_specs = [pl.BlockSpec((Bt, N, C), lambda b, l: (b, 0, 0))]
    for w in stacked:
        rest = w.shape[1:]
        in_specs.append(
            pl.BlockSpec((1,) + rest, lambda b, l, _nd=len(rest): (l,) + (0,) * _nd))

    return pl.pallas_call(
        functools.partial(fused_blocks_kernel, num_heads=num_heads),
        out_shape=jax.ShapeDtypeStruct((B, N, C), jnp.float32),
        grid=(B // Bt, L),
        in_specs=in_specs,
        out_specs=pl.BlockSpec((Bt, N, C), lambda b, l: (b, 0, 0)),
        compiler_params=pltpu.CompilerParams(
            dimension_semantics=("parallel", "arbitrary"),
            vmem_limit_bytes=48 * 1024 * 1024),
    )(x, *stacked)


def init_block_params(key, dim, dim_ff):
    """Deterministic synthetic weights (natural (in, out) layout, torch-like shapes)."""
    ks = jax.random.split(key, 12)

    def lin(k, fan_in, fan_out):
        return jax.random.normal(k, (fan_in, fan_out), jnp.float32) / math.sqrt(fan_in)

    return {
        'ln1_w': 1.0 + 0.02 * jax.random.normal(ks[0], (dim,), jnp.float32),
        'ln1_b': 0.02 * jax.random.normal(ks[1], (dim,), jnp.float32),
        'ln2_w': 1.0 + 0.02 * jax.random.normal(ks[2], (dim,), jnp.float32),
        'ln2_b': 0.02 * jax.random.normal(ks[3], (dim,), jnp.float32),
        'qkv_w': lin(ks[4], dim, 3 * dim),
        'qkv_b': 0.01 * jax.random.normal(ks[5], (3 * dim,), jnp.float32),
        'proj_w': lin(ks[6], dim, dim),
        'proj_b': 0.01 * jax.random.normal(ks[7], (dim,), jnp.float32),
        'fc1_w': lin(ks[8], dim, dim_ff),
        'fc1_b': 0.01 * jax.random.normal(ks[9], (dim_ff,), jnp.float32),
        'fc2_w': lin(ks[10], dim_ff, dim),
        'fc2_b': 0.01 * jax.random.normal(ks[11], (dim,), jnp.float32),
    }


def reference_block(x, p, num_heads):
    """Pure-JAX reference for one Block (same bf16-matmul / f32-accumulate recipe)."""
    B, N, C = x.shape
    D = C // num_heads
    bf16 = jnp.bfloat16

    def ln(z, w, b):
        mu = z.mean(-1, keepdims=True)
        var = ((z - mu) ** 2).mean(-1, keepdims=True)
        return (z - mu) / jnp.sqrt(var + LN_EPS) * w + b

    def mm(a, w):
        return jnp.dot(a.astype(bf16), w.astype(bf16), preferred_element_type=jnp.float32)

    xn = ln(x, p['ln1_w'], p['ln1_b'])
    qkv = mm(xn, p['qkv_w']) + p['qkv_b']
    q, k, v = (qkv[..., i * C:(i + 1) * C].reshape(B, N, num_heads, D) for i in range(3))
    s = jnp.einsum('bnhd,bmhd->bhnm', (q * D ** -0.5).astype(bf16), k.astype(bf16),
                   preferred_element_type=jnp.float32)
    a = jax.nn.softmax(s, axis=-1)
    o = jnp.einsum('bhnm,bmhd->bnhd', a.astype(bf16), v.astype(bf16),
                   preferred_element_type=jnp.float32).reshape(B, N, C)
    x1 = x + mm(o, p['proj_w']) + p['proj_b']
    xn2 = ln(x1, p['ln2_w'], p['ln2_b'])
    hid = jax.nn.gelu(mm(xn2, p['fc1_w']) + p['fc1_b'], approximate=True)
    return x1 + mm(hid, p['fc2_w']) + p['fc2_b']


if __name__ == "__main__":
    # Small shapes consistent with the module: tokens N = h*w
    B, Hs, Ws = 4, 8, 8
    N = Hs * Ws
    DIM, N_HEADS, DIM_FF, N_BLOCKS = 32, 4, 64, 2

    root = jax.random.PRNGKey(0)
    kx, kp = jax.random.split(root)
    x = jax.random.normal(kx, (B, N, DIM), jnp.float32)

    block_keys = jax.random.split(kp, N_BLOCKS)
    all_params = [init_block_params(block_keys[i], DIM, DIM_FF) for i in range(N_BLOCKS)]

    out = transformer_layer(x, all_params, N_HEADS)
    out = jax.block_until_ready(out)

    # sanity check against pure-JAX reference (matching mixed-precision recipe)
    ref = x
    for p in all_params:
        ref = reference_block(ref, p, N_HEADS)
    assert out.shape == (B, N, DIM)
    max_err = jnp.max(jnp.abs(out - ref))
    assert jnp.allclose(out, ref, atol=3e-2, rtol=3e-2), f"mismatch vs reference (max abs err {max_err})"

    print("KERNEL_OK")
</pallas_src>

<mosaic_0001>
module attributes {stable_mosaic.version = 11 : i64} {
  func.func @fused_blocks_kernel(%arg0: i32, %arg1: i32, %arg2: memref<2x64x32xf32, #tpu.memory_space<vmem>>, %arg3: memref<1x6x32xf32, #tpu.memory_space<vmem>>, %arg4: memref<1x1x96xf32, #tpu.memory_space<vmem>>, %arg5: memref<1x1x64xf32, #tpu.memory_space<vmem>>, %arg6: memref<1x32x96xbf16, #tpu.memory_space<vmem>>, %arg7: memref<1x32x32xbf16, #tpu.memory_space<vmem>>, %arg8: memref<1x32x64xbf16, #tpu.memory_space<vmem>>, %arg9: memref<1x64x32xbf16, #tpu.memory_space<vmem>>, %arg10: memref<2x64x32xf32, #tpu.memory_space<vmem>>) attributes {dimension_semantics = [#tpu.dimension_semantics<parallel>, #tpu.dimension_semantics<arbitrary>], iteration_bounds = array<i64: 2, 2>, scalar_prefetch = 0 : i64, scratch_operands = 0 : i64, tpu.core_type = #tpu.core_type<tc>, window_params = [{transform_indices = @transform_0, window_bounds = array<i64: 2, 64, 32>}, {transform_indices = @transform_1, window_bounds = array<i64: 1, 6, 32>}, {transform_indices = @transform_2, window_bounds = array<i64: 1, 1, 96>}, {transform_indices = @transform_3, window_bounds = array<i64: 1, 1, 64>}, {transform_indices = @transform_4, window_bounds = array<i64: 1, 32, 96>}, {transform_indices = @transform_5, window_bounds = array<i64: 1, 32, 32>}, {transform_indices = @transform_6, window_bounds = array<i64: 1, 32, 64>}, {transform_indices = @transform_7, window_bounds = array<i64: 1, 64, 32>}, {transform_indices = @transform_8, window_bounds = array<i64: 2, 64, 32>}]} {
    %c0_i32 = arith.constant 0 : i32
    %0 = arith.cmpi eq, %arg1, %c0_i32 : i32
    %1 = arith.extui %0 : i1 to i32
    %c0_i32_0 = arith.constant 0 : i32
    %2 = arith.cmpi ne, %1, %c0_i32_0 : i32
    scf.if %2 {
      %c0_60 = arith.constant 0 : index
      %c0_61 = arith.constant 0 : index
      %c0_62 = arith.constant 0 : index
      %198 = vector.load %arg2[%c0_60, %c0_61, %c0_62] : memref<2x64x32xf32, #tpu.memory_space<vmem>>, vector<2x64x32xf32>
      %c0_63 = arith.constant 0 : index
      %c0_64 = arith.constant 0 : index
      %c0_65 = arith.constant 0 : index
      %199 = vector.load %arg10[%c0_63, %c0_64, %c0_65] : memref<2x64x32xf32, #tpu.memory_space<vmem>>, vector<2x64x32xf32>
      tpu.vector_store %arg10[%c0_63, %c0_64, %c0_65], %198 {strides = array<i32>} : memref<2x64x32xf32, #tpu.memory_space<vmem>>, vector<2x64x32xf32>,
    } else {
    }
    %c0 = arith.constant 0 : index
    %c0_1 = arith.constant 0 : index
    %c0_2 = arith.constant 0 : index
    %3 = vector.load %arg10[%c0, %c0_1, %c0_2] : memref<2x64x32xf32, #tpu.memory_space<vmem>>, vector<2x64x32xf32>
    %4 = vector.shape_cast %3 : vector<2x64x32xf32> to vector<128x32xf32>
    %c0_3 = arith.constant 0 : index
    %c0_4 = arith.constant 0 : index
    %c0_5 = arith.constant 0 : index
    %5 = vector.load %arg3[%c0_3, %c0_4, %c0_5] : memref<1x6x32xf32, #tpu.memory_space<vmem>>, vector<1x6x32xf32>
    %6 = vector.shape_cast %5 : vector<1x6x32xf32> to vector<6x32xf32>
    %7 = vector.extract_strided_slice %6 {offsets = [0, 0], sizes = [1, 32], strides = [1, 1]} : vector<6x32xf32> to vector<1x32xf32>
    %8 = vector.extract_strided_slice %6 {offsets = [1, 0], sizes = [1, 32], strides = [1, 1]} : vector<6x32xf32> to vector<1x32xf32>
    %cst = arith.constant dense<0.000000e+00> : vector<128xf32>
    %9 = vector.multi_reduction <add>, %4, %cst [1] : vector<128x32xf32> to vector<128xf32>
    %10 = vector.shape_cast %9 : vector<128xf32> to vector<128x1xf32>
    %cst_6 = arith.constant 3.200000e+01 : f32
    %11 = vector.broadcast %cst_6 : f32 to vector<128x1xf32>
    %12 = arith.divf %10, %11 : vector<128x1xf32>
    %13 = vector.broadcast %12 : vector<128x1xf32> to vector<128x32xf32>
    %14 = arith.subf %4, %13 : vector<128x32xf32>
    %15 = arith.mulf %14, %14 : vector<128x32xf32>
    %cst_7 = arith.constant dense<0.000000e+00> : vector<128xf32>
    %16 = vector.multi_reduction <add>, %15, %cst_7 [1] : vector<128x32xf32> to vector<128xf32>
    %17 = vector.shape_cast %16 : vector<128xf32> to vector<128x1xf32>
    %cst_8 = arith.constant 3.200000e+01 : f32
    %18 = vector.broadcast %cst_8 : f32 to vector<128x1xf32>
    %19 = arith.divf %17, %18 : vector<128x1xf32>
    %20 = vector.broadcast %12 : vector<128x1xf32> to vector<128x32xf32>
    %21 = arith.subf %4, %20 : vector<128x32xf32>
    %cst_9 = arith.constant 9.99999974E-6 : f32
    %22 = vector.broadcast %cst_9 : f32 to vector<128x1xf32>
    %23 = arith.addf %19, %22 : vector<128x1xf32>
    %24 = math.rsqrt %23 : vector<128x1xf32>
    %25 = vector.broadcast %24 : vector<128x1xf32> to vector<128x32xf32>
    %26 = arith.mulf %21, %25 : vector<128x32xf32>
    %27 = vector.broadcast %7 : vector<1x32xf32> to vector<128x32xf32>
    %28 = arith.mulf %26, %27 : vector<128x32xf32>
    %29 = vector.broadcast %8 : vector<1x32xf32> to vector<128x32xf32>
    %30 = arith.addf %28, %29 : vector<128x32xf32>
    %31 = arith.truncf %30 : vector<128x32xf32> to vector<128x32xbf16>
    %c0_10 = arith.constant 0 : index
    %c0_11 = arith.constant 0 : index
    %c0_12 = arith.constant 0 : index
    %32 = vector.load %arg6[%c0_10, %c0_11, %c0_12] : memref<1x32x96xbf16, #tpu.memory_space<vmem>>, vector<1x32x96xbf16>
    %33 = vector.shape_cast %32 : vector<1x32x96xbf16> to vector<32x96xbf16>
    %cst_13 = arith.constant dense<0.000000e+00> : vector<128x96xf32>
    %34 = tpu.matmul %31, %33, %cst_13 {dimension_numbers = #tpu.dot_dimension_numbers<[1], [0], [0], [1], [0, 0, 1, 1], [], []>} : vector<128x32xbf16>, vector<32x96xbf16>, vector<128x96xf32> -> vector<128x96xf32>
    %c0_14 = arith.constant 0 : index
    %c0_15 = arith.constant 0 : index
    %c0_16 = arith.constant 0 : index
    %35 = vector.load %arg4[%c0_14, %c0_15, %c0_16] : memref<1x1x96xf32, #tpu.memory_space<vmem>>, vector<1x1x96xf32>
    %36 = vector.shape_cast %35 : vector<1x1x96xf32> to vector<1x96xf32>
    %37 = vector.broadcast %36 : vector<1x96xf32> to vector<128x96xf32>
    %38 = arith.addf %34, %37 : vector<128x96xf32>
    %39 = vector.extract_strided_slice %38 {offsets = [0, 0], sizes = [128, 8], strides = [1, 1]} : vector<128x96xf32> to vector<128x8xf32>
    %40 = vector.shape_cast %39 : vector<128x8xf32> to vector<2x64x8xf32>
    %41 = arith.truncf %40 : vector<2x64x8xf32> to vector<2x64x8xbf16>
    %42 = vector.extract_strided_slice %38 {offsets = [0, 32], sizes = [128, 8], strides = [1, 1]} : vector<128x96xf32> to vector<128x8xf32>
    %43 = vector.shape_cast %42 : vector<128x8xf32> to vector<2x64x8xf32>
    %44 = arith.truncf %43 : vector<2x64x8xf32> to vector<2x64x8xbf16>
    %45 = vector.extract_strided_slice %38 {offsets = [0, 64], sizes = [128, 8], strides = [1, 1]} : vector<128x96xf32> to vector<128x8xf32>
    %46 = vector.shape_cast %45 : vector<128x8xf32> to vector<2x64x8xf32>
    %47 = arith.truncf %46 : vector<2x64x8xf32> to vector<2x64x8xbf16>
    "tpu.trace_start"() <{level = 10 : i32, message = "bnd,bmd->bnm"}> : () -> ()
    %cst_17 = arith.constant dense<0.000000e+00> : vector<2x64x64xf32>
    %48 = tpu.matmul %41, %44, %cst_17 {dimension_numbers = #tpu.dot_dimension_numbers<[2], [2], [1], [1], [0, 0, 0, 1, 1, 1], [0], [0]>} : vector<2x64x8xbf16>, vector<2x64x8xbf16>, vector<2x64x64xf32> -> vector<2x64x64xf32>
    "tpu.trace_stop"() : () -> ()
    %cst_18 = arith.constant dense<0xFF800000> : vector<2x64xf32>
    %49 = vector.multi_reduction <maximumf>, %48, %cst_18 [2] : vector<2x64x64xf32> to vector<2x64xf32>
    %50 = vector.shape_cast %49 : vector<2x64xf32> to vector<2x64x1xf32>
    %51 = vector.broadcast %50 : vector<2x64x1xf32> to vector<2x64x64xf32>
    %52 = arith.subf %48, %51 : vector<2x64x64xf32>
    %53 = math.exp %52 : vector<2x64x64xf32>
    %cst_19 = arith.constant dense<0.000000e+00> : vector<2x64xf32>
    %54 = vector.multi_reduction <add>, %53, %cst_19 [2] : vector<2x64x64xf32> to vector<2x64xf32>
    %55 = vector.shape_cast %54 : vector<2x64xf32> to vector<2x64x1xf32>
    %56 = tpu.reciprocal %55 {approx = true} : vector<2x64x1xf32> -> vector<2x64x1xf32>
    %57 = vector.broadcast %56 : vector<2x64x1xf32> to vector<2x64x64xf32>
    %58 = arith.mulf %53, %57 : vector<2x64x64xf32>
    %59 = arith.truncf %58 : vector<2x64x64xf32> to vector<2x64x64xbf16>
    "tpu.trace_start"() <{level = 10 : i32, message = "bnm,bmd->bnd"}> : () -> ()
    %cst_20 = arith.constant dense<0.000000e+00> : vector<2x64x8xf32>
    %60 = tpu.matmul %59, %47, %cst_20 {dimension_numbers = #tpu.dot_dimension_numbers<[2], [1], [1], [2], [0, 0, 0, 1, 1, 2], [0], [0]>} : vector<2x64x64xbf16>, vector<2x64x8xbf16>, vector<2x64x8xf32> -> vector<2x64x8xf32>
    "tpu.trace_stop"() : () -> ()
    %61 = vector.shape_cast %60 : vector<2x64x8xf32> to vector<128x8xf32>
    %62 = arith.truncf %61 : vector<128x8xf32> to vector<128x8xbf16>
    %63 = vector.extract_strided_slice %38 {offsets = [0, 8], sizes = [128, 8], strides = [1, 1]} : vector<128x96xf32> to vector<128x8xf32>
    %64 = vector.shape_cast %63 : vector<128x8xf32> to vector<2x64x8xf32>
    %65 = arith.truncf %64 : vector<2x64x8xf32> to vector<2x64x8xbf16>
    %66 = vector.extract_strided_slice %38 {offsets = [0, 40], sizes = [128, 8], strides = [1, 1]} : vector<128x96xf32> to vector<128x8xf32>
    %67 = vector.shape_cast %66 : vector<128x8xf32> to vector<2x64x8xf32>
    %68 = arith.truncf %67 : vector<2x64x8xf32> to vector<2x64x8xbf16>
    %69 = vector.extract_strided_slice %38 {offsets = [0, 72], sizes = [128, 8], strides = [1, 1]} : vector<128x96xf32> to vector<128x8xf32>
    %70 = vector.shape_cast %69 : vector<128x8xf32> to vector<2x64x8xf32>
    %71 = arith.truncf %70 : vector<2x64x8xf32> to vector<2x64x8xbf16>
    "tpu.trace_start"() <{level = 10 : i32, message = "bnd,bmd->bnm"}> : () -> ()
    %cst_21 = arith.constant dense<0.000000e+00> : vector<2x64x64xf32>
    %72 = tpu.matmul %65, %68, %cst_21 {dimension_numbers = #tpu.dot_dimension_numbers<[2], [2], [1], [1], [0, 0, 0, 1, 1, 1], [0], [0]>} : vector<2x64x8xbf16>, vector<2x64x8xbf16>, vector<2x64x64xf32> -> vector<2x64x64xf32>
    "tpu.trace_stop"() : () -> ()
    %cst_22 = arith.constant dense<0xFF800000> : vector<2x64xf32>
    %73 = vector.multi_reduction <maximumf>, %72, %cst_22 [2] : vector<2x64x64xf32> to vector<2x64xf32>
    %74 = vector.shape_cast %73 : vector<2x64xf32> to vector<2x64x1xf32>
    %75 = vector.broadcast %74 : vector<2x64x1xf32> to vector<2x64x64xf32>
    %76 = arith.subf %72, %75 : vector<2x64x64xf32>
    %77 = math.exp %76 : vector<2x64x64xf32>
    %cst_23 = arith.constant dense<0.000000e+00> : vector<2x64xf32>
    %78 = vector.multi_reduction <add>, %77, %cst_23 [2] : vector<2x64x64xf32> to vector<2x64xf32>
    %79 = vector.shape_cast %78 : vector<2x64xf32> to vector<2x64x1xf32>
    %80 = tpu.reciprocal %79 {approx = true} : vector<2x64x1xf32> -> vector<2x64x1xf32>
    %81 = vector.broadcast %80 : vector<2x64x1xf32> to vector<2x64x64xf32>
    %82 = arith.mulf %77, %81 : vector<2x64x64xf32>
    %83 = arith.truncf %82 : vector<2x64x64xf32> to vector<2x64x64xbf16>
    "tpu.trace_start"() <{level = 10 : i32, message = "bnm,bmd->bnd"}> : () -> ()
    %cst_24 = arith.constant dense<0.000000e+00> : vector<2x64x8xf32>
    %84 = tpu.matmul %83, %71, %cst_24 {dimension_numbers = #tpu.dot_dimension_numbers<[2], [1], [1], [2], [0, 0, 0, 1, 1, 2], [0], [0]>} : vector<2x64x64xbf16>, vector<2x64x8xbf16>, vector<2x64x8xf32> -> vector<2x64x8xf32>
    "tpu.trace_stop"() : () -> ()
    %85 = vector.shape_cast %84 : vector<2x64x8xf32> to vector<128x8xf32>
    %86 = arith.truncf %85 : vector<128x8xf32> to vector<128x8xbf16>
    %87 = vector.extract_strided_slice %38 {offsets = [0, 16], sizes = [128, 8], strides = [1, 1]} : vector<128x96xf32> to vector<128x8xf32>
    %88 = vector.shape_cast %87 : vector<128x8xf32> to vector<2x64x8xf32>
    %89 = arith.truncf %88 : vector<2x64x8xf32> to vector<2x64x8xbf16>
    %90 = vector.extract_strided_slice %38 {offsets = [0, 48], sizes = [128, 8], strides = [1, 1]} : vector<128x96xf32> to vector<128x8xf32>
    %91 = vector.shape_cast %90 : vector<128x8xf32> to vector<2x64x8xf32>
    %92 = arith.truncf %91 : vector<2x64x8xf32> to vector<2x64x8xbf16>
    %93 = vector.extract_strided_slice %38 {offsets = [0, 80], sizes = [128, 8], strides = [1, 1]} : vector<128x96xf32> to vector<128x8xf32>
    %94 = vector.shape_cast %93 : vector<128x8xf32> to vector<2x64x8xf32>
    %95 = arith.truncf %94 : vector<2x64x8xf32> to vector<2x64x8xbf16>
    "tpu.trace_start"() <{level = 10 : i32, message = "bnd,bmd->bnm"}> : () -> ()
    %cst_25 = arith.constant dense<0.000000e+00> : vector<2x64x64xf32>
    %96 = tpu.matmul %89, %92, %cst_25 {dimension_numbers = #tpu.dot_dimension_numbers<[2], [2], [1], [1], [0, 0, 0, 1, 1, 1], [0], [0]>} : vector<2x64x8xbf16>, vector<2x64x8xbf16>, vector<2x64x64xf32> -> vector<2x64x64xf32>
    "tpu.trace_stop"() : () -> ()
    %cst_26 = arith.constant dense<0xFF800000> : vector<2x64xf32>
    %97 = vector.multi_reduction <maximumf>, %96, %cst_26 [2] : vector<2x64x64xf32> to vector<2x64xf32>
    %98 = vector.shape_cast %97 : vector<2x64xf32> to vector<2x64x1xf32>
    %99 = vector.broadcast %98 : vector<2x64x1xf32> to vector<2x64x64xf32>
    %100 = arith.subf %96, %99 : vector<2x64x64xf32>
    %101 = math.exp %100 : vector<2x64x64xf32>
    %cst_27 = arith.constant dense<0.000000e+00> : vector<2x64xf32>
    %102 = vector.multi_reduction <add>, %101, %cst_27 [2] : vector<2x64x64xf32> to vector<2x64xf32>
    %103 = vector.shape_cast %102 : vector<2x64xf32> to vector<2x64x1xf32>
    %104 = tpu.reciprocal %103 {approx = true} : vector<2x64x1xf32> -> vector<2x64x1xf32>
    %105 = vector.broadcast %104 : vector<2x64x1xf32> to vector<2x64x64xf32>
    %106 = arith.mulf %101, %105 : vector<2x64x64xf32>
    %107 = arith.truncf %106 : vector<2x64x64xf32> to vector<2x64x64xbf16>
    "tpu.trace_start"() <{level = 10 : i32, message = "bnm,bmd->bnd"}> : () -> ()
    %cst_28 = arith.constant dense<0.000000e+00> : vector<2x64x8xf32>
    %108 = tpu.matmul %107, %95, %cst_28 {dimension_numbers = #tpu.dot_dimension_numbers<[2], [1], [1], [2], [0, 0, 0, 1, 1, 2], [0], [0]>} : vector<2x64x64xbf16>, vector<2x64x8xbf16>, vector<2x64x8xf32> -> vector<2x64x8xf32>
    "tpu.trace_stop"() : () -> ()
    %109 = vector.shape_cast %108 : vector<2x64x8xf32> to vector<128x8xf32>
    %110 = arith.truncf %109 : vector<128x8xf32> to vector<128x8xbf16>
    %111 = vector.extract_strided_slice %38 {offsets = [0, 24], sizes = [128, 8], strides = [1, 1]} : vector<128x96xf32> to vector<128x8xf32>
    %112 = vector.shape_cast %111 : vector<128x8xf32> to vector<2x64x8xf32>
    %113 = arith.truncf %112 : vector<2x64x8xf32> to vector<2x64x8xbf16>
    %114 = vector.extract_strided_slice %38 {offsets = [0, 56], sizes = [128, 8], strides = [1, 1]} : vector<128x96xf32> to vector<128x8xf32>
    %115 = vector.shape_cast %114 : vector<128x8xf32> to vector<2x64x8xf32>
    %116 = arith.truncf %115 : vector<2x64x8xf32> to vector<2x64x8xbf16>
    %117 = vector.extract_strided_slice %38 {offsets = [0, 88], sizes = [128, 8], strides = [1, 1]} : vector<128x96xf32> to vector<128x8xf32>
    %118 = vector.shape_cast %117 : vector<128x8xf32> to vector<2x64x8xf32>
    %119 = arith.truncf %118 : vector<2x64x8xf32> to vector<2x64x8xbf16>
    "tpu.trace_start"() <{level = 10 : i32, message = "bnd,bmd->bnm"}> : () -> ()
    %cst_29 = arith.constant dense<0.000000e+00> : vector<2x64x64xf32>
    %120 = tpu.matmul %113, %116, %cst_29 {dimension_numbers = #tpu.dot_dimension_numbers<[2], [2], [1], [1], [0, 0, 0, 1, 1, 1], [0], [0]>} : vector<2x64x8xbf16>, vector<2x64x8xbf16>, vector<2x64x64xf32> -> vector<2x64x64xf32>
    "tpu.trace_stop"() : () -> ()
    %cst_30 = arith.constant dense<0xFF800000> : vector<2x64xf32>
    %121 = vector.multi_reduction <maximumf>, %120, %cst_30 [2] : vector<2x64x64xf32> to vector<2x64xf32>
    %122 = vector.shape_cast %121 : vector<2x64xf32> to vector<2x64x1xf32>
    %123 = vector.broadcast %122 : vector<2x64x1xf32> to vector<2x64x64xf32>
    %124 = arith.subf %120, %123 : vector<2x64x64xf32>
    %125 = math.exp %124 : vector<2x64x64xf32>
    %cst_31 = arith.constant dense<0.000000e+00> : vector<2x64xf32>
    %126 = vector.multi_reduction <add>, %125, %cst_31 [2] : vector<2x64x64xf32> to vector<2x64xf32>
    %127 = vector.shape_cast %126 : vector<2x64xf32> to vector<2x64x1xf32>
    %128 = tpu.reciprocal %127 {approx = true} : vector<2x64x1xf32> -> vector<2x64x1xf32>
    %129 = vector.broadcast %128 : vector<2x64x1xf32> to vector<2x64x64xf32>
    %130 = arith.mulf %125, %129 : vector<2x64x64xf32>
    %131 = arith.truncf %130 : vector<2x64x64xf32> to vector<2x64x64xbf16>
    "tpu.trace_start"() <{level = 10 : i32, message = "bnm,bmd->bnd"}> : () -> ()
    %cst_32 = arith.constant dense<0.000000e+00> : vector<2x64x8xf32>
    %132 = tpu.matmul %131, %119, %cst_32 {dimension_numbers = #tpu.dot_dimension_numbers<[2], [1], [1], [2], [0, 0, 0, 1, 1, 2], [0], [0]>} : vector<2x64x64xbf16>, vector<2x64x8xbf16>, vector<2x64x8xf32> -> vector<2x64x8xf32>
    "tpu.trace_stop"() : () -> ()
    %133 = vector.shape_cast %132 : vector<2x64x8xf32> to vector<128x8xf32>
    %134 = arith.truncf %133 : vector<128x8xf32> to vector<128x8xbf16>
    %135 = tpu.concatenate %62, %86, %110, %134 in 1 : vector<128x8xbf16>, vector<128x8xbf16>, vector<128x8xbf16>, vector<128x8xbf16> -> vector<128x32xbf16>
    %c0_33 = arith.constant 0 : index
    %c0_34 = arith.constant 0 : index
    %c0_35 = arith.constant 0 : index
    %136 = vector.load %arg7[%c0_33, %c0_34, %c0_35] : memref<1x32x32xbf16, #tpu.memory_space<vmem>>, vector<1x32x32xbf16>
    %137 = vector.shape_cast %136 : vector<1x32x32xbf16> to vector<32x32xbf16>
    %cst_36 = arith.constant dense<0.000000e+00> : vector<128x32xf32>
    %138 = tpu.matmul %135, %137, %cst_36 {dimension_numbers = #tpu.dot_dimension_numbers<[1], [0], [0], [1], [0, 0, 1, 1], [], []>} : vector<128x32xbf16>, vector<32x32xbf16>, vector<128x32xf32> -> vector<128x32xf32>
    %139 = vector.extract_strided_slice %6 {offsets = [4, 0], sizes = [1, 32], strides = [1, 1]} : vector<6x32xf32> to vector<1x32xf32>
    %140 = vector.broadcast %139 : vector<1x32xf32> to vector<128x32xf32>
    %141 = arith.addf %138, %140 : vector<128x32xf32>
    %142 = arith.addf %4, %141 : vector<128x32xf32>
    %143 = vector.extract_strided_slice %6 {offsets = [2, 0], sizes = [1, 32], strides = [1, 1]} : vector<6x32xf32> to vector<1x32xf32>
    %144 = vector.extract_strided_slice %6 {offsets = [3, 0], sizes = [1, 32], strides = [1, 1]} : vector<6x32xf32> to vector<1x32xf32>
    %cst_37 = arith.constant dense<0.000000e+00> : vector<128xf32>
    %145 = vector.multi_reduction <add>, %142, %cst_37 [1] : vector<128x32xf32> to vector<128xf32>
    %146 = vector.shape_cast %145 : vector<128xf32> to vector<128x1xf32>
    %cst_38 = arith.constant 3.200000e+01 : f32
    %147 = vector.broadcast %cst_38 : f32 to vector<128x1xf32>
    %148 = arith.divf %146, %147 : vector<128x1xf32>
    %149 = vector.broadcast %148 : vector<128x1xf32> to vector<128x32xf32>
    %150 = arith.subf %142, %149 : vector<128x32xf32>
    %151 = arith.mulf %150, %150 : vector<128x32xf32>
    %cst_39 = arith.constant dense<0.000000e+00> : vector<128xf32>
    %152 = vector.multi_reduction <add>, %151, %cst_39 [1] : vector<128x32xf32> to vector<128xf32>
    %153 = vector.shape_cast %152 : vector<128xf32> to vector<128x1xf32>
    %cst_40 = arith.constant 3.200000e+01 : f32
    %154 = vector.broadcast %cst_40 : f32 to vector<128x1xf32>
    %155 = arith.divf %153, %154 : vector<128x1xf32>
    %156 = vector.broadcast %148 : vector<128x1xf32> to vector<128x32xf32>
    %157 = arith.subf %142, %156 : vector<128x32xf32>
    %cst_41 = arith.constant 9.99999974E-6 : f32
    %158 = vector.broadcast %cst_41 : f32 to vector<128x1xf32>
    %159 = arith.addf %155, %158 : vector<128x1xf32>
    %160 = math.rsqrt %159 : vector<128x1xf32>
    %161 = vector.broadcast %160 : vector<128x1xf32> to vector<128x32xf32>
    %162 = arith.mulf %157, %161 : vector<128x32xf32>
    %163 = vector.broadcast %143 : vector<1x32xf32> to vector<128x32xf32>
    %164 = arith.mulf %162, %163 : vector<128x32xf32>
    %165 = vector.broadcast %144 : vector<1x32xf32> to vector<128x32xf32>
    %166 = arith.addf %164, %165 : vector<128x32xf32>
    %167 = arith.truncf %166 : vector<128x32xf32> to vector<128x32xbf16>
    %c0_42 = arith.constant 0 : index
    %c0_43 = arith.constant 0 : index
    %c0_44 = arith.constant 0 : index
    %168 = vector.load %arg8[%c0_42, %c0_43, %c0_44] : memref<1x32x64xbf16, #tpu.memory_space<vmem>>, vector<1x32x64xbf16>
    %169 = vector.shape_cast %168 : vector<1x32x64xbf16> to vector<32x64xbf16>
    %cst_45 = arith.constant dense<0.000000e+00> : vector<128x64xf32>
    %170 = tpu.matmul %167, %169, %cst_45 {dimension_numbers = #tpu.dot_dimension_numbers<[1], [0], [0], [1], [0, 0, 1, 1], [], []>} : vector<128x32xbf16>, vector<32x64xbf16>, vector<128x64xf32> -> vector<128x64xf32>
    %c0_46 = arith.constant 0 : index
    %c0_47 = arith.constant 0 : index
    %c0_48 = arith.constant 0 : index
    %171 = vector.load %arg5[%c0_46, %c0_47, %c0_48] : memref<1x1x64xf32, #tpu.memory_space<vmem>>, vector<1x1x64xf32>
    %172 = vector.shape_cast %171 : vector<1x1x64xf32> to vector<1x64xf32>
    %173 = vector.broadcast %172 : vector<1x64xf32> to vector<128x64xf32>
    %174 = arith.addf %170, %173 : vector<128x64xf32>
    %175 = arith.mulf %174, %174 : vector<128x64xf32>
    %176 = arith.mulf %174, %175 : vector<128x64xf32>
    %cst_49 = arith.constant 4.471500e-02 : f32
    %177 = vector.broadcast %cst_49 : f32 to vector<128x64xf32>
    %178 = arith.mulf %177, %176 : vector<128x64xf32>
    %179 = arith.addf %174, %178 : vector<128x64xf32>
    %cst_50 = arith.constant 0.797884583 : f32
    %180 = vector.broadcast %cst_50 : f32 to vector<128x64xf32>
    %181 = arith.mulf %180, %179 : vector<128x64xf32>
    %182 = math.tanh %181 : vector<128x64xf32>
    %cst_51 = arith.constant 1.000000e+00 : f32
    %183 = vector.broadcast %cst_51 : f32 to vector<128x64xf32>
    %184 = arith.addf %183, %182 : vector<128x64xf32>
    %cst_52 = arith.constant 5.000000e-01 : f32
    %185 = vector.broadcast %cst_52 : f32 to vector<128x64xf32>
    %186 = arith.mulf %185, %184 : vector<128x64xf32>
    %187 = arith.mulf %174, %186 : vector<128x64xf32>
    %188 = arith.truncf %187 : vector<128x64xf32> to vector<128x64xbf16>
    %c0_53 = arith.constant 0 : index
    %c0_54 = arith.constant 0 : index
    %c0_55 = arith.constant 0 : index
    %189 = vector.load %arg9[%c0_53, %c0_54, %c0_55] : memref<1x64x32xbf16, #tpu.memory_space<vmem>>, vector<1x64x32xbf16>
    %190 = vector.shape_cast %189 : vector<1x64x32xbf16> to vector<64x32xbf16>
    %cst_56 = arith.constant dense<0.000000e+00> : vector<128x32xf32>
    %191 = tpu.matmul %188, %190, %cst_56 {dimension_numbers = #tpu.dot_dimension_numbers<[1], [0], [0], [1], [0, 0, 1, 1], [], []>} : vector<128x64xbf16>, vector<64x32xbf16>, vector<128x32xf32> -> vector<128x32xf32>
    %192 = vector.extract_strided_slice %6 {offsets = [5, 0], sizes = [1, 32], strides = [1, 1]} : vector<6x32xf32> to vector<1x32xf32>
    %193 = vector.broadcast %192 : vector<1x32xf32> to vector<128x32xf32>
    %194 = arith.addf %191, %193 : vector<128x32xf32>
    %195 = arith.addf %142, %194 : vector<128x32xf32>
    %196 = vector.shape_cast %195 : vector<128x32xf32> to vector<2x64x32xf32>
    %c0_57 = arith.constant 0 : index
    %c0_58 = arith.constant 0 : index
    %c0_59 = arith.constant 0 : index
    %197 = vector.load %arg10[%c0_57, %c0_58, %c0_59] : memref<2x64x32xf32, #tpu.memory_space<vmem>>, vector<2x64x32xf32>
    tpu.vector_store %arg10[%c0_57, %c0_58, %c0_59], %196 {strides = array<i32>} : memref<2x64x32xf32, #tpu.memory_space<vmem>>, vector<2x64x32xf32>,
    return
  }
  func.func @transform_0(%arg0: i32, %arg1: i32) -> (i32, i32, i32) {
    %c0_i32 = arith.constant 0 : i32
    %c0_i32_0 = arith.constant 0 : i32
    %c0_i32_1 = arith.constant 0 : i32
    return %arg0, %c0_i32, %c0_i32_0 : i32, i32, i32
  }
  func.func @transform_1(%arg0: i32, %arg1: i32) -> (i32, i32, i32) {
    %c0_i32 = arith.constant 0 : i32
    %c0_i32_0 = arith.constant 0 : i32
    %c0_i32_1 = arith.constant 0 : i32
    return %arg1, %c0_i32, %c0_i32_0 : i32, i32, i32
  }
  func.func @transform_2(%arg0: i32, %arg1: i32) -> (i32, i32, i32) {
    %c0_i32 = arith.constant 0 : i32
    %c0_i32_0 = arith.constant 0 : i32
    %c0_i32_1 = arith.constant 0 : i32
    return %arg1, %c0_i32, %c0_i32_0 : i32, i32, i32
  }
  func.func @transform_3(%arg0: i32, %arg1: i32) -> (i32, i32, i32) {
    %c0_i32 = arith.constant 0 : i32
    %c0_i32_0 = arith.constant 0 : i32
    %c0_i32_1 = arith.constant 0 : i32
    return %arg1, %c0_i32, %c0_i32_0 : i32, i32, i32
  }
  func.func @transform_4(%arg0: i32, %arg1: i32) -> (i32, i32, i32) {
    %c0_i32 = arith.constant 0 : i32
    %c0_i32_0 = arith.constant 0 : i32
    %c0_i32_1 = arith.constant 0 : i32
    return %arg1, %c0_i32, %c0_i32_0 : i32, i32, i32
  }
  func.func @transform_5(%arg0: i32, %arg1: i32) -> (i32, i32, i32) {
    %c0_i32 = arith.constant 0 : i32
    %c0_i32_0 = arith.constant 0 : i32
    %c0_i32_1 = arith.constant 0 : i32
    return %arg1, %c0_i32, %c0_i32_0 : i32, i32, i32
  }
  func.func @transform_6(%arg0: i32, %arg1: i32) -> (i32, i32, i32) {
    %c0_i32 = arith.constant 0 : i32
    %c0_i32_0 = arith.constant 0 : i32
    %c0_i32_1 = arith.constant 0 : i32
    return %arg1, %c0_i32, %c0_i32_0 : i32, i32, i32
  }
  func.func @transform_7(%arg0: i32, %arg1: i32) -> (i32, i32, i32) {
    %c0_i32 = arith.constant 0 : i32
    %c0_i32_0 = arith.constant 0 : i32
    %c0_i32_1 = arith.constant 0 : i32
    return %arg1, %c0_i32, %c0_i32_0 : i32, i32, i32
  }
  func.func @transform_8(%arg0: i32, %arg1: i32) -> (i32, i32, i32) {
    %c0_i32 = arith.constant 0 : i32
    %c0_i32_0 = arith.constant 0 : i32
    %c0_i32_1 = arith.constant 0 : i32
    return %arg0, %c0_i32, %c0_i32_0 : i32, i32, i32
  }
}

</mosaic_0001>

<llo_original>
// kernel: tpu_custom_call.1
$region0: #{tpu_custom_call.1}
  #allocation0 [shape = 'u32[]', space=smem, size = 0x4, offset = 0x4, fixed_abs, tag = 'smem constant byte address 0x4 - core index']
  #allocation1 [shape = 'u32[144,128]{1,0:T(1,128)}', space=vmem, size = 0x12000, scoped, tag = 'internal scratch']
  %s0 = inlined_call_operand.vmem [shape: f32[4,64,32], index: 0, kind: input, shape index: {}]
  %s1 = inlined_call_operand.vmem [shape: f32[2,6,32], index: 1, kind: input, shape index: {}]
  %s2 = inlined_call_operand.vmem [shape: f32[2,1,96], index: 2, kind: input, shape index: {}]
  %s3 = inlined_call_operand.vmem [shape: f32[2,1,64], index: 3, kind: input, shape index: {}]
  %s4 = inlined_call_operand.vmem [shape: bf16[2,32,96], index: 4, kind: input, shape index: {}]
  %s5 = inlined_call_operand.vmem [shape: bf16[2,32,32], index: 5, kind: input, shape index: {}]
  %s6 = inlined_call_operand.vmem [shape: bf16[2,32,64], index: 6, kind: input, shape index: {}]
  %s7 = inlined_call_operand.vmem [shape: bf16[2,64,32], index: 7, kind: input, shape index: {}]
  %s8 = inlined_call_operand.vmem [shape: f32[4,64,32], index: 8, kind: output, shape index: {}]
  %s9 = sld [smem:[#allocation0]]
  $region69: #{tpu_custom_call.1} parent=0
    _
  %s11 = ssub.s32 1, %s9
  %s12 = scalar_select 0, %s11, %s9
  loop: start=0, step=1, limit=6
  $region2: #{tpu_custom_call.1} parent=0 // loop_pre_header
    _
  $region3: #{tpu_custom_call.1} parent=0 // loop_header
    %s14 = sphi 0, %s18
    %p15 = scmp.ge.s32.totalorder %s14, 6
    %s21 = sphi 0, %s33
    %s22 = sphi 0, %s29
    %s23 = sphi 0, %s21
    %s24 = sphi 0, %s22
    %s25 = sphi 0, %s23
    %s26 = sphi 0, %s24
    %s36 = sphi 0, %s38
    %s39 = sphi 0, %s36
    %s40 = sphi 0, %s39
    %s56 = sphi 0, %s40
    %s62 = sphi 0, %s64
    %s65 = sphi 0, %s62
    %s66 = sphi 0, %s65
    %s82 = sphi 0, %s66
    %s88 = sphi 0, %s90
    %s91 = sphi 0, %s88
    %s92 = sphi 0, %s91
    %s108 = sphi 0, %s92
    %s114 = sphi 0, %s116
    %s117 = sphi 0, %s114
    %s118 = sphi 0, %s117
    %s134 = sphi 0, %s118
    %s140 = sphi 0, %s142
    %s143 = sphi 0, %s140
    %s144 = sphi 0, %s143
    %s160 = sphi 0, %s144
    %s166 = sphi 0, %s168
    %s169 = sphi 0, %s166
    %s170 = sphi 0, %s169
    %s186 = sphi 0, %s170
    %s192 = sphi 0, %s194
    %s195 = sphi 0, %s192
    %s196 = sphi 0, %s195
    %s212 = sphi 0, %s196
    %s218 = sphi 0, %s220
    %s221 = sphi 0, %s218
    %s222 = sphi 0, %s221
    %s238 = sphi 0, %s222
    %s244 = sphi 0, %s246
    %s247 = sphi 0, %s244
    %s248 = sphi 0, %s247
    %s264 = sphi 0, %s248
  $region4: #{tpu_custom_call.1} parent=0 // loop_header_branch
    %17 = sbr.rel (%p15) target = $region8
  $region5: #{tpu_custom_call.1} parent=0 // loop_body
    %s19 = ssub.s32 %s14, 1
    %s20 = ssub.s32 %s14, 2
    %s27 = sadd.s32 1, %s22
    %p28 = scmp.ge.s32.totalorder %s27, 2
    %s29 = scalar_select %p28, 0, %s27
    %s30 = sadd.s32 1, %s21
    %s31 = scalar_select %p28, %s30, %s21
    %p32 = scmp.ge.s32.totalorder %s31, 2
    %s33 = scalar_select %p32, 0, %s31
    %s34 = ssub.s32 %s21, %s33
    %p35 = scmp.eq.s32.totalorder %s34, 0
    %s37 = sadd.s32 %s36, 1
    %s38 = scalar_select %p35, %s36, %s37
    %p41 = pneg %p35
    %p42 = scmp.eq.s32.totalorder %s14, 3
    %p43 = por %p41, %p42
    %p44 = scmp.ne.s32.totalorder %s36, %s39
    %p45 = scmp.eq.s32.totalorder %s14, 0
    %p46 = por %p44, %p45
    %p47 = scmp.ne.s32.totalorder %s36, %s39
    %p48 = scmp.eq.s32.totalorder %s19, 3
    %p49 = por %p47, %p48
    %p50 = scmp.ne.s32.totalorder %s39, %s40
    %p51 = scmp.eq.s32.totalorder %s19, 0
    %p52 = por %p50, %p51
    %p53 = scmp.ne.s32.totalorder %s39, %s40
    %p54 = scmp.eq.s32.totalorder %s20, 3
    %p55 = por %p53, %p54
    %p57 = scmp.ne.s32.totalorder %s40, %s56
    %p58 = scmp.eq.s32.totalorder %s20, 0
    %p59 = por %p57, %p58
    %s60 = ssub.s32 %s22, %s29
    %p61 = scmp.eq.s32.totalorder %s60, 0
    %s63 = sadd.s32 %s62, 1
    %s64 = scalar_select %p61, %s62, %s63
    %p67 = pneg %p61
    %p68 = scmp.eq.s32.totalorder %s14, 3
    %p69 = por %p67, %p68
    %p70 = scmp.ne.s32.totalorder %s62, %s65
    %p71 = scmp.eq.s32.totalorder %s14, 0
    %p72 = por %p70, %p71
    %p73 = scmp.ne.s32.totalorder %s62, %s65
    %p74 = scmp.eq.s32.totalorder %s19, 3
    %p75 = por %p73, %p74
    %p76 = scmp.ne.s32.totalorder %s65, %s66
    %p77 = scmp.eq.s32.totalorder %s19, 0
    %p78 = por %p76, %p77
    %p79 = scmp.ne.s32.totalorder %s65, %s66
    %p80 = scmp.eq.s32.totalorder %s20, 3
    %p81 = por %p79, %p80
    %p83 = scmp.ne.s32.totalorder %s66, %s82
    %p84 = scmp.eq.s32.totalorder %s20, 0
    %p85 = por %p83, %p84
    %s86 = ssub.s32 %s22, %s29
    %p87 = scmp.eq.s32.totalorder %s86, 0
    %s89 = sadd.s32 %s88, 1
    %s90 = scalar_select %p87, %s88, %s89
    %p93 = pneg %p87
    %p94 = scmp.eq.s32.totalorder %s14, 3
    %p95 = por %p93, %p94
    %p96 = scmp.ne.s32.totalorder %s88, %s91
    %p97 = scmp.eq.s32.totalorder %s14, 0
    %p98 = por %p96, %p97
    %p99 = scmp.ne.s32.totalorder %s88, %s91
    %p100 = scmp.eq.s32.totalorder %s19, 3
    %p101 = por %p99, %p100
    %p102 = scmp.ne.s32.totalorder %s91, %s92
    %p103 = scmp.eq.s32.totalorder %s19, 0
    %p104 = por %p102, %p103
    %p105 = scmp.ne.s32.totalorder %s91, %s92
    %p106 = scmp.eq.s32.totalorder %s20, 3
    %p107 = por %p105, %p106
    %p109 = scmp.ne.s32.totalorder %s92, %s108
    %p110 = scmp.eq.s32.totalorder %s20, 0
    %p111 = por %p109, %p110
    %s112 = ssub.s32 %s22, %s29
    %p113 = scmp.eq.s32.totalorder %s112, 0
    %s115 = sadd.s32 %s114, 1
    %s116 = scalar_select %p113, %s114, %s115
    %p119 = pneg %p113
    %p120 = scmp.eq.s32.totalorder %s14, 3
    %p121 = por %p119, %p120
    %p122 = scmp.ne.s32.totalorder %s114, %s117
    %p123 = scmp.eq.s32.totalorder %s14, 0
    %p124 = por %p122, %p123
    %p125 = scmp.ne.s32.totalorder %s114, %s117
    %p126 = scmp.eq.s32.totalorder %s19, 3
    %p127 = por %p125, %p126
    %p128 = scmp.ne.s32.totalorder %s117, %s118
    %p129 = scmp.eq.s32.totalorder %s19, 0
    %p130 = por %p128, %p129
    %p131 = scmp.ne.s32.totalorder %s117, %s118
    %p132 = scmp.eq.s32.totalorder %s20, 3
    %p133 = por %p131, %p132
    %p135 = scmp.ne.s32.totalorder %s118, %s134
    %p136 = scmp.eq.s32.totalorder %s20, 0
    %p137 = por %p135, %p136
    %s138 = ssub.s32 %s22, %s29
    %p139 = scmp.eq.s32.totalorder %s138, 0
    %s141 = sadd.s32 %s140, 1
    %s142 = scalar_select %p139, %s140, %s141
    %p145 = pneg %p139
    %p146 = scmp.eq.s32.totalorder %s14, 3
    %p147 = por %p145, %p146
    %p148 = scmp.ne.s32.totalorder %s140, %s143
    %p149 = scmp.eq.s32.totalorder %s14, 0
    %p150 = por %p148, %p149
    %p151 = scmp.ne.s32.totalorder %s140, %s143
    %p152 = scmp.eq.s32.totalorder %s19, 3
    %p153 = por %p151, %p152
    %p154 = scmp.ne.s32.totalorder %s143, %s144
    %p155 = scmp.eq.s32.totalorder %s19, 0
    %p156 = por %p154, %p155
    %p157 = scmp.ne.s32.totalorder %s143, %s144
    %p158 = scmp.eq.s32.totalorder %s20, 3
    %p159 = por %p157, %p158
    %p161 = scmp.ne.s32.totalorder %s144, %s160
    %p162 = scmp.eq.s32.totalorder %s20, 0
    %p163 = por %p161, %p162
    %s164 = ssub.s32 %s22, %s29
    %p165 = scmp.eq.s32.totalorder %s164, 0
    %s167 = sadd.s32 %s166, 1
    %s168 = scalar_select %p165, %s166, %s167
    %p171 = pneg %p165
    %p172 = scmp.eq.s32.totalorder %s14, 3
    %p173 = por %p171, %p172
    %p174 = scmp.ne.s32.totalorder %s166, %s169
    %p175 = scmp.eq.s32.totalorder %s14, 0
    %p176 = por %p174, %p175
    %p177 = scmp.ne.s32.totalorder %s166, %s169
    %p178 = scmp.eq.s32.totalorder %s19, 3
    %p179 = por %p177, %p178
    %p180 = scmp.ne.s32.totalorder %s169, %s170
    %p181 = scmp.eq.s32.totalorder %s19, 0
    %p182 = por %p180, %p181
    %p183 = scmp.ne.s32.totalorder %s169, %s170
    %p184 = scmp.eq.s32.totalorder %s20, 3
    %p185 = por %p183, %p184
    %p187 = scmp.ne.s32.totalorder %s170, %s186
    %p188 = scmp.eq.s32.totalorder %s20, 0
    %p189 = por %p187, %p188
    %s190 = ssub.s32 %s22, %s29
    %p191 = scmp.eq.s32.totalorder %s190, 0
    %s193 = sadd.s32 %s192, 1
    %s194 = scalar_select %p191, %s192, %s193
    %p197 = pneg %p191
    %p198 = scmp.eq.s32.totalorder %s14, 3
    %p199 = por %p197, %p198
    %p200 = scmp.ne.s32.totalorder %s192, %s195
    %p201 = scmp.eq.s32.totalorder %s14, 0
    %p202 = por %p200, %p201
    %p203 = scmp.ne.s32.totalorder %s192, %s195
    %p204 = scmp.eq.s32.totalorder %s19, 3
    %p205 = por %p203, %p204
    %p206 = scmp.ne.s32.totalorder %s195, %s196
    %p207 = scmp.eq.s32.totalorder %s19, 0
    %p208 = por %p206, %p207
    %p209 = scmp.ne.s32.totalorder %s195, %s196
    %p210 = scmp.eq.s32.totalorder %s20, 3
    %p211 = por %p209, %p210
    %p213 = scmp.ne.s32.totalorder %s196, %s212
    %p214 = scmp.eq.s32.totalorder %s20, 0
    %p215 = por %p213, %p214
    %s216 = ssub.s32 %s22, %s29
    %p217 = scmp.eq.s32.totalorder %s216, 0
    %s219 = sadd.s32 %s218, 1
    %s220 = scalar_select %p217, %s218, %s219
    %p223 = pneg %p217
    %p224 = scmp.eq.s32.totalorder %s14, 3
    %p225 = por %p223, %p224
    %p226 = scmp.ne.s32.totalorder %s218, %s221
    %p227 = scmp.eq.s32.totalorder %s14, 0
    %p228 = por %p226, %p227
    %p229 = scmp.ne.s32.totalorder %s218, %s221
    %p230 = scmp.eq.s32.totalorder %s19, 3
    %p231 = por %p229, %p230
    %p232 = scmp.ne.s32.totalorder %s221, %s222
    %p233 = scmp.eq.s32.totalorder %s19, 0
    %p234 = por %p232, %p233
    %p235 = scmp.ne.s32.totalorder %s221, %s222
    %p236 = scmp.eq.s32.totalorder %s20, 3
    %p237 = por %p235, %p236
    %p239 = scmp.ne.s32.totalorder %s222, %s238
    %p240 = scmp.eq.s32.totalorder %s20, 0
    %p241 = por %p239, %p240
    %s242 = ssub.s32 %s21, %s33
    %p243 = scmp.eq.s32.totalorder %s242, 0
    %s245 = sadd.s32 %s244, 1
    %s246 = scalar_select %p243, %s244, %s245
    %p249 = pneg %p243
    %p250 = scmp.eq.s32.totalorder %s14, 3
    %p251 = por %p249, %p250
    %p252 = scmp.ne.s32.totalorder %s244, %s247
    %p253 = scmp.eq.s32.totalorder %s14, 0
    %p254 = por %p252, %p253
    %p255 = scmp.ne.s32.totalorder %s244, %s247
    %p256 = scmp.eq.s32.totalorder %s19, 3
    %p257 = por %p255, %p256
    %p258 = scmp.ne.s32.totalorder %s247, %s248
    %p259 = scmp.eq.s32.totalorder %s19, 0
    %p260 = por %p258, %p259
    %p261 = scmp.ne.s32.totalorder %s247, %s248
    %p262 = scmp.eq.s32.totalorder %s20, 3
    %p263 = por %p261, %p262
    %p265 = scmp.ne.s32.totalorder %s248, %s264
    %p266 = scmp.eq.s32.totalorder %s20, 0
    %p267 = por %p265, %p266
    %p268 = scmp.le.s32.totalorder 1, %s14
    %p269 = scmp.lt.s32.totalorder %s14, 5
    %p270 = pnand %p268, %p269
    %p271 = pneg %p270
    // Predicated region
    $region9: #{tpu_custom_call.1} parent=5 // pred_check
      _
    $region10: #{tpu_custom_call.1} parent=5 // pred_check_branch
      %273 = sbr.rel (%p270) target = $region12
    $region11: #{tpu_custom_call.1} parent=5 // pred_region
      %s274 = ssub.s32 %s14, 1
    $region12: #{tpu_custom_call.1} parent=5 // pred_fallthru
      _
    %p275 = scmp.lt.s32.totalorder %s14, 4
    // Predicated region
    $region13: #{tpu_custom_call.1} parent=5 // pred_check
      %p276 = pneg %p275
    $region14: #{tpu_custom_call.1} parent=5 // pred_check_branch
      %278 = sbr.rel (%p276) target = $region16
    $region15: #{tpu_custom_call.1} parent=5 // pred_region
      // Predicated region
      $region17: #{tpu_custom_call.1} parent=15 // pred_check
        %p279 = pneg %p46
      $region18: #{tpu_custom_call.1} parent=15 // pred_check_branch
        %281 = sbr.rel (%p279) target = $region20
      $region19: #{tpu_custom_call.1} parent=15 // pred_region
        %s282 = smul.u32 2, %s21
        %p283 = scmp.lt.s32.totalorder %s282, 3
        %s284 = scalar_select %p283, %s282, 3
        %s285 = smul.addr %s284, 8
        %s286 = smul.addr %s285, 8
        %s287 = scalar_lea.vmem %s0, %s286
        %s288 = smul.u32 2, %s21
      $region20: #{tpu_custom_call.1} parent=15 // pred_fallthru
        _
      // Predicated region
      $region21: #{tpu_custom_call.1} parent=15 // pred_check
        %p289 = pneg %p72
      $region22: #{tpu_custom_call.1} parent=15 // pred_check_branch
        %291 = sbr.rel (%p289) target = $region24
      $region23: #{tpu_custom_call.1} parent=15 // pred_region
        %p292 = scmp.lt.s32.totalorder %s22, 1
        %s293 = scalar_select %p292, %s22, 1
        %s294 = smul.addr %s293, 8
        %s295 = scalar_lea.vmem %s1, %s294
      $region24: #{tpu_custom_call.1} parent=15 // pred_fallthru
        _
      // Predicated region
      $region25: #{tpu_custom_call.1} parent=15 // pred_check
        %p296 = pneg %p98
      $region26: #{tpu_custom_call.1} parent=15 // pred_check_branch
        %298 = sbr.rel (%p296) target = $region28
      $region27: #{tpu_custom_call.1} parent=15 // pred_region
        %p299 = scmp.lt.s32.totalorder %s22, 1
        %s300 = scalar_select %p299, %s22, 1
        %s301 = scalar_lea.vmem %s2, %s300
      $region28: #{tpu_custom_call.1} parent=15 // pred_fallthru
        _
      // Predicated region
      $region29: #{tpu_custom_call.1} parent=15 // pred_check
        %p302 = pneg %p124
      $region30: #{tpu_custom_call.1} parent=15 // pred_check_branch
        %304 = sbr.rel (%p302) target = $region32
      $region31: #{tpu_custom_call.1} parent=15 // pred_region
        %p305 = scmp.lt.s32.totalorder %s22, 1
        %s306 = scalar_select %p305, %s22, 1
        %s307 = scalar_lea.vmem %s3, %s306
      $region32: #{tpu_custom_call.1} parent=15 // pred_fallthru
        _
      // Predicated region
      $region33: #{tpu_custom_call.1} parent=15 // pred_check
        %p308 = pneg %p150
      $region34: #{tpu_custom_call.1} parent=15 // pred_check_branch
        %310 = sbr.rel (%p308) target = $region36
      $region35: #{tpu_custom_call.1} parent=15 // pred_region
        %p311 = scmp.lt.s32.totalorder %s22, 1
        %s312 = scalar_select %p311, %s22, 1
        %s313 = smul.addr %s312, 4
        %s314 = smul.addr %s313, 4
        %s315 = scalar_lea.vmem %s4, %s314
      $region36: #{tpu_custom_call.1} parent=15 // pred_fallthru
        _
      // Predicated region
      $region37: #{tpu_custom_call.1} parent=15 // pred_check
        %p316 = pneg %p176
      $region38: #{tpu_custom_call.1} parent=15 // pred_check_branch
        %318 = sbr.rel (%p316) target = $region40
      $region39: #{tpu_custom_call.1} parent=15 // pred_region
        %p319 = scmp.lt.s32.totalorder %s22, 1
        %s320 = scalar_select %p319, %s22, 1
        %s321 = smul.addr %s320, 4
        %s322 = smul.addr %s321, 4
        %s323 = scalar_lea.vmem %s5, %s322
      $region40: #{tpu_custom_call.1} parent=15 // pred_fallthru
        _
      // Predicated region
      $region41: #{tpu_custom_call.1} parent=15 // pred_check
        %p324 = pneg %p202
      $region42: #{tpu_custom_call.1} parent=15 // pred_check_branch
        %326 = sbr.rel (%p324) target = $region44
      $region43: #{tpu_custom_call.1} parent=15 // pred_region
        %p327 = scmp.lt.s32.totalorder %s22, 1
        %s328 = scalar_select %p327, %s22, 1
        %s329 = smul.addr %s328, 4
        %s330 = smul.addr %s329, 4
        %s331 = scalar_lea.vmem %s6, %s330
      $region44: #{tpu_custom_call.1} parent=15 // pred_fallthru
        _
      // Predicated region
      $region45: #{tpu_custom_call.1} parent=15 // pred_check
        %p332 = pneg %p228
      $region46: #{tpu_custom_call.1} parent=15 // pred_check_branch
        %334 = sbr.rel (%p332) target = $region48
      $region47: #{tpu_custom_call.1} parent=15 // pred_region
        %p335 = scmp.lt.s32.totalorder %s22, 1
        %s336 = scalar_select %p335, %s22, 1
        %s337 = smul.addr %s336, 8
        %s338 = smul.addr %s337, 4
        %s339 = scalar_lea.vmem %s7, %s338
      $region48: #{tpu_custom_call.1} parent=15 // pred_fallthru
        _
    $region16: #{tpu_custom_call.1} parent=5 // pred_fallthru
      _
    %p340 = scmp.le.s32.totalorder 1, %s14
    %p341 = scmp.lt.s32.totalorder %s14, 5
    %p342 = pnand %p340, %p341
    %p343 = pneg %p342
    // Predicated region
    $region49: #{tpu_custom_call.1} parent=5 // pred_check
      _
    $region50: #{tpu_custom_call.1} parent=5 // pred_check_branch
      %345 = sbr.rel (%p342) target = $region52
    $region51: #{tpu_custom_call.1} parent=5 // pred_region
      %s346 = ssub.s32 %s14, 1
      %s347 = smul.u32 2, %s23
      %p348 = scmp.lt.s32.totalorder %s347, 3
      %s349 = scalar_select %p348, %s347, 3
      %s350 = smul.addr %s349, 8
      %s351 = smul.addr %s350, 8
      %s352 = scalar_lea.vmem %s0, %s351
      %p353 = pneg %p52
      %p354 = pneg %p49
      %p355 = scmp.lt.s32.totalorder %s24, 1
      %s356 = scalar_select %p355, %s24, 1
      %s357 = smul.addr %s356, 8
      %s358 = scalar_lea.vmem %s1, %s357
      %p359 = pneg %p78
      %p360 = pneg %p75
      %p361 = scmp.lt.s32.totalorder %s24, 1
      %s362 = scalar_select %p361, %s24, 1
      %s363 = scalar_lea.vmem %s2, %s362
      %p364 = pneg %p104
      %p365 = pneg %p101
      %p366 = scmp.lt.s32.totalorder %s24, 1
      %s367 = scalar_select %p366, %s24, 1
      %s368 = scalar_lea.vmem %s3, %s367
      %p369 = pneg %p130
      %p370 = pneg %p127
      %p371 = scmp.lt.s32.totalorder %s24, 1
      %s372 = scalar_select %p371, %s24, 1
      %s373 = smul.addr %s372, 4
      %s374 = smul.addr %s373, 4
      %s375 = scalar_lea.vmem %s4, %s374
      %p376 = pneg %p156
      %p377 = pneg %p153
      %p378 = scmp.lt.s32.totalorder %s24, 1
      %s379 = scalar_select %p378, %s24, 1
      %s380 = smul.addr %s379, 4
      %s381 = smul.addr %s380, 4
      %s382 = scalar_lea.vmem %s5, %s381
      %p383 = pneg %p182
      %p384 = pneg %p179
      %p385 = scmp.lt.s32.totalorder %s24, 1
      %s386 = scalar_select %p385, %s24, 1
      %s387 = smul.addr %s386, 4
      %s388 = smul.addr %s387, 4
      %s389 = scalar_lea.vmem %s6, %s388
      %p390 = pneg %p208
      %p391 = pneg %p205
      %p392 = scmp.lt.s32.totalorder %s24, 1
      %s393 = scalar_select %p392, %s24, 1
      %s394 = smul.addr %s393, 8
      %s395 = smul.addr %s394, 4
      %s396 = scalar_lea.vmem %s7, %s395
      %p397 = pneg %p234
      %p398 = pneg %p231
      %p399 = pneg %p260
      %p400 = pneg %p257
      %s401 = smul.u32 2, %s23
      %p402 = scmp.lt.s32.totalorder %s401, 3
      %s403 = scalar_select %p402, %s401, 3
      %s404 = smul.addr %s403, 8
      %s405 = smul.addr %s404, 8
      %s406 = scalar_lea.vmem %s8, %s405
      %s407 = smul.u32 2, %s23
      %p408 = scmp.lt.s32.totalorder %s407, 3
      %s409 = scalar_select %p408, %s407, 3
      %s410 = smul.addr %s409, 8
      %s411 = smul.addr %s410, 8
      %s412 = scalar_lea.vmem %s0, %s411
      %s413 = smul.u32 2, %s23
      %p414 = scmp.lt.s32.totalorder %s24, 1
      %s415 = scalar_select %p414, %s24, 1
      %s416 = smul.addr %s415, 8
      %s417 = scalar_lea.vmem %s1, %s416
      %p418 = scmp.lt.s32.totalorder %s24, 1
      %s419 = scalar_select %p418, %s24, 1
      %s420 = scalar_lea.vmem %s2, %s419
      %p421 = scmp.lt.s32.totalorder %s24, 1
      %s422 = scalar_select %p421, %s24, 1
      %s423 = scalar_lea.vmem %s3, %s422
      %p424 = scmp.lt.s32.totalorder %s24, 1
      %s425 = scalar_select %p424, %s24, 1
      %s426 = smul.addr %s425, 4
      %s427 = smul.addr %s426, 4
      %s428 = scalar_lea.vmem %s4, %s427
      %p429 = scmp.lt.s32.totalorder %s24, 1
      %s430 = scalar_select %p429, %s24, 1
      %s431 = smul.addr %s430, 4
      %s432 = smul.addr %s431, 4
      %s433 = scalar_lea.vmem %s5, %s432
      %p434 = scmp.lt.s32.totalorder %s24, 1
      %s435 = scalar_select %p434, %s24, 1
      %s436 = smul.addr %s435, 4
      %s437 = smul.addr %s436, 4
      %s438 = scalar_lea.vmem %s6, %s437
      %p439 = scmp.lt.s32.totalorder %s24, 1
      %s440 = scalar_select %p439, %s24, 1
      %s441 = smul.addr %s440, 8
      %s442 = smul.addr %s441, 4
      %s443 = scalar_lea.vmem %s7, %s442
      %s444 = smul.u32 2, %s23
      %p445 = scmp.lt.s32.totalorder %s444, 3
      %s446 = scalar_select %p445, %s444, 3
      %s447 = smul.addr %s446, 8
      %s448 = smul.addr %s447, 8
      %s449 = scalar_lea.vmem %s8, %s448
      %s450 = smul.u32 2, %s23
      %p452 = scmp.eq.s32.totalorder %s24, 0
      // Predicated region
      $region53: #{tpu_custom_call.1} parent=51 // pred_check
        %p453 = pneg %p452
      $region54: #{tpu_custom_call.1} parent=51 // pred_check_branch
        %455 = sbr.rel (%p453) target = $region56
      $region55: #{tpu_custom_call.1} parent=51 // pred_region
        %v456 = vld [vmem:[%s412] sm:$0xff]
        %v457 = vld [vmem:[%s412 + $0x8] sm:$0xff]
        %v458 = vld [vmem:[%s412 + $0x10] sm:$0xff]
        %v459 = vld [vmem:[%s412 + $0x18] sm:$0xff]
        %v460 = vld [vmem:[%s412 + $0x20] sm:$0xff]
        %v461 = vld [vmem:[%s412 + $0x28] sm:$0xff]
        %v462 = vld [vmem:[%s412 + $0x30] sm:$0xff]
        %v463 = vld [vmem:[%s412 + $0x38] sm:$0xff]
        %v464 = vld [vmem:[%s412 + $0x40] sm:$0xff]
        %v465 = vld [vmem:[%s412 + $0x48] sm:$0xff]
        %v466 = vld [vmem:[%s412 + $0x50] sm:$0xff]
        %v467 = vld [vmem:[%s412 + $0x58] sm:$0xff]
        %v468 = vld [vmem:[%s412 + $0x60] sm:$0xff]
        %v469 = vld [vmem:[%s412 + $0x68] sm:$0xff]
        %v470 = vld [vmem:[%s412 + $0x70] sm:$0xff]
        %v471 = vld [vmem:[%s412 + $0x78] sm:$0xff]
        %vm472 = vcmask 261120
        %473 = vst.msk [vmem:[%s449] sm:$0xff] %vm472, %v456
        %474 = vst.msk [vmem:[%s449 + $0x8] sm:$0xff] %vm472, %v457
        %475 = vst.msk [vmem:[%s449 + $0x10] sm:$0xff] %vm472, %v458
        %476 = vst.msk [vmem:[%s449 + $0x18] sm:$0xff] %vm472, %v459
        %477 = vst.msk [vmem:[%s449 + $0x20] sm:$0xff] %vm472, %v460
        %478 = vst.msk [vmem:[%s449 + $0x28] sm:$0xff] %vm472, %v461
        %479 = vst.msk [vmem:[%s449 + $0x30] sm:$0xff] %vm472, %v462
        %480 = vst.msk [vmem:[%s449 + $0x38] sm:$0xff] %vm472, %v463
        %481 = vst.msk [vmem:[%s449 + $0x40] sm:$0xff] %vm472, %v464
        %482 = vst.msk [vmem:[%s449 + $0x48] sm:$0xff] %vm472, %v465
        %483 = vst.msk [vmem:[%s449 + $0x50] sm:$0xff] %vm472, %v466
        %484 = vst.msk [vmem:[%s449 + $0x58] sm:$0xff] %vm472, %v467
        %485 = vst.msk [vmem:[%s449 + $0x60] sm:$0xff] %vm472, %v468
        %486 = vst.msk [vmem:[%s449 + $0x68] sm:$0xff] %vm472, %v469
        %487 = vst.msk [vmem:[%s449 + $0x70] sm:$0xff] %vm472, %v470
        %488 = vst.msk [vmem:[%s449 + $0x78] sm:$0xff] %vm472, %v471
      $region56: #{tpu_custom_call.1} parent=51 // pred_fallthru
        _
      %v489 = vld [vmem:[%s449] sm:$0xff]
      %v490 = vld [vmem:[%s449 + $0x8] sm:$0xff]
      %v491 = vld [vmem:[%s449 + $0x10] sm:$0xff]
      %v492 = vld [vmem:[%s449 + $0x18] sm:$0xff]
      %v493 = vld [vmem:[%s449 + $0x20] sm:$0xff]
      %v494 = vld [vmem:[%s449 + $0x28] sm:$0xff]
      %v495 = vld [vmem:[%s449 + $0x30] sm:$0xff]
      %v496 = vld [vmem:[%s449 + $0x38] sm:$0xff]
      %v497 = vld [vmem:[%s449 + $0x40] sm:$0xff]
      %v498 = vld [vmem:[%s449 + $0x48] sm:$0xff]
      %v499 = vld [vmem:[%s449 + $0x50] sm:$0xff]
      %v500 = vld [vmem:[%s449 + $0x58] sm:$0xff]
      %v501 = vld [vmem:[%s449 + $0x60] sm:$0xff]
      %v502 = vld [vmem:[%s449 + $0x68] sm:$0xff]
      %v503 = vld [vmem:[%s449 + $0x70] sm:$0xff]
      %v504 = vld [vmem:[%s449 + $0x78] sm:$0xff]
      %v505 = vld [vmem:[%s417] sm:$0x3f]
      %vm506 = vcmask 261120
      %v507 = vsel %vm506, %v489, 0.0
      %508 = vadd.xlane.f32.xlu0 %v507
      %v509 = vpop.xlane.xlu0 %508
      %v510 = vsel %vm506, %v490, 0.0
      %511 = vadd.xlane.f32.xlu0 %v510
      %v512 = vpop.xlane.xlu0 %511
      %v513 = vsel %vm506, %v491, 0.0
      %514 = vadd.xlane.f32.xlu0 %v513
      %v515 = vpop.xlane.xlu0 %514
      %v516 = vsel %vm506, %v492, 0.0
      %517 = vadd.xlane.f32.xlu0 %v516
      %v518 = vpop.xlane.xlu0 %517
      %v519 = vsel %vm506, %v493, 0.0
      %520 = vadd.xlane.f32.xlu0 %v519
      %v521 = vpop.xlane.xlu0 %520
      %v522 = vsel %vm506, %v494, 0.0
      %523 = vadd.xlane.f32.xlu0 %v522
      %v524 = vpop.xlane.xlu0 %523
      %v525 = vsel %vm506, %v495, 0.0
      %526 = vadd.xlane.f32.xlu0 %v525
      %v527 = vpop.xlane.xlu0 %526
      %v528 = vsel %vm506, %v496, 0.0
      %529 = vadd.xlane.f32.xlu0 %v528
      %v530 = vpop.xlane.xlu0 %529
      %v531 = vsel %vm506, %v497, 0.0
      %532 = vadd.xlane.f32.xlu0 %v531
      %v533 = vpop.xlane.xlu0 %532
      %v534 = vsel %vm506, %v498, 0.0
      %535 = vadd.xlane.f32.xlu0 %v534
      %v536 = vpop.xlane.xlu0 %535
      %v537 = vsel %vm506, %v499, 0.0
      %538 = vadd.xlane.f32.xlu0 %v537
      %v539 = vpop.xlane.xlu0 %538
      %v540 = vsel %vm506, %v500, 0.0
      %541 = vadd.xlane.f32.xlu0 %v540
      %v542 = vpop.xlane.xlu0 %541
      %v543 = vsel %vm506, %v501, 0.0
      %544 = vadd.xlane.f32.xlu0 %v543
      %v545 = vpop.xlane.xlu0 %544
      %v546 = vsel %vm506, %v502, 0.0
      %547 = vadd.xlane.f32.xlu0 %v546
      %v548 = vpop.xlane.xlu0 %547
      %v549 = vsel %vm506, %v503, 0.0
      %550 = vadd.xlane.f32.xlu0 %v549
      %v551 = vpop.xlane.xlu0 %550
      %v552 = vsel %vm506, %v504, 0.0
      %553 = vadd.xlane.f32.xlu0 %v552
      %v554 = vpop.xlane.xlu0 %553
      %v555 = vrcp.pop 32.0
      %v556 = vmul.f32 %v509, %v555
      %v557 = vmul.f32 %v512, %v555
      %v558 = vmul.f32 %v515, %v555
      %v559 = vmul.f32 %v518, %v555
      %v560 = vmul.f32 %v521, %v555
      %v561 = vmul.f32 %v524, %v555
      %v562 = vmul.f32 %v527, %v555
      %v563 = vmul.f32 %v530, %v555
      %v564 = vmul.f32 %v533, %v555
      %v565 = vmul.f32 %v536, %v555
      %v566 = vmul.f32 %v539, %v555
      %v567 = vmul.f32 %v542, %v555
      %v568 = vmul.f32 %v545, %v555
      %v569 = vmul.f32 %v548, %v555
      %v570 = vmul.f32 %v551, %v555
      %v571 = vmul.f32 %v554, %v555
      %v572 = vsub.f32 %v489, %v556
      %v573 = vsub.f32 %v490, %v557
      %v574 = vsub.f32 %v491, %v558
      %v575 = vsub.f32 %v492, %v559
      %v576 = vsub.f32 %v493, %v560
      %v577 = vsub.f32 %v494, %v561
      %v578 = vsub.f32 %v495, %v562
      %v579 = vsub.f32 %v496, %v563
      %v580 = vsub.f32 %v497, %v564
      %v581 = vsub.f32 %v498, %v565
      %v582 = vsub.f32 %v499, %v566
      %v583 = vsub.f32 %v500, %v567
      %v584 = vsub.f32 %v501, %v568
      %v585 = vsub.f32 %v502, %v569
      %v586 = vsub.f32 %v503, %v570
      %v587 = vsub.f32 %v504, %v571
      %v588 = vmul.f32 %v572, %v572
      %v589 = vmul.f32 %v573, %v573
      %v590 = vmul.f32 %v574, %v574
      %v591 = vmul.f32 %v575, %v575
      %v592 = vmul.f32 %v576, %v576
      %v593 = vmul.f32 %v577, %v577
      %v594 = vmul.f32 %v578, %v578
      %v595 = vmul.f32 %v579, %v579
      %v596 = vmul.f32 %v580, %v580
      %v597 = vmul.f32 %v581, %v581
      %v598 = vmul.f32 %v582, %v582
      %v599 = vmul.f32 %v583, %v583
      %v600 = vmul.f32 %v584, %v584
      %v601 = vmul.f32 %v585, %v585
      %v602 = vmul.f32 %v586, %v586
      %v603 = vmul.f32 %v587, %v587
      %v604 = vsel %vm506, %v588, 0.0
      %605 = vadd.xlane.f32.xlu0 %v604
      %v606 = vpop.xlane.xlu0 %605
      %v607 = vsel %vm506, %v589, 0.0
      %608 = vadd.xlane.f32.xlu0 %v607
      %v609 = vpop.xlane.xlu0 %608
      %v610 = vsel %vm506, %v590, 0.0
      %611 = vadd.xlane.f32.xlu0 %v610
      %v612 = vpop.xlane.xlu0 %611
      %v613 = vsel %vm506, %v591, 0.0
      %614 = vadd.xlane.f32.xlu0 %v613
      %v615 = vpop.xlane.xlu0 %614
      %v616 = vsel %vm506, %v592, 0.0
      %617 = vadd.xlane.f32.xlu0 %v616
      %v618 = vpop.xlane.xlu0 %617
      %v619 = vsel %vm506, %v593, 0.0
      %620 = vadd.xlane.f32.xlu0 %v619
      %v621 = vpop.xlane.xlu0 %620
      %v622 = vsel %vm506, %v594, 0.0
      %623 = vadd.xlane.f32.xlu0 %v622
      %v624 = vpop.xlane.xlu0 %623
      %v625 = vsel %vm506, %v595, 0.0
      %626 = vadd.xlane.f32.xlu0 %v625
      %v627 = vpop.xlane.xlu0 %626
      %v628 = vsel %vm506, %v596, 0.0
      %629 = vadd.xlane.f32.xlu0 %v628
      %v630 = vpop.xlane.xlu0 %629
      %v631 = vsel %vm506, %v597, 0.0
      %632 = vadd.xlane.f32.xlu0 %v631
      %v633 = vpop.xlane.xlu0 %632
      %v634 = vsel %vm506, %v598, 0.0
      %635 = vadd.xlane.f32.xlu0 %v634
      %v636 = vpop.xlane.xlu0 %635
      %v637 = vsel %vm506, %v599, 0.0
      %638 = vadd.xlane.f32.xlu0 %v637
      %v639 = vpop.xlane.xlu0 %638
      %v640 = vsel %vm506, %v600, 0.0
      %641 = vadd.xlane.f32.xlu0 %v640
      %v642 = vpop.xlane.xlu0 %641
      %v643 = vsel %vm506, %v601, 0.0
      %644 = vadd.xlane.f32.xlu0 %v643
      %v645 = vpop.xlane.xlu0 %644
      %v646 = vsel %vm506, %v602, 0.0
      %647 = vadd.xlane.f32.xlu0 %v646
      %v648 = vpop.xlane.xlu0 %647
      %v649 = vsel %vm506, %v603, 0.0
      %650 = vadd.xlane.f32.xlu0 %v649
      %v651 = vpop.xlane.xlu0 %650
      %v652 = vmul.f32 %v606, %v555
      %v653 = vmul.f32 %v609, %v555
      %v654 = vmul.f32 %v612, %v555
      %v655 = vmul.f32 %v615, %v555
      %v656 = vmul.f32 %v618, %v555
      %v657 = vmul.f32 %v621, %v555
      %v658 = vmul.f32 %v624, %v555
      %v659 = vmul.f32 %v627, %v555
      %v660 = vmul.f32 %v630, %v555
      %v661 = vmul.f32 %v633, %v555
      %v662 = vmul.f32 %v636, %v555
      %v663 = vmul.f32 %v639, %v555
      %v664 = vmul.f32 %v642, %v555
      %v665 = vmul.f32 %v645, %v555
      %v666 = vmul.f32 %v648, %v555
      %v667 = vmul.f32 %v651, %v555
      %v668 = vadd.f32 %v652, 1e-05
      %v669 = vadd.f32 %v653, 1e-05
      %v670 = vadd.f32 %v654, 1e-05
      %v671 = vadd.f32 %v655, 1e-05
      %v672 = vadd.f32 %v656, 1e-05
      %v673 = vadd.f32 %v657, 1e-05
      %v674 = vadd.f32 %v658, 1e-05
      %v675 = vadd.f32 %v659, 1e-05
      %v676 = vadd.f32 %v660, 1e-05
      %v677 = vadd.f32 %v661, 1e-05
      %v678 = vadd.f32 %v662, 1e-05
      %v679 = vadd.f32 %v663, 1e-05
      %v680 = vadd.f32 %v664, 1e-05
      %v681 = vadd.f32 %v665, 1e-05
      %v682 = vadd.f32 %v666, 1e-05
      %v683 = vadd.f32 %v667, 1e-05
      %v684 = vrsqrt.pop %v668
      %v685 = vrsqrt.pop %v669
      %v686 = vrsqrt.pop %v670
      %v687 = vrsqrt.pop %v671
      %v688 = vrsqrt.pop %v672
      %v689 = vrsqrt.pop %v673
      %v690 = vrsqrt.pop %v674
      %v691 = vrsqrt.pop %v675
      %v692 = vrsqrt.pop %v676
      %v693 = vrsqrt.pop %v677
      %v694 = vrsqrt.pop %v678
      %v695 = vrsqrt.pop %v679
      %v696 = vrsqrt.pop %v680
      %v697 = vrsqrt.pop %v681
      %v698 = vrsqrt.pop %v682
      %v699 = vrsqrt.pop %v683
      %v700 = vmul.f32 %v572, %v684
      %v701 = vmul.f32 %v573, %v685
      %v702 = vmul.f32 %v574, %v686
      %v703 = vmul.f32 %v575, %v687
      %v704 = vmul.f32 %v576, %v688
      %v705 = vmul.f32 %v577, %v689
      %v706 = vmul.f32 %v578, %v690
      %v707 = vmul.f32 %v579, %v691
      %v708 = vmul.f32 %v580, %v692
      %v709 = vmul.f32 %v581, %v693
      %v710 = vmul.f32 %v582, %v694
      %v711 = vmul.f32 %v583, %v695
      %v712 = vmul.f32 %v584, %v696
      %v713 = vmul.f32 %v585, %v697
      %v714 = vmul.f32 %v586, %v698
      %v715 = vmul.f32 %v587, %v699
      %v716 = vlaneseq
      %v717 = vshrl.u32 %v716, 7
      %v718 = vsub.s32 0, %v717
      %v719 = vrot.slane %v505, %v718
      %v720 = vmul.f32 %v700, %v719
      %v721 = vmul.f32 %v701, %v719
      %v722 = vmul.f32 %v702, %v719
      %v723 = vmul.f32 %v703, %v719
      %v724 = vmul.f32 %v704, %v719
      %v725 = vmul.f32 %v705, %v719
      %v726 = vmul.f32 %v706, %v719
      %v727 = vmul.f32 %v707, %v719
      %v728 = vmul.f32 %v708, %v719
      %v729 = vmul.f32 %v709, %v719
      %v730 = vmul.f32 %v710, %v719
      %v731 = vmul.f32 %v711, %v719
      %v732 = vmul.f32 %v712, %v719
      %v733 = vmul.f32 %v713, %v719
      %v734 = vmul.f32 %v714, %v719
      %v735 = vmul.f32 %v715, %v719
      %v736 = vlaneseq
      %v737 = vshrl.u32 %v736, 7
      %v738 = vsub.s32 1, %v737
      %v739 = vrot.slane %v505, %v738
      %v740 = vadd.f32 %v720, %v739
      %v741 = vadd.f32 %v721, %v739
      %v742 = vadd.f32 %v722, %v739
      %v743 = vadd.f32 %v723, %v739
      %v744 = vadd.f32 %v724, %v739
      %v745 = vadd.f32 %v725, %v739
      %v746 = vadd.f32 %v726, %v739
      %v747 = vadd.f32 %v727, %v739
      %v748 = vadd.f32 %v728, %v739
      %v749 = vadd.f32 %v729, %v739
      %v750 = vadd.f32 %v730, %v739
      %v751 = vadd.f32 %v731, %v739
      %v752 = vadd.f32 %v732, %v739
      %v753 = vadd.f32 %v733, %v739
      %v754 = vadd.f32 %v734, %v739
      %v755 = vadd.f32 %v735, %v739
      %v756 = vpack.c.bf16 %v741, %v740
      %v757 = vpack.c.bf16 %v743, %v742
      %v758 = vpack.c.bf16 %v745, %v744
      %v759 = vpack.c.bf16 %v747, %v746
      %v760 = vpack.c.bf16 %v749, %v748
      %v761 = vpack.c.bf16 %v751, %v750
      %v762 = vpack.c.bf16 %v753, %v752
      %v763 = vpack.c.bf16 %v755, %v754
      %v764 = vld [vmem:[%s428] sm:$0xf]
      %v765 = vld [vmem:[%s428 + $0x4] sm:$0xf]
      %v766 = vld [vmem:[%s428 + $0x8] sm:$0xf]
      %v767 = vld [vmem:[%s428 + $0xc] sm:$0xf]
      %v768 = vld [vmem:[%s420] sm:$0x1]
      %v770 = vlaneseq
      %v771 = vshrl.u32 %v770, 7
      %v772 = vsub.s32 0, %v771
      %v773 = vrot.slane %v768, %v772
      %v779 = vunpack.c.l.b16 %v764
      %v780 = vunpack.c.l.b16 %v765
      %v781 = vunpack.c.l.b16 %v766
      %v782 = vunpack.c.l.b16 %v767
      %v783 = vpack.c.b16 %v780, %v779
      %v784 = vpack.c.b16 %v782, %v781
      %v788 = vsel %vm506, %v756, 0
      %v791 = vsel %vm506, %v757, 0
      %v794 = vsel %vm506, %v758, 0
      %v797 = vsel %vm506, %v759, 0
      %v800 = vsel %vm506, %v760, 0
      %v803 = vsel %vm506, %v761, 0
      %v806 = vsel %vm506, %v762, 0
      %v809 = vsel %vm506, %v763, 0
      %811 = vmatprep.subr.bf16.mxu0 0
      %812 = vmatpush1.bf16.msra.mxu0 0
      %813 = vmatprep.subr.bf16.mxu0 0
      %814 = vmatpush1.bf16.msra.mxu0 0
      %815 = vmatprep.subr.bf16.mxu0 0
      %816 = vmatpush1.bf16.msra.mxu0 0
      %817 = vmatprep.subr.bf16.mxu0 0
      %818 = vmatpush1.bf16.msra.mxu0 0
      %819 = vmatprep.subr.bf16.mxu0 0
      %820 = vmatpush1.bf16.msra.mxu0 0
      %821 = vmatprep.subr.bf16.mxu0 0
      %822 = vmatpush1.bf16.msra.mxu0 0
      %823 = vmatprep.subr.bf16.mxu0 0
      %824 = vmatpush1.bf16.msra.mxu0 %v784
      %825 = vmatprep.subr.bf16.mxu0 0
      %826 = vmatpush1.bf16.msra.mxu0 %v783
      %827 = vmatprep.subr.bf16.mxu0 0
      %828 = vmatpush2.bf16.msra.mxu0 0
      %829 = vmatprep.subr.bf16.mxu0 0
      %830 = vmatpush2.bf16.msra.mxu0 0
      %831 = vmatprep.subr.bf16.mxu0 0
      %832 = vmatpush2.bf16.msra.mxu0 0
      %833 = vmatprep.subr.bf16.mxu0 0
      %834 = vmatpush2.bf16.msra.mxu0 0
      %835 = vmatprep.subr.bf16.mxu0 0
      %836 = vmatpush2.bf16.msra.mxu0 0
      %837 = vmatprep.subr.bf16.mxu0 0
      %838 = vmatpush2.bf16.msra.mxu0 0
      %839 = vmatprep.subr.bf16.mxu0 0
      %840 = vmatpush2.bf16.msra.mxu0 0
      %841 = vmatprep.subr.bf16.mxu0 0
      %842 = vmatpush2.bf16.msra.mxu0 0
      %843 = vmatprep.mubr.bf16.mxu0 0
      %844 = vmatmul.mubr.bf16.gmra.mxu0 %v788
      %v845 = vpop.f32.mrf.mxu0
      %v846 = vadd.f32 %v773, %v845
      %v847 = vpop.f32.mrf.mxu0
      %v848 = vpop.f32.mrf.mxu0
      %v849 = vadd.f32 %v773, %v848
      %v850 = vpop.f32.mrf.mxu0
      %851 = vmatprep.mubr.bf16.mxu0 0
      %852 = vmatmul.mubr.bf16.gmra.mxu0 %v791
      %v853 = vpop.f32.mrf.mxu0
      %v854 = vadd.f32 %v773, %v853
      %v855 = vpop.f32.mrf.mxu0
      %v856 = vpop.f32.mrf.mxu0
      %v857 = vadd.f32 %v773, %v856
      %v858 = vpop.f32.mrf.mxu0
      %859 = vmatprep.mubr.bf16.mxu0 0
      %860 = vmatmul.mubr.bf16.gmra.mxu0 %v794
      %v861 = vpop.f32.mrf.mxu0
      %v862 = vadd.f32 %v773, %v861
      %v863 = vpop.f32.mrf.mxu0
      %v864 = vpop.f32.mrf.mxu0
      %v865 = vadd.f32 %v773, %v864
      %v866 = vpop.f32.mrf.mxu0
      %867 = vmatprep.mubr.bf16.mxu0 0
      %868 = vmatmul.mubr.bf16.gmra.mxu0 %v797
      %v869 = vpop.f32.mrf.mxu0
      %v870 = vadd.f32 %v773, %v869
      %v871 = vpop.f32.mrf.mxu0
      %v872 = vpop.f32.mrf.mxu0
      %v873 = vadd.f32 %v773, %v872
      %v874 = vpop.f32.mrf.mxu0
      %875 = vmatprep.mubr.bf16.mxu0 0
      %876 = vmatmul.mubr.bf16.gmra.mxu0 %v800
      %v877 = vpop.f32.mrf.mxu0
      %v878 = vadd.f32 %v773, %v877
      %v879 = vpop.f32.mrf.mxu0
      %v880 = vpop.f32.mrf.mxu0
      %v881 = vadd.f32 %v773, %v880
      %v882 = vpop.f32.mrf.mxu0
      %883 = vmatprep.mubr.bf16.mxu0 0
      %884 = vmatmul.mubr.bf16.gmra.mxu0 %v803
      %v885 = vpop.f32.mrf.mxu0
      %v886 = vadd.f32 %v773, %v885
      %v887 = vpop.f32.mrf.mxu0
      %v888 = vpop.f32.mrf.mxu0
      %v889 = vadd.f32 %v773, %v888
      %v890 = vpop.f32.mrf.mxu0
      %891 = vmatprep.mubr.bf16.mxu0 0
      %892 = vmatmul.mubr.bf16.gmra.mxu0 %v806
      %v893 = vpop.f32.mrf.mxu0
      %v894 = vadd.f32 %v773, %v893
      %v895 = vpop.f32.mrf.mxu0
      %v896 = vpop.f32.mrf.mxu0
      %v897 = vadd.f32 %v773, %v896
      %v898 = vpop.f32.mrf.mxu0
      %899 = vmatprep.mubr.bf16.mxu0 0
      %900 = vmatmul.mubr.bf16.gmra.mxu0 %v809
      %v901 = vpop.f32.mrf.mxu0
      %v902 = vadd.f32 %v773, %v901
      %v903 = vpop.f32.mrf.mxu0
      %v904 = vpop.f32.mrf.mxu0
      %v905 = vadd.f32 %v773, %v904
      %v906 = vpop.f32.mrf.mxu0
      %907 = vdwg.mxu0
      %v908 = vpack.c.bf16 %v849, %v846
      %v909 = vpack.c.bf16 %v857, %v854
      %v910 = vpack.c.bf16 %v865, %v862
      %v911 = vpack.c.bf16 %v873, %v870
      %v912 = vpack.c.bf16 %v881, %v878
      %v913 = vpack.c.bf16 %v889, %v886
      %v914 = vpack.c.bf16 %v897, %v894
      %v915 = vpack.c.bf16 %v905, %v902
      %920 = vrot.lane.b32.xlu0 %v908, 96
      %v921 = vpop.permute.xlu0 %920
      %922 = vrot.lane.b32.xlu0 %v909, 96
      %v923 = vpop.permute.xlu0 %922
      %924 = vrot.lane.b32.xlu0 %v910, 96
      %v925 = vpop.permute.xlu0 %924
      %926 = vrot.lane.b32.xlu0 %v911, 96
      %v927 = vpop.permute.xlu0 %926
      %vm928 = vcmask 64512
      %v930 = vsel %vm928, %v908, 0
      %v933 = vsel %vm928, %v909, 0
      %v936 = vsel %vm928, %v910, 0
      %v939 = vsel %vm928, %v911, 0
      %v942 = vsel %vm928, %v921, 0
      %v945 = vsel %vm928, %v923, 0
      %v948 = vsel %vm928, %v925, 0
      %v951 = vsel %vm928, %v927, 0
      %953 = vmatprep.subr.bf16.mxu0 0
      %954 = vmatpush1.bf16.xpose.msra.mxu0 0
      %955 = vmatprep.subr.bf16.mxu0 0
      %956 = vmatpush1.bf16.xpose.msra.mxu0 0
      %957 = vmatprep.subr.bf16.mxu0 0
      %958 = vmatpush1.bf16.xpose.msra.mxu0 0
      %959 = vmatprep.subr.bf16.mxu0 0
      %960 = vmatpush1.bf16.xpose.msra.mxu0 0
      %961 = vmatprep.subr.bf16.mxu0 0
      %962 = vmatpush1.bf16.xpose.msra.mxu0 %v951
      %963 = vmatprep.subr.bf16.mxu0 0
      %964 = vmatpush1.bf16.xpose.msra.mxu0 %v948
      %965 = vmatprep.subr.bf16.mxu0 0
      %966 = vmatpush1.bf16.xpose.msra.mxu0 %v945
      %967 = vmatprep.subr.bf16.mxu0 0
      %968 = vmatpush1.bf16.xpose.msra.mxu0 %v942
      %969 = vmatprep.subr.bf16.mxu0 0
      %970 = vmatpush2.bf16.xpose.msra.mxu0 0
      %971 = vmatprep.subr.bf16.mxu0 0
      %972 = vmatpush2.bf16.xpose.msra.mxu0 0
      %973 = vmatprep.subr.bf16.mxu0 0
      %974 = vmatpush2.bf16.xpose.msra.mxu0 0
      %975 = vmatprep.subr.bf16.mxu0 0
      %976 = vmatpush2.bf16.xpose.msra.mxu0 0
      %977 = vmatprep.subr.bf16.mxu0 0
      %978 = vmatpush2.bf16.xpose.msra.mxu0 0
      %979 = vmatprep.subr.bf16.mxu0 0
      %980 = vmatpush2.bf16.xpose.msra.mxu0 0
      %981 = vmatprep.subr.bf16.mxu0 0
      %982 = vmatpush2.bf16.xpose.msra.mxu0 0
      %983 = vmatprep.subr.bf16.mxu0 0
      %984 = vmatpush2.bf16.xpose.msra.mxu0 0
      %985 = vmatprep.mubr.bf16.mxu0 0
      %986 = vmatmul.mubr.bf16.gmra.mxu0 %v930
      %v987 = vpop.f32.mrf.mxu0
      %v988 = vadd.f32 0.0, %v987
      %v989 = vpop.f32.mrf.mxu0
      %v990 = vpop.f32.mrf.mxu0
      %v991 = vadd.f32 0.0, %v990
      %v992 = vpop.f32.mrf.mxu0
      %993 = vmatprep.mubr.bf16.mxu0 0
      %994 = vmatmul.mubr.bf16.gmra.mxu0 %v933
      %v995 = vpop.f32.mrf.mxu0
      %v996 = vadd.f32 0.0, %v995
      %v997 = vpop.f32.mrf.mxu0
      %v998 = vpop.f32.mrf.mxu0
      %v999 = vadd.f32 0.0, %v998
      %v1000 = vpop.f32.mrf.mxu0
      %1001 = vmatprep.mubr.bf16.mxu0 0
      %1002 = vmatmul.mubr.bf16.gmra.mxu0 %v936
      %v1003 = vpop.f32.mrf.mxu0
      %v1004 = vadd.f32 0.0, %v1003
      %v1005 = vpop.f32.mrf.mxu0
      %v1006 = vpop.f32.mrf.mxu0
      %v1007 = vadd.f32 0.0, %v1006
      %v1008 = vpop.f32.mrf.mxu0
      %1009 = vmatprep.mubr.bf16.mxu0 0
      %1010 = vmatmul.mubr.bf16.gmra.mxu0 %v939
      %v1011 = vpop.f32.mrf.mxu0
      %v1012 = vadd.f32 0.0, %v1011
      %v1013 = vpop.f32.mrf.mxu0
      %v1014 = vpop.f32.mrf.mxu0
      %v1015 = vadd.f32 0.0, %v1014
      %v1016 = vpop.f32.mrf.mxu0
      %1017 = vdwg.mxu0
      %1022 = vrot.lane.b32.xlu0 %v912, 96
      %v1023 = vpop.permute.xlu0 %1022
      %1024 = vrot.lane.b32.xlu0 %v913, 96
      %v1025 = vpop.permute.xlu0 %1024
      %1026 = vrot.lane.b32.xlu0 %v914, 96
      %v1027 = vpop.permute.xlu0 %1026
      %1028 = vrot.lane.b32.xlu0 %v915, 96
      %v1029 = vpop.permute.xlu0 %1028
      %v1031 = vsel %vm928, %v912, 0
      %v1034 = vsel %vm928, %v913, 0
      %v1037 = vsel %vm928, %v914, 0
      %v1040 = vsel %vm928, %v915, 0
      %v1043 = vsel %vm928, %v1023, 0
      %v1046 = vsel %vm928, %v1025, 0
      %v1049 = vsel %vm928, %v1027, 0
      %v1052 = vsel %vm928, %v1029, 0
      %1054 = vmatprep.subr.bf16.mxu0 0
      %1055 = vmatpush1.bf16.xpose.msra.mxu0 0
      %1056 = vmatprep.subr.bf16.mxu0 0
      %1057 = vmatpush1.bf16.xpose.msra.mxu0 0
      %1058 = vmatprep.subr.bf16.mxu0 0
      %1059 = vmatpush1.bf16.xpose.msra.mxu0 0
      %1060 = vmatprep.subr.bf16.mxu0 0
      %1061 = vmatpush1.bf16.xpose.msra.mxu0 0
      %1062 = vmatprep.subr.bf16.mxu0 0
      %1063 = vmatpush1.bf16.xpose.msra.mxu0 %v1052
      %1064 = vmatprep.subr.bf16.mxu0 0
      %1065 = vmatpush1.bf16.xpose.msra.mxu0 %v1049
      %1066 = vmatprep.subr.bf16.mxu0 0
      %1067 = vmatpush1.bf16.xpose.msra.mxu0 %v1046
      %1068 = vmatprep.subr.bf16.mxu0 0
      %1069 = vmatpush1.bf16.xpose.msra.mxu0 %v1043
      %1070 = vmatprep.subr.bf16.mxu0 0
      %1071 = vmatpush2.bf16.xpose.msra.mxu0 0
      %1072 = vmatprep.subr.bf16.mxu0 0
      %1073 = vmatpush2.bf16.xpose.msra.mxu0 0
      %1074 = vmatprep.subr.bf16.mxu0 0
      %1075 = vmatpush2.bf16.xpose.msra.mxu0 0
      %1076 = vmatprep.subr.bf16.mxu0 0
      %1077 = vmatpush2.bf16.xpose.msra.mxu0 0
      %1078 = vmatprep.subr.bf16.mxu0 0
      %1079 = vmatpush2.bf16.xpose.msra.mxu0 0
      %1080 = vmatprep.subr.bf16.mxu0 0
      %1081 = vmatpush2.bf16.xpose.msra.mxu0 0
      %1082 = vmatprep.subr.bf16.mxu0 0
      %1083 = vmatpush2.bf16.xpose.msra.mxu0 0
      %1084 = vmatprep.subr.bf16.mxu0 0
      %1085 = vmatpush2.bf16.xpose.msra.mxu0 0
      %1086 = vmatprep.mubr.bf16.mxu0 0
      %1087 = vmatmul.mubr.bf16.gmra.mxu0 %v1031
      %v1088 = vpop.f32.mrf.mxu0
      %v1089 = vadd.f32 0.0, %v1088
      %v1090 = vpop.f32.mrf.mxu0
      %v1091 = vpop.f32.mrf.mxu0
      %v1092 = vadd.f32 0.0, %v1091
      %v1093 = vpop.f32.mrf.mxu0
      %1094 = vmatprep.mubr.bf16.mxu0 0
      %1095 = vmatmul.mubr.bf16.gmra.mxu0 %v1034
      %v1096 = vpop.f32.mrf.mxu0
      %v1097 = vadd.f32 0.0, %v1096
      %v1098 = vpop.f32.mrf.mxu0
      %v1099 = vpop.f32.mrf.mxu0
      %v1100 = vadd.f32 0.0, %v1099
      %v1101 = vpop.f32.mrf.mxu0
      %1102 = vmatprep.mubr.bf16.mxu0 0
      %1103 = vmatmul.mubr.bf16.gmra.mxu0 %v1037
      %v1104 = vpop.f32.mrf.mxu0
      %v1105 = vadd.f32 0.0, %v1104
      %v1106 = vpop.f32.mrf.mxu0
      %v1107 = vpop.f32.mrf.mxu0
      %v1108 = vadd.f32 0.0, %v1107
      %v1109 = vpop.f32.mrf.mxu0
      %1110 = vmatprep.mubr.bf16.mxu0 0
      %1111 = vmatmul.mubr.bf16.gmra.mxu0 %v1040
      %v1112 = vpop.f32.mrf.mxu0
      %v1113 = vadd.f32 0.0, %v1112
      %v1114 = vpop.f32.mrf.mxu0
      %v1115 = vpop.f32.mrf.mxu0
      %v1116 = vadd.f32 0.0, %v1115
      %v1117 = vpop.f32.mrf.mxu0
      %1118 = vdwg.mxu0
      %vm1119 = vcmask 523264
      %v1120 = vsel %vm1119, %v988, -inf
      %1121 = vmax.xlane.f32.xlu0 %v1120
      %v1122 = vpop.xlane.xlu0 %1121
      %v1123 = vsel %vm1119, %v991, -inf
      %1124 = vmax.xlane.f32.xlu0 %v1123
      %v1125 = vpop.xlane.xlu0 %1124
      %v1126 = vsel %vm1119, %v996, -inf
      %1127 = vmax.xlane.f32.xlu0 %v1126
      %v1128 = vpop.xlane.xlu0 %1127
      %v1129 = vsel %vm1119, %v999, -inf
      %1130 = vmax.xlane.f32.xlu0 %v1129
      %v1131 = vpop.xlane.xlu0 %1130
      %v1132 = vsel %vm1119, %v1004, -inf
      %1133 = vmax.xlane.f32.xlu0 %v1132
      %v1134 = vpop.xlane.xlu0 %1133
      %v1135 = vsel %vm1119, %v1007, -inf
      %1136 = vmax.xlane.f32.xlu0 %v1135
      %v1137 = vpop.xlane.xlu0 %1136
      %v1138 = vsel %vm1119, %v1012, -inf
      %1139 = vmax.xlane.f32.xlu0 %v1138
      %v1140 = vpop.xlane.xlu0 %1139
      %v1141 = vsel %vm1119, %v1015, -inf
      %1142 = vmax.xlane.f32.xlu0 %v1141
      %v1143 = vpop.xlane.xlu0 %1142
      %v1144 = vsel %vm1119, %v1089, -inf
      %1145 = vmax.xlane.f32.xlu0 %v1144
      %v1146 = vpop.xlane.xlu0 %1145
      %v1147 = vsel %vm1119, %v1092, -inf
      %1148 = vmax.xlane.f32.xlu0 %v1147
      %v1149 = vpop.xlane.xlu0 %1148
      %v1150 = vsel %vm1119, %v1097, -inf
      %1151 = vmax.xlane.f32.xlu0 %v1150
      %v1152 = vpop.xlane.xlu0 %1151
      %v1153 = vsel %vm1119, %v1100, -inf
      %1154 = vmax.xlane.f32.xlu0 %v1153
      %v1155 = vpop.xlane.xlu0 %1154
      %v1156 = vsel %vm1119, %v1105, -inf
      %1157 = vmax.xlane.f32.xlu0 %v1156
      %v1158 = vpop.xlane.xlu0 %1157
      %v1159 = vsel %vm1119, %v1108, -inf
      %1160 = vmax.xlane.f32.xlu0 %v1159
      %v1161 = vpop.xlane.xlu0 %1160
      %v1162 = vsel %vm1119, %v1113, -inf
      %1163 = vmax.xlane.f32.xlu0 %v1162
      %v1164 = vpop.xlane.xlu0 %1163
      %v1165 = vsel %vm1119, %v1116, -inf
      %1166 = vmax.xlane.f32.xlu0 %v1165
      %v1167 = vpop.xlane.xlu0 %1166
      %v1168 = vsub.f32 %v988, %v1122
      %v1169 = vsub.f32 %v991, %v1125
      %v1170 = vsub.f32 %v996, %v1128
      %v1171 = vsub.f32 %v999, %v1131
      %v1172 = vsub.f32 %v1004, %v1134
      %v1173 = vsub.f32 %v1007, %v1137
      %v1174 = vsub.f32 %v1012, %v1140
      %v1175 = vsub.f32 %v1015, %v1143
      %v1176 = vsub.f32 %v1089, %v1146
      %v1177 = vsub.f32 %v1092, %v1149
      %v1178 = vsub.f32 %v1097, %v1152
      %v1179 = vsub.f32 %v1100, %v1155
      %v1180 = vsub.f32 %v1105, %v1158
      %v1181 = vsub.f32 %v1108, %v1161
      %v1182 = vsub.f32 %v1113, %v1164
      %v1183 = vsub.f32 %v1116, %v1167
      %v1184 = vmul.f32 %v1168, 1.442695
      %v1185 = vpow.pop %v1184
      %v1186 = vmul.f32 %v1169, 1.442695
      %v1187 = vpow.pop %v1186
      %v1188 = vmul.f32 %v1170, 1.442695
      %v1189 = vpow.pop %v1188
      %v1190 = vmul.f32 %v1171, 1.442695
      %v1191 = vpow.pop %v1190
      %v1192 = vmul.f32 %v1172, 1.442695
      %v1193 = vpow.pop %v1192
      %v1194 = vmul.f32 %v1173, 1.442695
      %v1195 = vpow.pop %v1194
      %v1196 = vmul.f32 %v1174, 1.442695
      %v1197 = vpow.pop %v1196
      %v1198 = vmul.f32 %v1175, 1.442695
      %v1199 = vpow.pop %v1198
      %v1200 = vmul.f32 %v1176, 1.442695
      %v1201 = vpow.pop %v1200
      %v1202 = vmul.f32 %v1177, 1.442695
      %v1203 = vpow.pop %v1202
      %v1204 = vmul.f32 %v1178, 1.442695
      %v1205 = vpow.pop %v1204
      %v1206 = vmul.f32 %v1179, 1.442695
      %v1207 = vpow.pop %v1206
      %v1208 = vmul.f32 %v1180, 1.442695
      %v1209 = vpow.pop %v1208
      %v1210 = vmul.f32 %v1181, 1.442695
      %v1211 = vpow.pop %v1210
      %v1212 = vmul.f32 %v1182, 1.442695
      %v1213 = vpow.pop %v1212
      %v1214 = vmul.f32 %v1183, 1.442695
      %v1215 = vpow.pop %v1214
      %v1216 = vsel %vm1119, %v1185, 0.0
      %1217 = vadd.xlane.f32.xlu0 %v1216
      %v1218 = vpop.xlane.xlu0 %1217
      %v1219 = vsel %vm1119, %v1187, 0.0
      %1220 = vadd.xlane.f32.xlu0 %v1219
      %v1221 = vpop.xlane.xlu0 %1220
      %v1222 = vsel %vm1119, %v1189, 0.0
      %1223 = vadd.xlane.f32.xlu0 %v1222
      %v1224 = vpop.xlane.xlu0 %1223
      %v1225 = vsel %vm1119, %v1191, 0.0
      %1226 = vadd.xlane.f32.xlu0 %v1225
      %v1227 = vpop.xlane.xlu0 %1226
      %v1228 = vsel %vm1119, %v1193, 0.0
      %1229 = vadd.xlane.f32.xlu0 %v1228
      %v1230 = vpop.xlane.xlu0 %1229
      %v1231 = vsel %vm1119, %v1195, 0.0
      %1232 = vadd.xlane.f32.xlu0 %v1231
      %v1233 = vpop.xlane.xlu0 %1232
      %v1234 = vsel %vm1119, %v1197, 0.0
      %1235 = vadd.xlane.f32.xlu0 %v1234
      %v1236 = vpop.xlane.xlu0 %1235
      %v1237 = vsel %vm1119, %v1199, 0.0
      %1238 = vadd.xlane.f32.xlu0 %v1237
      %v1239 = vpop.xlane.xlu0 %1238
      %v1240 = vsel %vm1119, %v1201, 0.0
      %1241 = vadd.xlane.f32.xlu0 %v1240
      %v1242 = vpop.xlane.xlu0 %1241
      %v1243 = vsel %vm1119, %v1203, 0.0
      %1244 = vadd.xlane.f32.xlu0 %v1243
      %v1245 = vpop.xlane.xlu0 %1244
      %v1246 = vsel %vm1119, %v1205, 0.0
      %1247 = vadd.xlane.f32.xlu0 %v1246
      %v1248 = vpop.xlane.xlu0 %1247
      %v1249 = vsel %vm1119, %v1207, 0.0
      %1250 = vadd.xlane.f32.xlu0 %v1249
      %v1251 = vpop.xlane.xlu0 %1250
      %v1252 = vsel %vm1119, %v1209, 0.0
      %1253 = vadd.xlane.f32.xlu0 %v1252
      %v1254 = vpop.xlane.xlu0 %1253
      %v1255 = vsel %vm1119, %v1211, 0.0
      %1256 = vadd.xlane.f32.xlu0 %v1255
      %v1257 = vpop.xlane.xlu0 %1256
      %v1258 = vsel %vm1119, %v1213, 0.0
      %1259 = vadd.xlane.f32.xlu0 %v1258
      %v1260 = vpop.xlane.xlu0 %1259
      %v1261 = vsel %vm1119, %v1215, 0.0
      %1262 = vadd.xlane.f32.xlu0 %v1261
      %v1263 = vpop.xlane.xlu0 %1262
      %v1264 = vrcp.pop %v1218
      %v1265 = vrcp.pop %v1221
      %v1266 = vrcp.pop %v1224
      %v1267 = vrcp.pop %v1227
      %v1268 = vrcp.pop %v1230
      %v1269 = vrcp.pop %v1233
      %v1270 = vrcp.pop %v1236
      %v1271 = vrcp.pop %v1239
      %v1272 = vrcp.pop %v1242
      %v1273 = vrcp.pop %v1245
      %v1274 = vrcp.pop %v1248
      %v1275 = vrcp.pop %v1251
      %v1276 = vrcp.pop %v1254
      %v1277 = vrcp.pop %v1257
      %v1278 = vrcp.pop %v1260
      %v1279 = vrcp.pop %v1263
      %v1280 = vmul.f32 %v1185, %v1264
      %v1281 = vmul.f32 %v1187, %v1265
      %v1282 = vmul.f32 %v1189, %v1266
      %v1283 = vmul.f32 %v1191, %v1267
      %v1284 = vmul.f32 %v1193, %v1268
      %v1285 = vmul.f32 %v1195, %v1269
      %v1286 = vmul.f32 %v1197, %v1270
      %v1287 = vmul.f32 %v1199, %v1271
      %v1288 = vmul.f32 %v1201, %v1272
      %v1289 = vmul.f32 %v1203, %v1273
      %v1290 = vmul.f32 %v1205, %v1274
      %v1291 = vmul.f32 %v1207, %v1275
      %v1292 = vmul.f32 %v1209, %v1276
      %v1293 = vmul.f32 %v1211, %v1277
      %v1294 = vmul.f32 %v1213, %v1278
      %v1295 = vmul.f32 %v1215, %v1279
      %v1296 = vpack.c.bf16 %v1281, %v1280
      %v1297 = vpack.c.bf16 %v1283, %v1282
      %v1298 = vpack.c.bf16 %v1285, %v1284
      %v1299 = vpack.c.bf16 %v1287, %v1286
      %v1300 = vpack.c.bf16 %v1289, %v1288
      %v1301 = vpack.c.bf16 %v1291, %v1290
      %v1302 = vpack.c.bf16 %v1293, %v1292
      %v1303 = vpack.c.bf16 %v1295, %v1294
      %1304 = vrot.lane.b32.xlu0 %v908, 64
      %v1305 = vpop.permute.xlu0 %1304
      %1306 = vrot.lane.b32.xlu0 %v909, 64
      %v1307 = vpop.permute.xlu0 %1306
      %1308 = vrot.lane.b32.xlu0 %v910, 64
      %v1309 = vpop.permute.xlu0 %1308
      %1310 = vrot.lane.b32.xlu0 %v911, 64
      %v1311 = vpop.permute.xlu0 %1310
      %v1317 = vsel %vm1119, %v1296, 0
      %v1320 = vsel %vm1119, %v1297, 0
      %v1323 = vsel %vm1119, %v1298, 0
      %v1326 = vsel %vm1119, %v1299, 0
      %1328 = vmatprep.subr.bf16.mxu0 0
      %1329 = vmatpush1.bf16.msra.mxu0 0
      %1330 = vmatprep.subr.bf16.mxu0 0
      %1331 = vmatpush1.bf16.msra.mxu0 0
      %1332 = vmatprep.subr.bf16.mxu0 0
      %1333 = vmatpush1.bf16.msra.mxu0 0
      %1334 = vmatprep.subr.bf16.mxu0 0
      %1335 = vmatpush1.bf16.msra.mxu0 0
      %1336 = vmatprep.subr.bf16.mxu0 0
      %1337 = vmatpush1.bf16.msra.mxu0 %v1311
      %1338 = vmatprep.subr.bf16.mxu0 0
      %1339 = vmatpush1.bf16.msra.mxu0 %v1309
      %1340 = vmatprep.subr.bf16.mxu0 0
      %1341 = vmatpush1.bf16.msra.mxu0 %v1307
      %1342 = vmatprep.subr.bf16.mxu0 0
      %1343 = vmatpush1.bf16.msra.mxu0 %v1305
      %1344 = vmatprep.subr.bf16.mxu0 0
      %1345 = vmatpush2.bf16.msra.mxu0 0
      %1346 = vmatprep.subr.bf16.mxu0 0
      %1347 = vmatpush2.bf16.msra.mxu0 0
      %1348 = vmatprep.subr.bf16.mxu0 0
      %1349 = vmatpush2.bf16.msra.mxu0 0
      %1350 = vmatprep.subr.bf16.mxu0 0
      %1351 = vmatpush2.bf16.msra.mxu0 0
      %1352 = vmatprep.subr.bf16.mxu0 0
      %1353 = vmatpush2.bf16.msra.mxu0 0
      %1354 = vmatprep.subr.bf16.mxu0 0
      %1355 = vmatpush2.bf16.msra.mxu0 0
      %1356 = vmatprep.subr.bf16.mxu0 0
      %1357 = vmatpush2.bf16.msra.mxu0 0
      %1358 = vmatprep.subr.bf16.mxu0 0
      %1359 = vmatpush2.bf16.msra.mxu0 0
      %1360 = vmatprep.mubr.bf16.mxu0 0
      %1361 = vmatmul.mubr.bf16.gmra.mxu0 %v1317
      %v1362 = vpop.f32.mrf.mxu0
      %v1363 = vadd.f32 0.0, %v1362
      %v1364 = vpop.f32.mrf.mxu0
      %v1365 = vpop.f32.mrf.mxu0
      %v1366 = vadd.f32 0.0, %v1365
      %v1367 = vpop.f32.mrf.mxu0
      %1368 = vmatprep.mubr.bf16.mxu0 0
      %1369 = vmatmul.mubr.bf16.gmra.mxu0 %v1320
      %v1370 = vpop.f32.mrf.mxu0
      %v1371 = vadd.f32 0.0, %v1370
      %v1372 = vpop.f32.mrf.mxu0
      %v1373 = vpop.f32.mrf.mxu0
      %v1374 = vadd.f32 0.0, %v1373
      %v1375 = vpop.f32.mrf.mxu0
      %1376 = vmatprep.mubr.bf16.mxu0 0
      %1377 = vmatmul.mubr.bf16.gmra.mxu0 %v1323
      %v1378 = vpop.f32.mrf.mxu0
      %v1379 = vadd.f32 0.0, %v1378
      %v1380 = vpop.f32.mrf.mxu0
      %v1381 = vpop.f32.mrf.mxu0
      %v1382 = vadd.f32 0.0, %v1381
      %v1383 = vpop.f32.mrf.mxu0
      %1384 = vmatprep.mubr.bf16.mxu0 0
      %1385 = vmatmul.mubr.bf16.gmra.mxu0 %v1326
      %v1386 = vpop.f32.mrf.mxu0
      %v1387 = vadd.f32 0.0, %v1386
      %v1388 = vpop.f32.mrf.mxu0
      %v1389 = vpop.f32.mrf.mxu0
      %v1390 = vadd.f32 0.0, %v1389
      %v1391 = vpop.f32.mrf.mxu0
      %1392 = vdwg.mxu0
      %1393 = vrot.lane.b32.xlu0 %v912, 64
      %v1394 = vpop.permute.xlu0 %1393
      %1395 = vrot.lane.b32.xlu0 %v913, 64
      %v1396 = vpop.permute.xlu0 %1395
      %1397 = vrot.lane.b32.xlu0 %v914, 64
      %v1398 = vpop.permute.xlu0 %1397
      %1399 = vrot.lane.b32.xlu0 %v915, 64
      %v1400 = vpop.permute.xlu0 %1399
      %v1406 = vsel %vm1119, %v1300, 0
      %v1409 = vsel %vm1119, %v1301, 0
      %v1412 = vsel %vm1119, %v1302, 0
      %v1415 = vsel %vm1119, %v1303, 0
      %1417 = vmatprep.subr.bf16.mxu0 0
      %1418 = vmatpush1.bf16.msra.mxu0 0
      %1419 = vmatprep.subr.bf16.mxu0 0
      %1420 = vmatpush1.bf16.msra.mxu0 0
      %1421 = vmatprep.subr.bf16.mxu0 0
      %1422 = vmatpush1.bf16.msra.mxu0 0
      %1423 = vmatprep.subr.bf16.mxu0 0
      %1424 = vmatpush1.bf16.msra.mxu0 0
      %1425 = vmatprep.subr.bf16.mxu0 0
      %1426 = vmatpush1.bf16.msra.mxu0 %v1400
      %1427 = vmatprep.subr.bf16.mxu0 0
      %1428 = vmatpush1.bf16.msra.mxu0 %v1398
      %1429 = vmatprep.subr.bf16.mxu0 0
      %1430 = vmatpush1.bf16.msra.mxu0 %v1396
      %1431 = vmatprep.subr.bf16.mxu0 0
      %1432 = vmatpush1.bf16.msra.mxu0 %v1394
      %1433 = vmatprep.subr.bf16.mxu0 0
      %1434 = vmatpush2.bf16.msra.mxu0 0
      %1435 = vmatprep.subr.bf16.mxu0 0
      %1436 = vmatpush2.bf16.msra.mxu0 0
      %1437 = vmatprep.subr.bf16.mxu0 0
      %1438 = vmatpush2.bf16.msra.mxu0 0
      %1439 = vmatprep.subr.bf16.mxu0 0
      %1440 = vmatpush2.bf16.msra.mxu0 0
      %1441 = vmatprep.subr.bf16.mxu0 0
      %1442 = vmatpush2.bf16.msra.mxu0 0
      %1443 = vmatprep.subr.bf16.mxu0 0
      %1444 = vmatpush2.bf16.msra.mxu0 0
      %1445 = vmatprep.subr.bf16.mxu0 0
      %1446 = vmatpush2.bf16.msra.mxu0 0
      %1447 = vmatprep.subr.bf16.mxu0 0
      %1448 = vmatpush2.bf16.msra.mxu0 0
      %1449 = vmatprep.mubr.bf16.mxu0 0
      %1450 = vmatmul.mubr.bf16.gmra.mxu0 %v1406
      %v1451 = vpop.f32.mrf.mxu0
      %v1452 = vadd.f32 0.0, %v1451
      %v1453 = vpop.f32.mrf.mxu0
      %v1454 = vpop.f32.mrf.mxu0
      %v1455 = vadd.f32 0.0, %v1454
      %v1456 = vpop.f32.mrf.mxu0
      %1457 = vmatprep.mubr.bf16.mxu0 0
      %1458 = vmatmul.mubr.bf16.gmra.mxu0 %v1409
      %v1459 = vpop.f32.mrf.mxu0
      %v1460 = vadd.f32 0.0, %v1459
      %v1461 = vpop.f32.mrf.mxu0
      %v1462 = vpop.f32.mrf.mxu0
      %v1463 = vadd.f32 0.0, %v1462
      %v1464 = vpop.f32.mrf.mxu0
      %1465 = vmatprep.mubr.bf16.mxu0 0
      %1466 = vmatmul.mubr.bf16.gmra.mxu0 %v1412
      %v1467 = vpop.f32.mrf.mxu0
      %v1468 = vadd.f32 0.0, %v1467
      %v1469 = vpop.f32.mrf.mxu0
      %v1470 = vpop.f32.mrf.mxu0
      %v1471 = vadd.f32 0.0, %v1470
      %v1472 = vpop.f32.mrf.mxu0
      %1473 = vmatprep.mubr.bf16.mxu0 0
      %1474 = vmatmul.mubr.bf16.gmra.mxu0 %v1415
      %v1475 = vpop.f32.mrf.mxu0
      %v1476 = vadd.f32 0.0, %v1475
      %v1477 = vpop.f32.mrf.mxu0
      %v1478 = vpop.f32.mrf.mxu0
      %v1479 = vadd.f32 0.0, %v1478
      %v1480 = vpop.f32.mrf.mxu0
      %1481 = vdwg.mxu0
      %v1482 = vpack.c.bf16 %v1366, %v1363
      %v1483 = vpack.c.bf16 %v1374, %v1371
      %v1484 = vpack.c.bf16 %v1382, %v1379
      %v1485 = vpack.c.bf16 %v1390, %v1387
      %v1486 = vpack.c.bf16 %v1455, %v1452
      %v1487 = vpack.c.bf16 %v1463, %v1460
      %v1488 = vpack.c.bf16 %v1471, %v1468
      %v1489 = vpack.c.bf16 %v1479, %v1476
      %1490 = vrot.lane.b32.xlu0 %v908, 120
      %v1491 = vpop.permute.xlu0 %1490
      %1492 = vrot.lane.b32.xlu0 %v909, 120
      %v1493 = vpop.permute.xlu0 %1492
      %1494 = vrot.lane.b32.xlu0 %v910, 120
      %v1495 = vpop.permute.xlu0 %1494
      %1496 = vrot.lane.b32.xlu0 %v911, 120
      %v1497 = vpop.permute.xlu0 %1496
      %1498 = vrot.lane.b32.xlu0 %v908, 88
      %v1499 = vpop.permute.xlu0 %1498
      %1500 = vrot.lane.b32.xlu0 %v909, 88
      %v1501 = vpop.permute.xlu0 %1500
      %1502 = vrot.lane.b32.xlu0 %v910, 88
      %v1503 = vpop.permute.xlu0 %1502
      %1504 = vrot.lane.b32.xlu0 %v911, 88
      %v1505 = vpop.permute.xlu0 %1504
      %v1507 = vsel %vm928, %v1491, 0
      %v1510 = vsel %vm928, %v1493, 0
      %v1513 = vsel %vm928, %v1495, 0
      %v1516 = vsel %vm928, %v1497, 0
      %v1519 = vsel %vm928, %v1499, 0
      %v1522 = vsel %vm928, %v1501, 0
      %v1525 = vsel %vm928, %v1503, 0
      %v1528 = vsel %vm928, %v1505, 0
      %1530 = vmatprep.subr.bf16.mxu0 0
      %1531 = vmatpush1.bf16.xpose.msra.mxu0 0
      %1532 = vmatprep.subr.bf16.mxu0 0
      %1533 = vmatpush1.bf16.xpose.msra.mxu0 0
      %1534 = vmatprep.subr.bf16.mxu0 0
      %1535 = vmatpush1.bf16.xpose.msra.mxu0 0
      %1536 = vmatprep.subr.bf16.mxu0 0
      %1537 = vmatpush1.bf16.xpose.msra.mxu0 0
      %1538 = vmatprep.subr.bf16.mxu0 0
      %1539 = vmatpush1.bf16.xpose.msra.mxu0 %v1528
      %1540 = vmatprep.subr.bf16.mxu0 0
      %1541 = vmatpush1.bf16.xpose.msra.mxu0 %v1525
      %1542 = vmatprep.subr.bf16.mxu0 0
      %1543 = vmatpush1.bf16.xpose.msra.mxu0 %v1522
      %1544 = vmatprep.subr.bf16.mxu0 0
      %1545 = vmatpush1.bf16.xpose.msra.mxu0 %v1519
      %1546 = vmatprep.subr.bf16.mxu0 0
      %1547 = vmatpush2.bf16.xpose.msra.mxu0 0
      %1548 = vmatprep.subr.bf16.mxu0 0
      %1549 = vmatpush2.bf16.xpose.msra.mxu0 0
      %1550 = vmatprep.subr.bf16.mxu0 0
      %1551 = vmatpush2.bf16.xpose.msra.mxu0 0
      %1552 = vmatprep.subr.bf16.mxu0 0
      %1553 = vmatpush2.bf16.xpose.msra.mxu0 0
      %1554 = vmatprep.subr.bf16.mxu0 0
      %1555 = vmatpush2.bf16.xpose.msra.mxu0 0
      %1556 = vmatprep.subr.bf16.mxu0 0
      %1557 = vmatpush2.bf16.xpose.msra.mxu0 0
      %1558 = vmatprep.subr.bf16.mxu0 0
      %1559 = vmatpush2.bf16.xpose.msra.mxu0 0
      %1560 = vmatprep.subr.bf16.mxu0 0
      %1561 = vmatpush2.bf16.xpose.msra.mxu0 0
      %1562 = vmatprep.mubr.bf16.mxu0 0
      %1563 = vmatmul.mubr.bf16.gmra.mxu0 %v1507
      %v1564 = vpop.f32.mrf.mxu0
      %v1565 = vadd.f32 0.0, %v1564
      %v1566 = vpop.f32.mrf.mxu0
      %v1567 = vpop.f32.mrf.mxu0
      %v1568 = vadd.f32 0.0, %v1567
      %v1569 = vpop.f32.mrf.mxu0
      %1570 = vmatprep.mubr.bf16.mxu0 0
      %1571 = vmatmul.mubr.bf16.gmra.mxu0 %v1510
      %v1572 = vpop.f32.mrf.mxu0
      %v1573 = vadd.f32 0.0, %v1572
      %v1574 = vpop.f32.mrf.mxu0
      %v1575 = vpop.f32.mrf.mxu0
      %v1576 = vadd.f32 0.0, %v1575
      %v1577 = vpop.f32.mrf.mxu0
      %1578 = vmatprep.mubr.bf16.mxu0 0
      %1579 = vmatmul.mubr.bf16.gmra.mxu0 %v1513
      %v1580 = vpop.f32.mrf.mxu0
      %v1581 = vadd.f32 0.0, %v1580
      %v1582 = vpop.f32.mrf.mxu0
      %v1583 = vpop.f32.mrf.mxu0
      %v1584 = vadd.f32 0.0, %v1583
      %v1585 = vpop.f32.mrf.mxu0
      %1586 = vmatprep.mubr.bf16.mxu0 0
      %1587 = vmatmul.mubr.bf16.gmra.mxu0 %v1516
      %v1588 = vpop.f32.mrf.mxu0
      %v1589 = vadd.f32 0.0, %v1588
      %v1590 = vpop.f32.mrf.mxu0
      %v1591 = vpop.f32.mrf.mxu0
      %v1592 = vadd.f32 0.0, %v1591
      %v1593 = vpop.f32.mrf.mxu0
      %1594 = vdwg.mxu0
      %1595 = vrot.lane.b32.xlu0 %v912, 120
      %v1596 = vpop.permute.xlu0 %1595
      %1597 = vrot.lane.b32.xlu0 %v913, 120
      %v1598 = vpop.permute.xlu0 %1597
      %1599 = vrot.lane.b32.xlu0 %v914, 120
      %v1600 = vpop.permute.xlu0 %1599
      %1601 = vrot.lane.b32.xlu0 %v915, 120
      %v1602 = vpop.permute.xlu0 %1601
      %1603 = vrot.lane.b32.xlu0 %v912, 88
      %v1604 = vpop.permute.xlu0 %1603
      %1605 = vrot.lane.b32.xlu0 %v913, 88
      %v1606 = vpop.permute.xlu0 %1605
      %1607 = vrot.lane.b32.xlu0 %v914, 88
      %v1608 = vpop.permute.xlu0 %1607
      %1609 = vrot.lane.b32.xlu0 %v915, 88
      %v1610 = vpop.permute.xlu0 %1609
      %v1612 = vsel %vm928, %v1596, 0
      %v1615 = vsel %vm928, %v1598, 0
      %v1618 = vsel %vm928, %v1600, 0
      %v1621 = vsel %vm928, %v1602, 0
      %v1624 = vsel %vm928, %v1604, 0
      %v1627 = vsel %vm928, %v1606, 0
      %v1630 = vsel %vm928, %v1608, 0
      %v1633 = vsel %vm928, %v1610, 0
      %1635 = vmatprep.subr.bf16.mxu0 0
      %1636 = vmatpush1.bf16.xpose.msra.mxu0 0
      %1637 = vmatprep.subr.bf16.mxu0 0
      %1638 = vmatpush1.bf16.xpose.msra.mxu0 0
      %1639 = vmatprep.subr.bf16.mxu0 0
      %1640 = vmatpush1.bf16.xpose.msra.mxu0 0
      %1641 = vmatprep.subr.bf16.mxu0 0
      %1642 = vmatpush1.bf16.xpose.msra.mxu0 0
      %1643 = vmatprep.subr.bf16.mxu0 0
      %1644 = vmatpush1.bf16.xpose.msra.mxu0 %v1633
      %1645 = vmatprep.subr.bf16.mxu0 0
      %1646 = vmatpush1.bf16.xpose.msra.mxu0 %v1630
      %1647 = vmatprep.subr.bf16.mxu0 0
      %1648 = vmatpush1.bf16.xpose.msra.mxu0 %v1627
      %1649 = vmatprep.subr.bf16.mxu0 0
      %1650 = vmatpush1.bf16.xpose.msra.mxu0 %v1624
      %1651 = vmatprep.subr.bf16.mxu0 0
      %1652 = vmatpush2.bf16.xpose.msra.mxu0 0
      %1653 = vmatprep.subr.bf16.mxu0 0
      %1654 = vmatpush2.bf16.xpose.msra.mxu0 0
      %1655 = vmatprep.subr.bf16.mxu0 0
      %1656 = vmatpush2.bf16.xpose.msra.mxu0 0
      %1657 = vmatprep.subr.bf16.mxu0 0
      %1658 = vmatpush2.bf16.xpose.msra.mxu0 0
      %1659 = vmatprep.subr.bf16.mxu0 0
      %1660 = vmatpush2.bf16.xpose.msra.mxu0 0
      %1661 = vmatprep.subr.bf16.mxu0 0
      %1662 = vmatpush2.bf16.xpose.msra.mxu0 0
      %1663 = vmatprep.subr.bf16.mxu0 0
      %1664 = vmatpush2.bf16.xpose.msra.mxu0 0
      %1665 = vmatprep.subr.bf16.mxu0 0
      %1666 = vmatpush2.bf16.xpose.msra.mxu0 0
      %1667 = vmatprep.mubr.bf16.mxu0 0
      %1668 = vmatmul.mubr.bf16.gmra.mxu0 %v1612
      %v1669 = vpop.f32.mrf.mxu0
      %v1670 = vadd.f32 0.0, %v1669
      %v1671 = vpop.f32.mrf.mxu0
      %v1672 = vpop.f32.mrf.mxu0
      %v1673 = vadd.f32 0.0, %v1672
      %v1674 = vpop.f32.mrf.mxu0
      %1675 = vmatprep.mubr.bf16.mxu0 0
      %1676 = vmatmul.mubr.bf16.gmra.mxu0 %v1615
      %v1677 = vpop.f32.mrf.mxu0
      %v1678 = vadd.f32 0.0, %v1677
      %v1679 = vpop.f32.mrf.mxu0
      %v1680 = vpop.f32.mrf.mxu0
      %v1681 = vadd.f32 0.0, %v1680
      %v1682 = vpop.f32.mrf.mxu0
      %1683 = vmatprep.mubr.bf16.mxu0 0
      %1684 = vmatmul.mubr.bf16.gmra.mxu0 %v1618
      %v1685 = vpop.f32.mrf.mxu0
      %v1686 = vadd.f32 0.0, %v1685
      %v1687 = vpop.f32.mrf.mxu0
      %v1688 = vpop.f32.mrf.mxu0
      %v1689 = vadd.f32 0.0, %v1688
      %v1690 = vpop.f32.mrf.mxu0
      %1691 = vmatprep.mubr.bf16.mxu0 0
      %1692 = vmatmul.mubr.bf16.gmra.mxu0 %v1621
      %v1693 = vpop.f32.mrf.mxu0
      %v1694 = vadd.f32 0.0, %v1693
      %v1695 = vpop.f32.mrf.mxu0
      %v1696 = vpop.f32.mrf.mxu0
      %v1697 = vadd.f32 0.0, %v1696
      %v1698 = vpop.f32.mrf.mxu0
      %1699 = vdwg.mxu0
      %v1700 = vsel %vm1119, %v1565, -inf
      %1701 = vmax.xlane.f32.xlu0 %v1700
      %v1702 = vpop.xlane.xlu0 %1701
      %v1703 = vsel %vm1119, %v1568, -inf
      %1704 = vmax.xlane.f32.xlu0 %v1703
      %v1705 = vpop.xlane.xlu0 %1704
      %v1706 = vsel %vm1119, %v1573, -inf
      %1707 = vmax.xlane.f32.xlu0 %v1706
      %v1708 = vpop.xlane.xlu0 %1707
      %v1709 = vsel %vm1119, %v1576, -inf
      %1710 = vmax.xlane.f32.xlu0 %v1709
      %v1711 = vpop.xlane.xlu0 %1710
      %v1712 = vsel %vm1119, %v1581, -inf
      %1713 = vmax.xlane.f32.xlu0 %v1712
      %v1714 = vpop.xlane.xlu0 %1713
      %v1715 = vsel %vm1119, %v1584, -inf
      %1716 = vmax.xlane.f32.xlu0 %v1715
      %v1717 = vpop.xlane.xlu0 %1716
      %v1718 = vsel %vm1119, %v1589, -inf
      %1719 = vmax.xlane.f32.xlu0 %v1718
      %v1720 = vpop.xlane.xlu0 %1719
      %v1721 = vsel %vm1119, %v1592, -inf
      %1722 = vmax.xlane.f32.xlu0 %v1721
      %v1723 = vpop.xlane.xlu0 %1722
      %v1724 = vsel %vm1119, %v1670, -inf
      %1725 = vmax.xlane.f32.xlu0 %v1724
      %v1726 = vpop.xlane.xlu0 %1725
      %v1727 = vsel %vm1119, %v1673, -inf
      %1728 = vmax.xlane.f32.xlu0 %v1727
      %v1729 = vpop.xlane.xlu0 %1728
      %v1730 = vsel %vm1119, %v1678, -inf
      %1731 = vmax.xlane.f32.xlu0 %v1730
      %v1732 = vpop.xlane.xlu0 %1731
      %v1733 = vsel %vm1119, %v1681, -inf
      %1734 = vmax.xlane.f32.xlu0 %v1733
      %v1735 = vpop.xlane.xlu0 %1734
      %v1736 = vsel %vm1119, %v1686, -inf
      %1737 = vmax.xlane.f32.xlu0 %v1736
      %v1738 = vpop.xlane.xlu0 %1737
      %v1739 = vsel %vm1119, %v1689, -inf
      %1740 = vmax.xlane.f32.xlu0 %v1739
      %v1741 = vpop.xlane.xlu0 %1740
      %v1742 = vsel %vm1119, %v1694, -inf
      %1743 = vmax.xlane.f32.xlu0 %v1742
      %v1744 = vpop.xlane.xlu0 %1743
      %v1745 = vsel %vm1119, %v1697, -inf
      %1746 = vmax.xlane.f32.xlu0 %v1745
      %v1747 = vpop.xlane.xlu0 %1746
      %v1748 = vsub.f32 %v1565, %v1702
      %v1749 = vsub.f32 %v1568, %v1705
      %v1750 = vsub.f32 %v1573, %v1708
      %v1751 = vsub.f32 %v1576, %v1711
      %v1752 = vsub.f32 %v1581, %v1714
      %v1753 = vsub.f32 %v1584, %v1717
      %v1754 = vsub.f32 %v1589, %v1720
      %v1755 = vsub.f32 %v1592, %v1723
      %v1756 = vsub.f32 %v1670, %v1726
      %v1757 = vsub.f32 %v1673, %v1729
      %v1758 = vsub.f32 %v1678, %v1732
      %v1759 = vsub.f32 %v1681, %v1735
      %v1760 = vsub.f32 %v1686, %v1738
      %v1761 = vsub.f32 %v1689, %v1741
      %v1762 = vsub.f32 %v1694, %v1744
      %v1763 = vsub.f32 %v1697, %v1747
      %v1764 = vmul.f32 %v1748, 1.442695
      %v1765 = vpow.pop %v1764
      %v1766 = vmul.f32 %v1749, 1.442695
      %v1767 = vpow.pop %v1766
      %v1768 = vmul.f32 %v1750, 1.442695
      %v1769 = vpow.pop %v1768
      %v1770 = vmul.f32 %v1751, 1.442695
      %v1771 = vpow.pop %v1770
      %v1772 = vmul.f32 %v1752, 1.442695
      %v1773 = vpow.pop %v1772
      %v1774 = vmul.f32 %v1753, 1.442695
      %v1775 = vpow.pop %v1774
      %v1776 = vmul.f32 %v1754, 1.442695
      %v1777 = vpow.pop %v1776
      %v1778 = vmul.f32 %v1755, 1.442695
      %v1779 = vpow.pop %v1778
      %v1780 = vmul.f32 %v1756, 1.442695
      %v1781 = vpow.pop %v1780
      %v1782 = vmul.f32 %v1757, 1.442695
      %v1783 = vpow.pop %v1782
      %v1784 = vmul.f32 %v1758, 1.442695
      %v1785 = vpow.pop %v1784
      %v1786 = vmul.f32 %v1759, 1.442695
      %v1787 = vpow.pop %v1786
      %v1788 = vmul.f32 %v1760, 1.442695
      %v1789 = vpow.pop %v1788
      %v1790 = vmul.f32 %v1761, 1.442695
      %v1791 = vpow.pop %v1790
      %v1792 = vmul.f32 %v1762, 1.442695
      %v1793 = vpow.pop %v1792
      %v1794 = vmul.f32 %v1763, 1.442695
      %v1795 = vpow.pop %v1794
      %v1796 = vsel %vm1119, %v1765, 0.0
      %1797 = vadd.xlane.f32.xlu0 %v1796
      %v1798 = vpop.xlane.xlu0 %1797
      %v1799 = vsel %vm1119, %v1767, 0.0
      %1800 = vadd.xlane.f32.xlu0 %v1799
      %v1801 = vpop.xlane.xlu0 %1800
      %v1802 = vsel %vm1119, %v1769, 0.0
      %1803 = vadd.xlane.f32.xlu0 %v1802
      %v1804 = vpop.xlane.xlu0 %1803
      %v1805 = vsel %vm1119, %v1771, 0.0
      %1806 = vadd.xlane.f32.xlu0 %v1805
      %v1807 = vpop.xlane.xlu0 %1806
      %v1808 = vsel %vm1119, %v1773, 0.0
      %1809 = vadd.xlane.f32.xlu0 %v1808
      %v1810 = vpop.xlane.xlu0 %1809
      %v1811 = vsel %vm1119, %v1775, 0.0
      %1812 = vadd.xlane.f32.xlu0 %v1811
      %v1813 = vpop.xlane.xlu0 %1812
      %v1814 = vsel %vm1119, %v1777, 0.0
      %1815 = vadd.xlane.f32.xlu0 %v1814
      %v1816 = vpop.xlane.xlu0 %1815
      %v1817 = vsel %vm1119, %v1779, 0.0
      %1818 = vadd.xlane.f32.xlu0 %v1817
      %v1819 = vpop.xlane.xlu0 %1818
      %v1820 = vsel %vm1119, %v1781, 0.0
      %1821 = vadd.xlane.f32.xlu0 %v1820
      %v1822 = vpop.xlane.xlu0 %1821
      %v1823 = vsel %vm1119, %v1783, 0.0
      %1824 = vadd.xlane.f32.xlu0 %v1823
      %v1825 = vpop.xlane.xlu0 %1824
      %v1826 = vsel %vm1119, %v1785, 0.0
      %1827 = vadd.xlane.f32.xlu0 %v1826
      %v1828 = vpop.xlane.xlu0 %1827
      %v1829 = vsel %vm1119, %v1787, 0.0
      %1830 = vadd.xlane.f32.xlu0 %v1829
      %v1831 = vpop.xlane.xlu0 %1830
      %v1832 = vsel %vm1119, %v1789, 0.0
      %1833 = vadd.xlane.f32.xlu0 %v1832
      %v1834 = vpop.xlane.xlu0 %1833
      %v1835 = vsel %vm1119, %v1791, 0.0
      %1836 = vadd.xlane.f32.xlu0 %v1835
      %v1837 = vpop.xlane.xlu0 %1836
      %v1838 = vsel %vm1119, %v1793, 0.0
      %1839 = vadd.xlane.f32.xlu0 %v1838
      %v1840 = vpop.xlane.xlu0 %1839
      %v1841 = vsel %vm1119, %v1795, 0.0
      %1842 = vadd.xlane.f32.xlu0 %v1841
      %v1843 = vpop.xlane.xlu0 %1842
      %v1844 = vrcp.pop %v1798
      %v1845 = vrcp.pop %v1801
      %v1846 = vrcp.pop %v1804
      %v1847 = vrcp.pop %v1807
      %v1848 = vrcp.pop %v1810
      %v1849 = vrcp.pop %v1813
      %v1850 = vrcp.pop %v1816
      %v1851 = vrcp.pop %v1819
      %v1852 = vrcp.pop %v1822
      %v1853 = vrcp.pop %v1825
      %v1854 = vrcp.pop %v1828
      %v1855 = vrcp.pop %v1831
      %v1856 = vrcp.pop %v1834
      %v1857 = vrcp.pop %v1837
      %v1858 = vrcp.pop %v1840
      %v1859 = vrcp.pop %v1843
      %v1860 = vmul.f32 %v1765, %v1844
      %v1861 = vmul.f32 %v1767, %v1845
      %v1862 = vmul.f32 %v1769, %v1846
      %v1863 = vmul.f32 %v1771, %v1847
      %v1864 = vmul.f32 %v1773, %v1848
      %v1865 = vmul.f32 %v1775, %v1849
      %v1866 = vmul.f32 %v1777, %v1850
      %v1867 = vmul.f32 %v1779, %v1851
      %v1868 = vmul.f32 %v1781, %v1852
      %v1869 = vmul.f32 %v1783, %v1853
      %v1870 = vmul.f32 %v1785, %v1854
      %v1871 = vmul.f32 %v1787, %v1855
      %v1872 = vmul.f32 %v1789, %v1856
      %v1873 = vmul.f32 %v1791, %v1857
      %v1874 = vmul.f32 %v1793, %v1858
      %v1875 = vmul.f32 %v1795, %v1859
      %v1876 = vpack.c.bf16 %v1861, %v1860
      %v1877 = vpack.c.bf16 %v1863, %v1862
      %v1878 = vpack.c.bf16 %v1865, %v1864
      %v1879 = vpack.c.bf16 %v1867, %v1866
      %v1880 = vpack.c.bf16 %v1869, %v1868
      %v1881 = vpack.c.bf16 %v1871, %v1870
      %v1882 = vpack.c.bf16 %v1873, %v1872
      %v1883 = vpack.c.bf16 %v1875, %v1874
      %1884 = vrot.lane.b32.xlu0 %v908, 56
      %v1885 = vpop.permute.xlu0 %1884
      %1886 = vrot.lane.b32.xlu0 %v909, 56
      %v1887 = vpop.permute.xlu0 %1886
      %1888 = vrot.lane.b32.xlu0 %v910, 56
      %v1889 = vpop.permute.xlu0 %1888
      %1890 = vrot.lane.b32.xlu0 %v911, 56
      %v1891 = vpop.permute.xlu0 %1890
      %v1897 = vsel %vm1119, %v1876, 0
      %v1900 = vsel %vm1119, %v1877, 0
      %v1903 = vsel %vm1119, %v1878, 0
      %v1906 = vsel %vm1119, %v1879, 0
      %1908 = vmatprep.subr.bf16.mxu0 0
      %1909 = vmatpush1.bf16.msra.mxu0 0
      %1910 = vmatprep.subr.bf16.mxu0 0
      %1911 = vmatpush1.bf16.msra.mxu0 0
      %1912 = vmatprep.subr.bf16.mxu0 0
      %1913 = vmatpush1.bf16.msra.mxu0 0
      %1914 = vmatprep.subr.bf16.mxu0 0
      %1915 = vmatpush1.bf16.msra.mxu0 0
      %1916 = vmatprep.subr.bf16.mxu0 0
      %1917 = vmatpush1.bf16.msra.mxu0 %v1891
      %1918 = vmatprep.subr.bf16.mxu0 0
      %1919 = vmatpush1.bf16.msra.mxu0 %v1889
      %1920 = vmatprep.subr.bf16.mxu0 0
      %1921 = vmatpush1.bf16.msra.mxu0 %v1887
      %1922 = vmatprep.subr.bf16.mxu0 0
      %1923 = vmatpush1.bf16.msra.mxu0 %v1885
      %1924 = vmatprep.subr.bf16.mxu0 0
      %1925 = vmatpush2.bf16.msra.mxu0 0
      %1926 = vmatprep.subr.bf16.mxu0 0
      %1927 = vmatpush2.bf16.msra.mxu0 0
      %1928 = vmatprep.subr.bf16.mxu0 0
      %1929 = vmatpush2.bf16.msra.mxu0 0
      %1930 = vmatprep.subr.bf16.mxu0 0
      %1931 = vmatpush2.bf16.msra.mxu0 0
      %1932 = vmatprep.subr.bf16.mxu0 0
      %1933 = vmatpush2.bf16.msra.mxu0 0
      %1934 = vmatprep.subr.bf16.mxu0 0
      %1935 = vmatpush2.bf16.msra.mxu0 0
      %1936 = vmatprep.subr.bf16.mxu0 0
      %1937 = vmatpush2.bf16.msra.mxu0 0
      %1938 = vmatprep.subr.bf16.mxu0 0
      %1939 = vmatpush2.bf16.msra.mxu0 0
      %1940 = vmatprep.mubr.bf16.mxu0 0
      %1941 = vmatmul.mubr.bf16.gmra.mxu0 %v1897
      %v1942 = vpop.f32.mrf.mxu0
      %v1943 = vadd.f32 0.0, %v1942
      %v1944 = vpop.f32.mrf.mxu0
      %v1945 = vpop.f32.mrf.mxu0
      %v1946 = vadd.f32 0.0, %v1945
      %v1947 = vpop.f32.mrf.mxu0
      %1948 = vmatprep.mubr.bf16.mxu0 0
      %1949 = vmatmul.mubr.bf16.gmra.mxu0 %v1900
      %v1950 = vpop.f32.mrf.mxu0
      %v1951 = vadd.f32 0.0, %v1950
      %v1952 = vpop.f32.mrf.mxu0
      %v1953 = vpop.f32.mrf.mxu0
      %v1954 = vadd.f32 0.0, %v1953
      %v1955 = vpop.f32.mrf.mxu0
      %1956 = vmatprep.mubr.bf16.mxu0 0
      %1957 = vmatmul.mubr.bf16.gmra.mxu0 %v1903
      %v1958 = vpop.f32.mrf.mxu0
      %v1959 = vadd.f32 0.0, %v1958
      %v1960 = vpop.f32.mrf.mxu0
      %v1961 = vpop.f32.mrf.mxu0
      %v1962 = vadd.f32 0.0, %v1961
      %v1963 = vpop.f32.mrf.mxu0
      %1964 = vmatprep.mubr.bf16.mxu0 0
      %1965 = vmatmul.mubr.bf16.gmra.mxu0 %v1906
      %v1966 = vpop.f32.mrf.mxu0
      %v1967 = vadd.f32 0.0, %v1966
      %v1968 = vpop.f32.mrf.mxu0
      %v1969 = vpop.f32.mrf.mxu0
      %v1970 = vadd.f32 0.0, %v1969
      %v1971 = vpop.f32.mrf.mxu0
      %1972 = vdwg.mxu0
      %1973 = vrot.lane.b32.xlu0 %v912, 56
      %v1974 = vpop.permute.xlu0 %1973
      %1975 = vrot.lane.b32.xlu0 %v913, 56
      %v1976 = vpop.permute.xlu0 %1975
      %1977 = vrot.lane.b32.xlu0 %v914, 56
      %v1978 = vpop.permute.xlu0 %1977
      %1979 = vrot.lane.b32.xlu0 %v915, 56
      %v1980 = vpop.permute.xlu0 %1979
      %v1986 = vsel %vm1119, %v1880, 0
      %v1989 = vsel %vm1119, %v1881, 0
      %v1992 = vsel %vm1119, %v1882, 0
      %v1995 = vsel %vm1119, %v1883, 0
      %1997 = vmatprep.subr.bf16.mxu0 0
      %1998 = vmatpush1.bf16.msra.mxu0 0
      %1999 = vmatprep.subr.bf16.mxu0 0
      %2000 = vmatpush1.bf16.msra.mxu0 0
      %2001 = vmatprep.subr.bf16.mxu0 0
      %2002 = vmatpush1.bf16.msra.mxu0 0
      %2003 = vmatprep.subr.bf16.mxu0 0
      %2004 = vmatpush1.bf16.msra.mxu0 0
      %2005 = vmatprep.subr.bf16.mxu0 0
      %2006 = vmatpush1.bf16.msra.mxu0 %v1980
      %2007 = vmatprep.subr.bf16.mxu0 0
      %2008 = vmatpush1.bf16.msra.mxu0 %v1978
      %2009 = vmatprep.subr.bf16.mxu0 0
      %2010 = vmatpush1.bf16.msra.mxu0 %v1976
      %2011 = vmatprep.subr.bf16.mxu0 0
      %2012 = vmatpush1.bf16.msra.mxu0 %v1974
      %2013 = vmatprep.subr.bf16.mxu0 0
      %2014 = vmatpush2.bf16.msra.mxu0 0
      %2015 = vmatprep.subr.bf16.mxu0 0
      %2016 = vmatpush2.bf16.msra.mxu0 0
      %2017 = vmatprep.subr.bf16.mxu0 0
      %2018 = vmatpush2.bf16.msra.mxu0 0
      %2019 = vmatprep.subr.bf16.mxu0 0
      %2020 = vmatpush2.bf16.msra.mxu0 0
      %2021 = vmatprep.subr.bf16.mxu0 0
      %2022 = vmatpush2.bf16.msra.mxu0 0
      %2023 = vmatprep.subr.bf16.mxu0 0
      %2024 = vmatpush2.bf16.msra.mxu0 0
      %2025 = vmatprep.subr.bf16.mxu0 0
      %2026 = vmatpush2.bf16.msra.mxu0 0
      %2027 = vmatprep.subr.bf16.mxu0 0
      %2028 = vmatpush2.bf16.msra.mxu0 0
      %2029 = vmatprep.mubr.bf16.mxu0 0
      %2030 = vmatmul.mubr.bf16.gmra.mxu0 %v1986
      %v2031 = vpop.f32.mrf.mxu0
      %v2032 = vadd.f32 0.0, %v2031
      %v2033 = vpop.f32.mrf.mxu0
      %v2034 = vpop.f32.mrf.mxu0
      %v2035 = vadd.f32 0.0, %v2034
      %v2036 = vpop.f32.mrf.mxu0
      %2037 = vmatprep.mubr.bf16.mxu0 0
      %2038 = vmatmul.mubr.bf16.gmra.mxu0 %v1989
      %v2039 = vpop.f32.mrf.mxu0
      %v2040 = vadd.f32 0.0, %v2039
      %v2041 = vpop.f32.mrf.mxu0
      %v2042 = vpop.f32.mrf.mxu0
      %v2043 = vadd.f32 0.0, %v2042
      %v2044 = vpop.f32.mrf.mxu0
      %2045 = vmatprep.mubr.bf16.mxu0 0
      %2046 = vmatmul.mubr.bf16.gmra.mxu0 %v1992
      %v2047 = vpop.f32.mrf.mxu0
      %v2048 = vadd.f32 0.0, %v2047
      %v2049 = vpop.f32.mrf.mxu0
      %v2050 = vpop.f32.mrf.mxu0
      %v2051 = vadd.f32 0.0, %v2050
      %v2052 = vpop.f32.mrf.mxu0
      %2053 = vmatprep.mubr.bf16.mxu0 0
      %2054 = vmatmul.mubr.bf16.gmra.mxu0 %v1995
      %v2055 = vpop.f32.mrf.mxu0
      %v2056 = vadd.f32 0.0, %v2055
      %v2057 = vpop.f32.mrf.mxu0
      %v2058 = vpop.f32.mrf.mxu0
      %v2059 = vadd.f32 0.0, %v2058
      %v2060 = vpop.f32.mrf.mxu0
      %2061 = vdwg.mxu0
      %v2062 = vpack.c.bf16 %v1946, %v1943
      %v2063 = vpack.c.bf16 %v1954, %v1951
      %v2064 = vpack.c.bf16 %v1962, %v1959
      %v2065 = vpack.c.bf16 %v1970, %v1967
      %v2066 = vpack.c.bf16 %v2035, %v2032
      %v2067 = vpack.c.bf16 %v2043, %v2040
      %v2068 = vpack.c.bf16 %v2051, %v2048
      %v2069 = vpack.c.bf16 %v2059, %v2056
      %2070 = vrot.lane.b32.xlu0 %v908, 112
      %v2071 = vpop.permute.xlu0 %2070
      %2072 = vrot.lane.b32.xlu0 %v909, 112
      %v2073 = vpop.permute.xlu0 %2072
      %2074 = vrot.lane.b32.xlu0 %v910, 112
      %v2075 = vpop.permute.xlu0 %2074
      %2076 = vrot.lane.b32.xlu0 %v911, 112
      %v2077 = vpop.permute.xlu0 %2076
      %2078 = vrot.lane.b32.xlu0 %v908, 80
      %v2079 = vpop.permute.xlu0 %2078
      %2080 = vrot.lane.b32.xlu0 %v909, 80
      %v2081 = vpop.permute.xlu0 %2080
      %2082 = vrot.lane.b32.xlu0 %v910, 80
      %v2083 = vpop.permute.xlu0 %2082
      %2084 = vrot.lane.b32.xlu0 %v911, 80
      %v2085 = vpop.permute.xlu0 %2084
      %v2087 = vsel %vm928, %v2071, 0
      %v2090 = vsel %vm928, %v2073, 0
      %v2093 = vsel %vm928, %v2075, 0
      %v2096 = vsel %vm928, %v2077, 0
      %v2099 = vsel %vm928, %v2079, 0
      %v2102 = vsel %vm928, %v2081, 0
      %v2105 = vsel %vm928, %v2083, 0
      %v2108 = vsel %vm928, %v2085, 0
      %2110 = vmatprep.subr.bf16.mxu0 0
      %2111 = vmatpush1.bf16.xpose.msra.mxu0 0
      %2112 = vmatprep.subr.bf16.mxu0 0
      %2113 = vmatpush1.bf16.xpose.msra.mxu0 0
      %2114 = vmatprep.subr.bf16.mxu0 0
      %2115 = vmatpush1.bf16.xpose.msra.mxu0 0
      %2116 = vmatprep.subr.bf16.mxu0 0
      %2117 = vmatpush1.bf16.xpose.msra.mxu0 0
      %2118 = vmatprep.subr.bf16.mxu0 0
      %2119 = vmatpush1.bf16.xpose.msra.mxu0 %v2108
      %2120 = vmatprep.subr.bf16.mxu0 0
      %2121 = vmatpush1.bf16.xpose.msra.mxu0 %v2105
      %2122 = vmatprep.subr.bf16.mxu0 0
      %2123 = vmatpush1.bf16.xpose.msra.mxu0 %v2102
      %2124 = vmatprep.subr.bf16.mxu0 0
      %2125 = vmatpush1.bf16.xpose.msra.mxu0 %v2099
      %2126 = vmatprep.subr.bf16.mxu0 0
      %2127 = vmatpush2.bf16.xpose.msra.mxu0 0
      %2128 = vmatprep.subr.bf16.mxu0 0
      %2129 = vmatpush2.bf16.xpose.msra.mxu0 0
      %2130 = vmatprep.subr.bf16.mxu0 0
      %2131 = vmatpush2.bf16.xpose.msra.mxu0 0
      %2132 = vmatprep.subr.bf16.mxu0 0
      %2133 = vmatpush2.bf16.xpose.msra.mxu0 0
      %2134 = vmatprep.subr.bf16.mxu0 0
      %2135 = vmatpush2.bf16.xpose.msra.mxu0 0
      %2136 = vmatprep.subr.bf16.mxu0 0
      %2137 = vmatpush2.bf16.xpose.msra.mxu0 0
      %2138 = vmatprep.subr.bf16.mxu0 0
      %2139 = vmatpush2.bf16.xpose.msra.mxu0 0
      %2140 = vmatprep.subr.bf16.mxu0 0
      %2141 = vmatpush2.bf16.xpose.msra.mxu0 0
      %2142 = vmatprep.mubr.bf16.mxu0 0
      %2143 = vmatmul.mubr.bf16.gmra.mxu0 %v2087
      %v2144 = vpop.f32.mrf.mxu0
      %v2145 = vadd.f32 0.0, %v2144
      %v2146 = vpop.f32.mrf.mxu0
      %v2147 = vpop.f32.mrf.mxu0
      %v2148 = vadd.f32 0.0, %v2147
      %v2149 = vpop.f32.mrf.mxu0
      %2150 = vmatprep.mubr.bf16.mxu0 0
      %2151 = vmatmul.mubr.bf16.gmra.mxu0 %v2090
      %v2152 = vpop.f32.mrf.mxu0
      %v2153 = vadd.f32 0.0, %v2152
      %v2154 = vpop.f32.mrf.mxu0
      %v2155 = vpop.f32.mrf.mxu0
      %v2156 = vadd.f32 0.0, %v2155
      %v2157 = vpop.f32.mrf.mxu0
      %2158 = vmatprep.mubr.bf16.mxu0 0
      %2159 = vmatmul.mubr.bf16.gmra.mxu0 %v2093
      %v2160 = vpop.f32.mrf.mxu0
      %v2161 = vadd.f32 0.0, %v2160
      %v2162 = vpop.f32.mrf.mxu0
      %v2163 = vpop.f32.mrf.mxu0
      %v2164 = vadd.f32 0.0, %v2163
      %v2165 = vpop.f32.mrf.mxu0
      %2166 = vmatprep.mubr.bf16.mxu0 0
      %2167 = vmatmul.mubr.bf16.gmra.mxu0 %v2096
      %v2168 = vpop.f32.mrf.mxu0
      %v2169 = vadd.f32 0.0, %v2168
      %v2170 = vpop.f32.mrf.mxu0
      %v2171 = vpop.f32.mrf.mxu0
      %v2172 = vadd.f32 0.0, %v2171
      %v2173 = vpop.f32.mrf.mxu0
      %2174 = vdwg.mxu0
      %2175 = vrot.lane.b32.xlu0 %v912, 112
      %v2176 = vpop.permute.xlu0 %2175
      %2177 = vrot.lane.b32.xlu0 %v913, 112
      %v2178 = vpop.permute.xlu0 %2177
      %2179 = vrot.lane.b32.xlu0 %v914, 112
      %v2180 = vpop.permute.xlu0 %2179
      %2181 = vrot.lane.b32.xlu0 %v915, 112
      %v2182 = vpop.permute.xlu0 %2181
      %2183 = vrot.lane.b32.xlu0 %v912, 80
      %v2184 = vpop.permute.xlu0 %2183
      %2185 = vrot.lane.b32.xlu0 %v913, 80
      %v2186 = vpop.permute.xlu0 %2185
      %2187 = vrot.lane.b32.xlu0 %v914, 80
      %v2188 = vpop.permute.xlu0 %2187
      %2189 = vrot.lane.b32.xlu0 %v915, 80
      %v2190 = vpop.permute.xlu0 %2189
      %v2192 = vsel %vm928, %v2176, 0
      %v2195 = vsel %vm928, %v2178, 0
      %v2198 = vsel %vm928, %v2180, 0
      %v2201 = vsel %vm928, %v2182, 0
      %v2204 = vsel %vm928, %v2184, 0
      %v2207 = vsel %vm928, %v2186, 0
      %v2210 = vsel %vm928, %v2188, 0
      %v2213 = vsel %vm928, %v2190, 0
      %2215 = vmatprep.subr.bf16.mxu0 0
      %2216 = vmatpush1.bf16.xpose.msra.mxu0 0
      %2217 = vmatprep.subr.bf16.mxu0 0
      %2218 = vmatpush1.bf16.xpose.msra.mxu0 0
      %2219 = vmatprep.subr.bf16.mxu0 0
      %2220 = vmatpush1.bf16.xpose.msra.mxu0 0
      %2221 = vmatprep.subr.bf16.mxu0 0
      %2222 = vmatpush1.bf16.xpose.msra.mxu0 0
      %2223 = vmatprep.subr.bf16.mxu0 0
      %2224 = vmatpush1.bf16.xpose.msra.mxu0 %v2213
      %2225 = vmatprep.subr.bf16.mxu0 0
      %2226 = vmatpush1.bf16.xpose.msra.mxu0 %v2210
      %2227 = vmatprep.subr.bf16.mxu0 0
      %2228 = vmatpush1.bf16.xpose.msra.mxu0 %v2207
      %2229 = vmatprep.subr.bf16.mxu0 0
      %2230 = vmatpush1.bf16.xpose.msra.mxu0 %v2204
      %2231 = vmatprep.subr.bf16.mxu0 0
      %2232 = vmatpush2.bf16.xpose.msra.mxu0 0
      %2233 = vmatprep.subr.bf16.mxu0 0
      %2234 = vmatpush2.bf16.xpose.msra.mxu0 0
      %2235 = vmatprep.subr.bf16.mxu0 0
      %2236 = vmatpush2.bf16.xpose.msra.mxu0 0
      %2237 = vmatprep.subr.bf16.mxu0 0
      %2238 = vmatpush2.bf16.xpose.msra.mxu0 0
      %2239 = vmatprep.subr.bf16.mxu0 0
      %2240 = vmatpush2.bf16.xpose.msra.mxu0 0
      %2241 = vmatprep.subr.bf16.mxu0 0
      %2242 = vmatpush2.bf16.xpose.msra.mxu0 0
      %2243 = vmatprep.subr.bf16.mxu0 0
      %2244 = vmatpush2.bf16.xpose.msra.mxu0 0
      %2245 = vmatprep.subr.bf16.mxu0 0
      %2246 = vmatpush2.bf16.xpose.msra.mxu0 0
      %2247 = vmatprep.mubr.bf16.mxu0 0
      %2248 = vmatmul.mubr.bf16.gmra.mxu0 %v2192
      %v2249 = vpop.f32.mrf.mxu0
      %v2250 = vadd.f32 0.0, %v2249
      %v2251 = vpop.f32.mrf.mxu0
      %v2252 = vpop.f32.mrf.mxu0
      %v2253 = vadd.f32 0.0, %v2252
      %v2254 = vpop.f32.mrf.mxu0
      %2255 = vmatprep.mubr.bf16.mxu0 0
      %2256 = vmatmul.mubr.bf16.gmra.mxu0 %v2195
      %v2257 = vpop.f32.mrf.mxu0
      %v2258 = vadd.f32 0.0, %v2257
      %v2259 = vpop.f32.mrf.mxu0
      %v2260 = vpop.f32.mrf.mxu0
      %v2261 = vadd.f32 0.0, %v2260
      %v2262 = vpop.f32.mrf.mxu0
      %2263 = vmatprep.mubr.bf16.mxu0 0
      %2264 = vmatmul.mubr.bf16.gmra.mxu0 %v2198
      %v2265 = vpop.f32.mrf.mxu0
      %v2266 = vadd.f32 0.0, %v2265
      %v2267 = vpop.f32.mrf.mxu0
      %v2268 = vpop.f32.mrf.mxu0
      %v2269 = vadd.f32 0.0, %v2268
      %v2270 = vpop.f32.mrf.mxu0
      %2271 = vmatprep.mubr.bf16.mxu0 0
      %2272 = vmatmul.mubr.bf16.gmra.mxu0 %v2201
      %v2273 = vpop.f32.mrf.mxu0
      %v2274 = vadd.f32 0.0, %v2273
      %v2275 = vpop.f32.mrf.mxu0
      %v2276 = vpop.f32.mrf.mxu0
      %v2277 = vadd.f32 0.0, %v2276
      %v2278 = vpop.f32.mrf.mxu0
      %2279 = vdwg.mxu0
      %v2280 = vsel %vm1119, %v2145, -inf
      %2281 = vmax.xlane.f32.xlu0 %v2280
      %v2282 = vpop.xlane.xlu0 %2281
      %v2283 = vsel %vm1119, %v2148, -inf
      %2284 = vmax.xlane.f32.xlu0 %v2283
      %v2285 = vpop.xlane.xlu0 %2284
      %v2286 = vsel %vm1119, %v2153, -inf
      %2287 = vmax.xlane.f32.xlu0 %v2286
      %v2288 = vpop.xlane.xlu0 %2287
      %v2289 = vsel %vm1119, %v2156, -inf
      %2290 = vmax.xlane.f32.xlu0 %v2289
      %v2291 = vpop.xlane.xlu0 %2290
      %v2292 = vsel %vm1119, %v2161, -inf
      %2293 = vmax.xlane.f32.xlu0 %v2292
      %v2294 = vpop.xlane.xlu0 %2293
      %v2295 = vsel %vm1119, %v2164, -inf
      %2296 = vmax.xlane.f32.xlu0 %v2295
      %v2297 = vpop.xlane.xlu0 %2296
      %v2298 = vsel %vm1119, %v2169, -inf
      %2299 = vmax.xlane.f32.xlu0 %v2298
      %v2300 = vpop.xlane.xlu0 %2299
      %v2301 = vsel %vm1119, %v2172, -inf
      %2302 = vmax.xlane.f32.xlu0 %v2301
      %v2303 = vpop.xlane.xlu0 %2302
      %v2304 = vsel %vm1119, %v2250, -inf
      %2305 = vmax.xlane.f32.xlu0 %v2304
      %v2306 = vpop.xlane.xlu0 %2305
      %v2307 = vsel %vm1119, %v2253, -inf
      %2308 = vmax.xlane.f32.xlu0 %v2307
      %v2309 = vpop.xlane.xlu0 %2308
      %v2310 = vsel %vm1119, %v2258, -inf
      %2311 = vmax.xlane.f32.xlu0 %v2310
      %v2312 = vpop.xlane.xlu0 %2311
      %v2313 = vsel %vm1119, %v2261, -inf
      %2314 = vmax.xlane.f32.xlu0 %v2313
      %v2315 = vpop.xlane.xlu0 %2314
      %v2316 = vsel %vm1119, %v2266, -inf
      %2317 = vmax.xlane.f32.xlu0 %v2316
      %v2318 = vpop.xlane.xlu0 %2317
      %v2319 = vsel %vm1119, %v2269, -inf
      %2320 = vmax.xlane.f32.xlu0 %v2319
      %v2321 = vpop.xlane.xlu0 %2320
      %v2322 = vsel %vm1119, %v2274, -inf
      %2323 = vmax.xlane.f32.xlu0 %v2322
      %v2324 = vpop.xlane.xlu0 %2323
      %v2325 = vsel %vm1119, %v2277, -inf
      %2326 = vmax.xlane.f32.xlu0 %v2325
      %v2327 = vpop.xlane.xlu0 %2326
      %v2328 = vsub.f32 %v2145, %v2282
      %v2329 = vsub.f32 %v2148, %v2285
      %v2330 = vsub.f32 %v2153, %v2288
      %v2331 = vsub.f32 %v2156, %v2291
      %v2332 = vsub.f32 %v2161, %v2294
      %v2333 = vsub.f32 %v2164, %v2297
      %v2334 = vsub.f32 %v2169, %v2300
      %v2335 = vsub.f32 %v2172, %v2303
      %v2336 = vsub.f32 %v2250, %v2306
      %v2337 = vsub.f32 %v2253, %v2309
      %v2338 = vsub.f32 %v2258, %v2312
      %v2339 = vsub.f32 %v2261, %v2315
      %v2340 = vsub.f32 %v2266, %v2318
      %v2341 = vsub.f32 %v2269, %v2321
      %v2342 = vsub.f32 %v2274, %v2324
      %v2343 = vsub.f32 %v2277, %v2327
      %v2344 = vmul.f32 %v2328, 1.442695
      %v2345 = vpow.pop %v2344
      %v2346 = vmul.f32 %v2329, 1.442695
      %v2347 = vpow.pop %v2346
      %v2348 = vmul.f32 %v2330, 1.442695
      %v2349 = vpow.pop %v2348
      %v2350 = vmul.f32 %v2331, 1.442695
      %v2351 = vpow.pop %v2350
      %v2352 = vmul.f32 %v2332, 1.442695
      %v2353 = vpow.pop %v2352
      %v2354 = vmul.f32 %v2333, 1.442695
      %v2355 = vpow.pop %v2354
      %v2356 = vmul.f32 %v2334, 1.442695
      %v2357 = vpow.pop %v2356
      %v2358 = vmul.f32 %v2335, 1.442695
      %v2359 = vpow.pop %v2358
      %v2360 = vmul.f32 %v2336, 1.442695
      %v2361 = vpow.pop %v2360
      %v2362 = vmul.f32 %v2337, 1.442695
      %v2363 = vpow.pop %v2362
      %v2364 = vmul.f32 %v2338, 1.442695
      %v2365 = vpow.pop %v2364
      %v2366 = vmul.f32 %v2339, 1.442695
      %v2367 = vpow.pop %v2366
      %v2368 = vmul.f32 %v2340, 1.442695
      %v2369 = vpow.pop %v2368
      %v2370 = vmul.f32 %v2341, 1.442695
      %v2371 = vpow.pop %v2370
      %v2372 = vmul.f32 %v2342, 1.442695
      %v2373 = vpow.pop %v2372
      %v2374 = vmul.f32 %v2343, 1.442695
      %v2375 = vpow.pop %v2374
      %v2376 = vsel %vm1119, %v2345, 0.0
      %2377 = vadd.xlane.f32.xlu0 %v2376
      %v2378 = vpop.xlane.xlu0 %2377
      %v2379 = vsel %vm1119, %v2347, 0.0
      %2380 = vadd.xlane.f32.xlu0 %v2379
      %v2381 = vpop.xlane.xlu0 %2380
      %v2382 = vsel %vm1119, %v2349, 0.0
      %2383 = vadd.xlane.f32.xlu0 %v2382
      %v2384 = vpop.xlane.xlu0 %2383
      %v2385 = vsel %vm1119, %v2351, 0.0
      %2386 = vadd.xlane.f32.xlu0 %v2385
      %v2387 = vpop.xlane.xlu0 %2386
      %v2388 = vsel %vm1119, %v2353, 0.0
      %2389 = vadd.xlane.f32.xlu0 %v2388
      %v2390 = vpop.xlane.xlu0 %2389
      %v2391 = vsel %vm1119, %v2355, 0.0
      %2392 = vadd.xlane.f32.xlu0 %v2391
      %v2393 = vpop.xlane.xlu0 %2392
      %v2394 = vsel %vm1119, %v2357, 0.0
      %2395 = vadd.xlane.f32.xlu0 %v2394
      %v2396 = vpop.xlane.xlu0 %2395
      %v2397 = vsel %vm1119, %v2359, 0.0
      %2398 = vadd.xlane.f32.xlu0 %v2397
      %v2399 = vpop.xlane.xlu0 %2398
      %v2400 = vsel %vm1119, %v2361, 0.0
      %2401 = vadd.xlane.f32.xlu0 %v2400
      %v2402 = vpop.xlane.xlu0 %2401
      %v2403 = vsel %vm1119, %v2363, 0.0
      %2404 = vadd.xlane.f32.xlu0 %v2403
      %v2405 = vpop.xlane.xlu0 %2404
      %v2406 = vsel %vm1119, %v2365, 0.0
      %2407 = vadd.xlane.f32.xlu0 %v2406
      %v2408 = vpop.xlane.xlu0 %2407
      %v2409 = vsel %vm1119, %v2367, 0.0
      %2410 = vadd.xlane.f32.xlu0 %v2409
      %v2411 = vpop.xlane.xlu0 %2410
      %v2412 = vsel %vm1119, %v2369, 0.0
      %2413 = vadd.xlane.f32.xlu0 %v2412
      %v2414 = vpop.xlane.xlu0 %2413
      %v2415 = vsel %vm1119, %v2371, 0.0
      %2416 = vadd.xlane.f32.xlu0 %v2415
      %v2417 = vpop.xlane.xlu0 %2416
      %v2418 = vsel %vm1119, %v2373, 0.0
      %2419 = vadd.xlane.f32.xlu0 %v2418
      %v2420 = vpop.xlane.xlu0 %2419
      %v2421 = vsel %vm1119, %v2375, 0.0
      %2422 = vadd.xlane.f32.xlu0 %v2421
      %v2423 = vpop.xlane.xlu0 %2422
      %v2424 = vrcp.pop %v2378
      %v2425 = vrcp.pop %v2381
      %v2426 = vrcp.pop %v2384
      %v2427 = vrcp.pop %v2387
      %v2428 = vrcp.pop %v2390
      %v2429 = vrcp.pop %v2393
      %v2430 = vrcp.pop %v2396
      %v2431 = vrcp.pop %v2399
      %v2432 = vrcp.pop %v2402
      %v2433 = vrcp.pop %v2405
      %v2434 = vrcp.pop %v2408
      %v2435 = vrcp.pop %v2411
      %v2436 = vrcp.pop %v2414
      %v2437 = vrcp.pop %v2417
      %v2438 = vrcp.pop %v2420
      %v2439 = vrcp.pop %v2423
      %v2440 = vmul.f32 %v2345, %v2424
      %v2441 = vmul.f32 %v2347, %v2425
      %v2442 = vmul.f32 %v2349, %v2426
      %v2443 = vmul.f32 %v2351, %v2427
      %v2444 = vmul.f32 %v2353, %v2428
      %v2445 = vmul.f32 %v2355, %v2429
      %v2446 = vmul.f32 %v2357, %v2430
      %v2447 = vmul.f32 %v2359, %v2431
      %v2448 = vmul.f32 %v2361, %v2432
      %v2449 = vmul.f32 %v2363, %v2433
      %v2450 = vmul.f32 %v2365, %v2434
      %v2451 = vmul.f32 %v2367, %v2435
      %v2452 = vmul.f32 %v2369, %v2436
      %v2453 = vmul.f32 %v2371, %v2437
      %v2454 = vmul.f32 %v2373, %v2438
      %v2455 = vmul.f32 %v2375, %v2439
      %v2456 = vpack.c.bf16 %v2441, %v2440
      %v2457 = vpack.c.bf16 %v2443, %v2442
      %v2458 = vpack.c.bf16 %v2445, %v2444
      %v2459 = vpack.c.bf16 %v2447, %v2446
      %v2460 = vpack.c.bf16 %v2449, %v2448
      %v2461 = vpack.c.bf16 %v2451, %v2450
      %v2462 = vpack.c.bf16 %v2453, %v2452
      %v2463 = vpack.c.bf16 %v2455, %v2454
      %2464 = vrot.lane.b32.xlu0 %v908, 48
      %v2465 = vpop.permute.xlu0 %2464
      %2466 = vrot.lane.b32.xlu0 %v909, 48
      %v2467 = vpop.permute.xlu0 %2466
      %2468 = vrot.lane.b32.xlu0 %v910, 48
      %v2469 = vpop.permute.xlu0 %2468
      %2470 = vrot.lane.b32.xlu0 %v911, 48
      %v2471 = vpop.permute.xlu0 %2470
      %v2477 = vsel %vm1119, %v2456, 0
      %v2480 = vsel %vm1119, %v2457, 0
      %v2483 = vsel %vm1119, %v2458, 0
      %v2486 = vsel %vm1119, %v2459, 0
      %2488 = vmatprep.subr.bf16.mxu0 0
      %2489 = vmatpush1.bf16.msra.mxu0 0
      %2490 = vmatprep.subr.bf16.mxu0 0
      %2491 = vmatpush1.bf16.msra.mxu0 0
      %2492 = vmatprep.subr.bf16.mxu0 0
      %2493 = vmatpush1.bf16.msra.mxu0 0
      %2494 = vmatprep.subr.bf16.mxu0 0
      %2495 = vmatpush1.bf16.msra.mxu0 0
      %2496 = vmatprep.subr.bf16.mxu0 0
      %2497 = vmatpush1.bf16.msra.mxu0 %v2471
      %2498 = vmatprep.subr.bf16.mxu0 0
      %2499 = vmatpush1.bf16.msra.mxu0 %v2469
      %2500 = vmatprep.subr.bf16.mxu0 0
      %2501 = vmatpush1.bf16.msra.mxu0 %v2467
      %2502 = vmatprep.subr.bf16.mxu0 0
      %2503 = vmatpush1.bf16.msra.mxu0 %v2465
      %2504 = vmatprep.subr.bf16.mxu0 0
      %2505 = vmatpush2.bf16.msra.mxu0 0
      %2506 = vmatprep.subr.bf16.mxu0 0
      %2507 = vmatpush2.bf16.msra.mxu0 0
      %2508 = vmatprep.subr.bf16.mxu0 0
      %2509 = vmatpush2.bf16.msra.mxu0 0
      %2510 = vmatprep.subr.bf16.mxu0 0
      %2511 = vmatpush2.bf16.msra.mxu0 0
      %2512 = vmatprep.subr.bf16.mxu0 0
      %2513 = vmatpush2.bf16.msra.mxu0 0
      %2514 = vmatprep.subr.bf16.mxu0 0
      %2515 = vmatpush2.bf16.msra.mxu0 0
      %2516 = vmatprep.subr.bf16.mxu0 0
      %2517 = vmatpush2.bf16.msra.mxu0 0
      %2518 = vmatprep.subr.bf16.mxu0 0
      %2519 = vmatpush2.bf16.msra.mxu0 0
      %2520 = vmatprep.mubr.bf16.mxu0 0
      %2521 = vmatmul.mubr.bf16.gmra.mxu0 %v2477
      %v2522 = vpop.f32.mrf.mxu0
      %v2523 = vadd.f32 0.0, %v2522
      %v2524 = vpop.f32.mrf.mxu0
      %v2525 = vpop.f32.mrf.mxu0
      %v2526 = vadd.f32 0.0, %v2525
      %v2527 = vpop.f32.mrf.mxu0
      %2528 = vmatprep.mubr.bf16.mxu0 0
      %2529 = vmatmul.mubr.bf16.gmra.mxu0 %v2480
      %v2530 = vpop.f32.mrf.mxu0
      %v2531 = vadd.f32 0.0, %v2530
      %v2532 = vpop.f32.mrf.mxu0
      %v2533 = vpop.f32.mrf.mxu0
      %v2534 = vadd.f32 0.0, %v2533
      %v2535 = vpop.f32.mrf.mxu0
      %2536 = vmatprep.mubr.bf16.mxu0 0
      %2537 = vmatmul.mubr.bf16.gmra.mxu0 %v2483
      %v2538 = vpop.f32.mrf.mxu0
      %v2539 = vadd.f32 0.0, %v2538
      %v2540 = vpop.f32.mrf.mxu0
      %v2541 = vpop.f32.mrf.mxu0
      %v2542 = vadd.f32 0.0, %v2541
      %v2543 = vpop.f32.mrf.mxu0
      %2544 = vmatprep.mubr.bf16.mxu0 0
      %2545 = vmatmul.mubr.bf16.gmra.mxu0 %v2486
      %v2546 = vpop.f32.mrf.mxu0
      %v2547 = vadd.f32 0.0, %v2546
      %v2548 = vpop.f32.mrf.mxu0
      %v2549 = vpop.f32.mrf.mxu0
      %v2550 = vadd.f32 0.0, %v2549
      %v2551 = vpop.f32.mrf.mxu0
      %2552 = vdwg.mxu0
      %2553 = vrot.lane.b32.xlu0 %v912, 48
      %v2554 = vpop.permute.xlu0 %2553
      %2555 = vrot.lane.b32.xlu0 %v913, 48
      %v2556 = vpop.permute.xlu0 %2555
      %2557 = vrot.lane.b32.xlu0 %v914, 48
      %v2558 = vpop.permute.xlu0 %2557
      %2559 = vrot.lane.b32.xlu0 %v915, 48
      %v2560 = vpop.permute.xlu0 %2559
      %v2566 = vsel %vm1119, %v2460, 0
      %v2569 = vsel %vm1119, %v2461, 0
      %v2572 = vsel %vm1119, %v2462, 0
      %v2575 = vsel %vm1119, %v2463, 0
      %2577 = vmatprep.subr.bf16.mxu0 0
      %2578 = vmatpush1.bf16.msra.mxu0 0
      %2579 = vmatprep.subr.bf16.mxu0 0
      %2580 = vmatpush1.bf16.msra.mxu0 0
      %2581 = vmatprep.subr.bf16.mxu0 0
      %2582 = vmatpush1.bf16.msra.mxu0 0
      %2583 = vmatprep.subr.bf16.mxu0 0
      %2584 = vmatpush1.bf16.msra.mxu0 0
      %2585 = vmatprep.subr.bf16.mxu0 0
      %2586 = vmatpush1.bf16.msra.mxu0 %v2560
      %2587 = vmatprep.subr.bf16.mxu0 0
      %2588 = vmatpush1.bf16.msra.mxu0 %v2558
      %2589 = vmatprep.subr.bf16.mxu0 0
      %2590 = vmatpush1.bf16.msra.mxu0 %v2556
      %2591 = vmatprep.subr.bf16.mxu0 0
      %2592 = vmatpush1.bf16.msra.mxu0 %v2554
      %2593 = vmatprep.subr.bf16.mxu0 0
      %2594 = vmatpush2.bf16.msra.mxu0 0
      %2595 = vmatprep.subr.bf16.mxu0 0
      %2596 = vmatpush2.bf16.msra.mxu0 0
      %2597 = vmatprep.subr.bf16.mxu0 0
      %2598 = vmatpush2.bf16.msra.mxu0 0
      %2599 = vmatprep.subr.bf16.mxu0 0
      %2600 = vmatpush2.bf16.msra.mxu0 0
      %2601 = vmatprep.subr.bf16.mxu0 0
      %2602 = vmatpush2.bf16.msra.mxu0 0
      %2603 = vmatprep.subr.bf16.mxu0 0
      %2604 = vmatpush2.bf16.msra.mxu0 0
      %2605 = vmatprep.subr.bf16.mxu0 0
      %2606 = vmatpush2.bf16.msra.mxu0 0
      %2607 = vmatprep.subr.bf16.mxu0 0
      %2608 = vmatpush2.bf16.msra.mxu0 0
      %2609 = vmatprep.mubr.bf16.mxu0 0
      %2610 = vmatmul.mubr.bf16.gmra.mxu0 %v2566
      %v2611 = vpop.f32.mrf.mxu0
      %v2612 = vadd.f32 0.0, %v2611
      %v2613 = vpop.f32.mrf.mxu0
      %v2614 = vpop.f32.mrf.mxu0
      %v2615 = vadd.f32 0.0, %v2614
      %v2616 = vpop.f32.mrf.mxu0
      %2617 = vmatprep.mubr.bf16.mxu0 0
      %2618 = vmatmul.mubr.bf16.gmra.mxu0 %v2569
      %v2619 = vpop.f32.mrf.mxu0
      %v2620 = vadd.f32 0.0, %v2619
      %v2621 = vpop.f32.mrf.mxu0
      %v2622 = vpop.f32.mrf.mxu0
      %v2623 = vadd.f32 0.0, %v2622
      %v2624 = vpop.f32.mrf.mxu0
      %2625 = vmatprep.mubr.bf16.mxu0 0
      %2626 = vmatmul.mubr.bf16.gmra.mxu0 %v2572
      %v2627 = vpop.f32.mrf.mxu0
      %v2628 = vadd.f32 0.0, %v2627
      %v2629 = vpop.f32.mrf.mxu0
      %v2630 = vpop.f32.mrf.mxu0
      %v2631 = vadd.f32 0.0, %v2630
      %v2632 = vpop.f32.mrf.mxu0
      %2633 = vmatprep.mubr.bf16.mxu0 0
      %2634 = vmatmul.mubr.bf16.gmra.mxu0 %v2575
      %v2635 = vpop.f32.mrf.mxu0
      %v2636 = vadd.f32 0.0, %v2635
      %v2637 = vpop.f32.mrf.mxu0
      %v2638 = vpop.f32.mrf.mxu0
      %v2639 = vadd.f32 0.0, %v2638
      %v2640 = vpop.f32.mrf.mxu0
      %2641 = vdwg.mxu0
      %v2642 = vpack.c.bf16 %v2526, %v2523
      %v2643 = vpack.c.bf16 %v2534, %v2531
      %v2644 = vpack.c.bf16 %v2542, %v2539
      %v2645 = vpack.c.bf16 %v2550, %v2547
      %v2646 = vpack.c.bf16 %v2615, %v2612
      %v2647 = vpack.c.bf16 %v2623, %v2620
      %v2648 = vpack.c.bf16 %v2631, %v2628
      %v2649 = vpack.c.bf16 %v2639, %v2636
      %2650 = vrot.lane.b32.xlu0 %v908, 104
      %v2651 = vpop.permute.xlu0 %2650
      %2652 = vrot.lane.b32.xlu0 %v909, 104
      %v2653 = vpop.permute.xlu0 %2652
      %2654 = vrot.lane.b32.xlu0 %v910, 104
      %v2655 = vpop.permute.xlu0 %2654
      %2656 = vrot.lane.b32.xlu0 %v911, 104
      %v2657 = vpop.permute.xlu0 %2656
      %2658 = vrot.lane.b32.xlu0 %v908, 72
      %v2659 = vpop.permute.xlu0 %2658
      %2660 = vrot.lane.b32.xlu0 %v909, 72
      %v2661 = vpop.permute.xlu0 %2660
      %2662 = vrot.lane.b32.xlu0 %v910, 72
      %v2663 = vpop.permute.xlu0 %2662
      %2664 = vrot.lane.b32.xlu0 %v911, 72
      %v2665 = vpop.permute.xlu0 %2664
      %v2667 = vsel %vm928, %v2651, 0
      %v2670 = vsel %vm928, %v2653, 0
      %v2673 = vsel %vm928, %v2655, 0
      %v2676 = vsel %vm928, %v2657, 0
      %v2679 = vsel %vm928, %v2659, 0
      %v2682 = vsel %vm928, %v2661, 0
      %v2685 = vsel %vm928, %v2663, 0
      %v2688 = vsel %vm928, %v2665, 0
      %2690 = vmatprep.subr.bf16.mxu0 0
      %2691 = vmatpush1.bf16.xpose.msra.mxu0 0
      %2692 = vmatprep.subr.bf16.mxu0 0
      %2693 = vmatpush1.bf16.xpose.msra.mxu0 0
      %2694 = vmatprep.subr.bf16.mxu0 0
      %2695 = vmatpush1.bf16.xpose.msra.mxu0 0
      %2696 = vmatprep.subr.bf16.mxu0 0
      %2697 = vmatpush1.bf16.xpose.msra.mxu0 0
      %2698 = vmatprep.subr.bf16.mxu0 0
      %2699 = vmatpush1.bf16.xpose.msra.mxu0 %v2688
      %2700 = vmatprep.subr.bf16.mxu0 0
      %2701 = vmatpush1.bf16.xpose.msra.mxu0 %v2685
      %2702 = vmatprep.subr.bf16.mxu0 0
      %2703 = vmatpush1.bf16.xpose.msra.mxu0 %v2682
      %2704 = vmatprep.subr.bf16.mxu0 0
      %2705 = vmatpush1.bf16.xpose.msra.mxu0 %v2679
      %2706 = vmatprep.subr.bf16.mxu0 0
      %2707 = vmatpush2.bf16.xpose.msra.mxu0 0
      %2708 = vmatprep.subr.bf16.mxu0 0
      %2709 = vmatpush2.bf16.xpose.msra.mxu0 0
      %2710 = vmatprep.subr.bf16.mxu0 0
      %2711 = vmatpush2.bf16.xpose.msra.mxu0 0
      %2712 = vmatprep.subr.bf16.mxu0 0
      %2713 = vmatpush2.bf16.xpose.msra.mxu0 0
      %2714 = vmatprep.subr.bf16.mxu0 0
      %2715 = vmatpush2.bf16.xpose.msra.mxu0 0
      %2716 = vmatprep.subr.bf16.mxu0 0
      %2717 = vmatpush2.bf16.xpose.msra.mxu0 0
      %2718 = vmatprep.subr.bf16.mxu0 0
      %2719 = vmatpush2.bf16.xpose.msra.mxu0 0
      %2720 = vmatprep.subr.bf16.mxu0 0
      %2721 = vmatpush2.bf16.xpose.msra.mxu0 0
      %2722 = vmatprep.mubr.bf16.mxu0 0
      %2723 = vmatmul.mubr.bf16.gmra.mxu0 %v2667
      %v2724 = vpop.f32.mrf.mxu0
      %v2725 = vadd.f32 0.0, %v2724
      %v2726 = vpop.f32.mrf.mxu0
      %v2727 = vpop.f32.mrf.mxu0
      %v2728 = vadd.f32 0.0, %v2727
      %v2729 = vpop.f32.mrf.mxu0
      %2730 = vmatprep.mubr.bf16.mxu0 0
      %2731 = vmatmul.mubr.bf16.gmra.mxu0 %v2670
      %v2732 = vpop.f32.mrf.mxu0
      %v2733 = vadd.f32 0.0, %v2732
      %v2734 = vpop.f32.mrf.mxu0
      %v2735 = vpop.f32.mrf.mxu0
      %v2736 = vadd.f32 0.0, %v2735
      %v2737 = vpop.f32.mrf.mxu0
      %2738 = vmatprep.mubr.bf16.mxu0 0
      %2739 = vmatmul.mubr.bf16.gmra.mxu0 %v2673
      %v2740 = vpop.f32.mrf.mxu0
      %v2741 = vadd.f32 0.0, %v2740
      %v2742 = vpop.f32.mrf.mxu0
      %v2743 = vpop.f32.mrf.mxu0
      %v2744 = vadd.f32 0.0, %v2743
      %v2745 = vpop.f32.mrf.mxu0
      %2746 = vmatprep.mubr.bf16.mxu0 0
      %2747 = vmatmul.mubr.bf16.gmra.mxu0 %v2676
      %v2748 = vpop.f32.mrf.mxu0
      %v2749 = vadd.f32 0.0, %v2748
      %v2750 = vpop.f32.mrf.mxu0
      %v2751 = vpop.f32.mrf.mxu0
      %v2752 = vadd.f32 0.0, %v2751
      %v2753 = vpop.f32.mrf.mxu0
      %2754 = vdwg.mxu0
      %2755 = vrot.lane.b32.xlu0 %v912, 104
      %v2756 = vpop.permute.xlu0 %2755
      %2757 = vrot.lane.b32.xlu0 %v913, 104
      %v2758 = vpop.permute.xlu0 %2757
      %2759 = vrot.lane.b32.xlu0 %v914, 104
      %v2760 = vpop.permute.xlu0 %2759
      %2761 = vrot.lane.b32.xlu0 %v915, 104
      %v2762 = vpop.permute.xlu0 %2761
      %2763 = vrot.lane.b32.xlu0 %v912, 72
      %v2764 = vpop.permute.xlu0 %2763
      %2765 = vrot.lane.b32.xlu0 %v913, 72
      %v2766 = vpop.permute.xlu0 %2765
      %2767 = vrot.lane.b32.xlu0 %v914, 72
      %v2768 = vpop.permute.xlu0 %2767
      %2769 = vrot.lane.b32.xlu0 %v915, 72
      %v2770 = vpop.permute.xlu0 %2769
      %v2772 = vsel %vm928, %v2756, 0
      %v2775 = vsel %vm928, %v2758, 0
      %v2778 = vsel %vm928, %v2760, 0
      %v2781 = vsel %vm928, %v2762, 0
      %v2784 = vsel %vm928, %v2764, 0
      %v2787 = vsel %vm928, %v2766, 0
      %v2790 = vsel %vm928, %v2768, 0
      %v2793 = vsel %vm928, %v2770, 0
      %2795 = vmatprep.subr.bf16.mxu0 0
      %2796 = vmatpush1.bf16.xpose.msra.mxu0 0
      %2797 = vmatprep.subr.bf16.mxu0 0
      %2798 = vmatpush1.bf16.xpose.msra.mxu0 0
      %2799 = vmatprep.subr.bf16.mxu0 0
      %2800 = vmatpush1.bf16.xpose.msra.mxu0 0
      %2801 = vmatprep.subr.bf16.mxu0 0
      %2802 = vmatpush1.bf16.xpose.msra.mxu0 0
      %2803 = vmatprep.subr.bf16.mxu0 0
      %2804 = vmatpush1.bf16.xpose.msra.mxu0 %v2793
      %2805 = vmatprep.subr.bf16.mxu0 0
      %2806 = vmatpush1.bf16.xpose.msra.mxu0 %v2790
      %2807 = vmatprep.subr.bf16.mxu0 0
      %2808 = vmatpush1.bf16.xpose.msra.mxu0 %v2787
      %2809 = vmatprep.subr.bf16.mxu0 0
      %2810 = vmatpush1.bf16.xpose.msra.mxu0 %v2784
      %2811 = vmatprep.subr.bf16.mxu0 0
      %2812 = vmatpush2.bf16.xpose.msra.mxu0 0
      %2813 = vmatprep.subr.bf16.mxu0 0
      %2814 = vmatpush2.bf16.xpose.msra.mxu0 0
      %2815 = vmatprep.subr.bf16.mxu0 0
      %2816 = vmatpush2.bf16.xpose.msra.mxu0 0
      %2817 = vmatprep.subr.bf16.mxu0 0
      %2818 = vmatpush2.bf16.xpose.msra.mxu0 0
      %2819 = vmatprep.subr.bf16.mxu0 0
      %2820 = vmatpush2.bf16.xpose.msra.mxu0 0
      %2821 = vmatprep.subr.bf16.mxu0 0
      %2822 = vmatpush2.bf16.xpose.msra.mxu0 0
      %2823 = vmatprep.subr.bf16.mxu0 0
      %2824 = vmatpush2.bf16.xpose.msra.mxu0 0
      %2825 = vmatprep.subr.bf16.mxu0 0
      %2826 = vmatpush2.bf16.xpose.msra.mxu0 0
      %2827 = vmatprep.mubr.bf16.mxu0 0
      %2828 = vmatmul.mubr.bf16.gmra.mxu0 %v2772
      %v2829 = vpop.f32.mrf.mxu0
      %v2830 = vadd.f32 0.0, %v2829
      %v2831 = vpop.f32.mrf.mxu0
      %v2832 = vpop.f32.mrf.mxu0
      %v2833 = vadd.f32 0.0, %v2832
      %v2834 = vpop.f32.mrf.mxu0
      %2835 = vmatprep.mubr.bf16.mxu0 0
      %2836 = vmatmul.mubr.bf16.gmra.mxu0 %v2775
      %v2837 = vpop.f32.mrf.mxu0
      %v2838 = vadd.f32 0.0, %v2837
      %v2839 = vpop.f32.mrf.mxu0
      %v2840 = vpop.f32.mrf.mxu0
      %v2841 = vadd.f32 0.0, %v2840
      %v2842 = vpop.f32.mrf.mxu0
      %2843 = vmatprep.mubr.bf16.mxu0 0
      %2844 = vmatmul.mubr.bf16.gmra.mxu0 %v2778
      %v2845 = vpop.f32.mrf.mxu0
      %v2846 = vadd.f32 0.0, %v2845
      %v2847 = vpop.f32.mrf.mxu0
      %v2848 = vpop.f32.mrf.mxu0
      %v2849 = vadd.f32 0.0, %v2848
      %v2850 = vpop.f32.mrf.mxu0
      %2851 = vmatprep.mubr.bf16.mxu0 0
      %2852 = vmatmul.mubr.bf16.gmra.mxu0 %v2781
      %v2853 = vpop.f32.mrf.mxu0
      %v2854 = vadd.f32 0.0, %v2853
      %v2855 = vpop.f32.mrf.mxu0
      %v2856 = vpop.f32.mrf.mxu0
      %v2857 = vadd.f32 0.0, %v2856
      %v2858 = vpop.f32.mrf.mxu0
      %2859 = vdwg.mxu0
      %v2860 = vsel %vm1119, %v2725, -inf
      %2861 = vmax.xlane.f32.xlu0 %v2860
      %v2862 = vpop.xlane.xlu0 %2861
      %v2863 = vsel %vm1119, %v2728, -inf
      %2864 = vmax.xlane.f32.xlu0 %v2863
      %v2865 = vpop.xlane.xlu0 %2864
      %v2866 = vsel %vm1119, %v2733, -inf
      %2867 = vmax.xlane.f32.xlu0 %v2866
      %v2868 = vpop.xlane.xlu0 %2867
      %v2869 = vsel %vm1119, %v2736, -inf
      %2870 = vmax.xlane.f32.xlu0 %v2869
      %v2871 = vpop.xlane.xlu0 %2870
      %v2872 = vsel %vm1119, %v2741, -inf
      %2873 = vmax.xlane.f32.xlu0 %v2872
      %v2874 = vpop.xlane.xlu0 %2873
      %v2875 = vsel %vm1119, %v2744, -inf
      %2876 = vmax.xlane.f32.xlu0 %v2875
      %v2877 = vpop.xlane.xlu0 %2876
      %v2878 = vsel %vm1119, %v2749, -inf
      %2879 = vmax.xlane.f32.xlu0 %v2878
      %v2880 = vpop.xlane.xlu0 %2879
      %v2881 = vsel %vm1119, %v2752, -inf
      %2882 = vmax.xlane.f32.xlu0 %v2881
      %v2883 = vpop.xlane.xlu0 %2882
      %v2884 = vsel %vm1119, %v2830, -inf
      %2885 = vmax.xlane.f32.xlu0 %v2884
      %v2886 = vpop.xlane.xlu0 %2885
      %v2887 = vsel %vm1119, %v2833, -inf
      %2888 = vmax.xlane.f32.xlu0 %v2887
      %v2889 = vpop.xlane.xlu0 %2888
      %v2890 = vsel %vm1119, %v2838, -inf
      %2891 = vmax.xlane.f32.xlu0 %v2890
      %v2892 = vpop.xlane.xlu0 %2891
      %v2893 = vsel %vm1119, %v2841, -inf
      %2894 = vmax.xlane.f32.xlu0 %v2893
      %v2895 = vpop.xlane.xlu0 %2894
      %v2896 = vsel %vm1119, %v2846, -inf
      %2897 = vmax.xlane.f32.xlu0 %v2896
      %v2898 = vpop.xlane.xlu0 %2897
      %v2899 = vsel %vm1119, %v2849, -inf
      %2900 = vmax.xlane.f32.xlu0 %v2899
      %v2901 = vpop.xlane.xlu0 %2900
      %v2902 = vsel %vm1119, %v2854, -inf
      %2903 = vmax.xlane.f32.xlu0 %v2902
      %v2904 = vpop.xlane.xlu0 %2903
      %v2905 = vsel %vm1119, %v2857, -inf
      %2906 = vmax.xlane.f32.xlu0 %v2905
      %v2907 = vpop.xlane.xlu0 %2906
      %v2908 = vsub.f32 %v2725, %v2862
      %v2909 = vsub.f32 %v2728, %v2865
      %v2910 = vsub.f32 %v2733, %v2868
      %v2911 = vsub.f32 %v2736, %v2871
      %v2912 = vsub.f32 %v2741, %v2874
      %v2913 = vsub.f32 %v2744, %v2877
      %v2914 = vsub.f32 %v2749, %v2880
      %v2915 = vsub.f32 %v2752, %v2883
      %v2916 = vsub.f32 %v2830, %v2886
      %v2917 = vsub.f32 %v2833, %v2889
      %v2918 = vsub.f32 %v2838, %v2892
      %v2919 = vsub.f32 %v2841, %v2895
      %v2920 = vsub.f32 %v2846, %v2898
      %v2921 = vsub.f32 %v2849, %v2901
      %v2922 = vsub.f32 %v2854, %v2904
      %v2923 = vsub.f32 %v2857, %v2907
      %v2924 = vmul.f32 %v2908, 1.442695
      %v2925 = vpow.pop %v2924
      %v2926 = vmul.f32 %v2909, 1.442695
      %v2927 = vpow.pop %v2926
      %v2928 = vmul.f32 %v2910, 1.442695
      %v2929 = vpow.pop %v2928
      %v2930 = vmul.f32 %v2911, 1.442695
      %v2931 = vpow.pop %v2930
      %v2932 = vmul.f32 %v2912, 1.442695
      %v2933 = vpow.pop %v2932
      %v2934 = vmul.f32 %v2913, 1.442695
      %v2935 = vpow.pop %v2934
      %v2936 = vmul.f32 %v2914, 1.442695
      %v2937 = vpow.pop %v2936
      %v2938 = vmul.f32 %v2915, 1.442695
      %v2939 = vpow.pop %v2938
      %v2940 = vmul.f32 %v2916, 1.442695
      %v2941 = vpow.pop %v2940
      %v2942 = vmul.f32 %v2917, 1.442695
      %v2943 = vpow.pop %v2942
      %v2944 = vmul.f32 %v2918, 1.442695
      %v2945 = vpow.pop %v2944
      %v2946 = vmul.f32 %v2919, 1.442695
      %v2947 = vpow.pop %v2946
      %v2948 = vmul.f32 %v2920, 1.442695
      %v2949 = vpow.pop %v2948
      %v2950 = vmul.f32 %v2921, 1.442695
      %v2951 = vpow.pop %v2950
      %v2952 = vmul.f32 %v2922, 1.442695
      %v2953 = vpow.pop %v2952
      %v2954 = vmul.f32 %v2923, 1.442695
      %v2955 = vpow.pop %v2954
      %v2956 = vsel %vm1119, %v2925, 0.0
      %2957 = vadd.xlane.f32.xlu0 %v2956
      %v2958 = vpop.xlane.xlu0 %2957
      %v2959 = vsel %vm1119, %v2927, 0.0
      %2960 = vadd.xlane.f32.xlu0 %v2959
      %v2961 = vpop.xlane.xlu0 %2960
      %v2962 = vsel %vm1119, %v2929, 0.0
      %2963 = vadd.xlane.f32.xlu0 %v2962
      %v2964 = vpop.xlane.xlu0 %2963
      %v2965 = vsel %vm1119, %v2931, 0.0
      %2966 = vadd.xlane.f32.xlu0 %v2965
      %v2967 = vpop.xlane.xlu0 %2966
      %v2968 = vsel %vm1119, %v2933, 0.0
      %2969 = vadd.xlane.f32.xlu0 %v2968
      %v2970 = vpop.xlane.xlu0 %2969
      %v2971 = vsel %vm1119, %v2935, 0.0
      %2972 = vadd.xlane.f32.xlu0 %v2971
      %v2973 = vpop.xlane.xlu0 %2972
      %v2974 = vsel %vm1119, %v2937, 0.0
      %2975 = vadd.xlane.f32.xlu0 %v2974
      %v2976 = vpop.xlane.xlu0 %2975
      %v2977 = vsel %vm1119, %v2939, 0.0
      %2978 = vadd.xlane.f32.xlu0 %v2977
      %v2979 = vpop.xlane.xlu0 %2978
      %v2980 = vsel %vm1119, %v2941, 0.0
      %2981 = vadd.xlane.f32.xlu0 %v2980
      %v2982 = vpop.xlane.xlu0 %2981
      %v2983 = vsel %vm1119, %v2943, 0.0
      %2984 = vadd.xlane.f32.xlu0 %v2983
      %v2985 = vpop.xlane.xlu0 %2984
      %v2986 = vsel %vm1119, %v2945, 0.0
      %2987 = vadd.xlane.f32.xlu0 %v2986
      %v2988 = vpop.xlane.xlu0 %2987
      %v2989 = vsel %vm1119, %v2947, 0.0
      %2990 = vadd.xlane.f32.xlu0 %v2989
      %v2991 = vpop.xlane.xlu0 %2990
      %v2992 = vsel %vm1119, %v2949, 0.0
      %2993 = vadd.xlane.f32.xlu0 %v2992
      %v2994 = vpop.xlane.xlu0 %2993
      %v2995 = vsel %vm1119, %v2951, 0.0
      %2996 = vadd.xlane.f32.xlu0 %v2995
      %v2997 = vpop.xlane.xlu0 %2996
      %v2998 = vsel %vm1119, %v2953, 0.0
      %2999 = vadd.xlane.f32.xlu0 %v2998
      %v3000 = vpop.xlane.xlu0 %2999
      %v3001 = vsel %vm1119, %v2955, 0.0
      %3002 = vadd.xlane.f32.xlu0 %v3001
      %v3003 = vpop.xlane.xlu0 %3002
      %v3004 = vrcp.pop %v2958
      %v3005 = vrcp.pop %v2961
      %v3006 = vrcp.pop %v2964
      %v3007 = vrcp.pop %v2967
      %v3008 = vrcp.pop %v2970
      %v3009 = vrcp.pop %v2973
      %v3010 = vrcp.pop %v2976
      %v3011 = vrcp.pop %v2979
      %v3012 = vrcp.pop %v2982
      %v3013 = vrcp.pop %v2985
      %v3014 = vrcp.pop %v2988
      %v3015 = vrcp.pop %v2991
      %v3016 = vrcp.pop %v2994
      %v3017 = vrcp.pop %v2997
      %v3018 = vrcp.pop %v3000
      %v3019 = vrcp.pop %v3003
      %v3020 = vmul.f32 %v2925, %v3004
      %v3021 = vmul.f32 %v2927, %v3005
      %v3022 = vmul.f32 %v2929, %v3006
      %v3023 = vmul.f32 %v2931, %v3007
      %v3024 = vmul.f32 %v2933, %v3008
      %v3025 = vmul.f32 %v2935, %v3009
      %v3026 = vmul.f32 %v2937, %v3010
      %v3027 = vmul.f32 %v2939, %v3011
      %v3028 = vmul.f32 %v2941, %v3012
      %v3029 = vmul.f32 %v2943, %v3013
      %v3030 = vmul.f32 %v2945, %v3014
      %v3031 = vmul.f32 %v2947, %v3015
      %v3032 = vmul.f32 %v2949, %v3016
      %v3033 = vmul.f32 %v2951, %v3017
      %v3034 = vmul.f32 %v2953, %v3018
      %v3035 = vmul.f32 %v2955, %v3019
      %v3036 = vpack.c.bf16 %v3021, %v3020
      %v3037 = vpack.c.bf16 %v3023, %v3022
      %v3038 = vpack.c.bf16 %v3025, %v3024
      %v3039 = vpack.c.bf16 %v3027, %v3026
      %v3040 = vpack.c.bf16 %v3029, %v3028
      %v3041 = vpack.c.bf16 %v3031, %v3030
      %v3042 = vpack.c.bf16 %v3033, %v3032
      %v3043 = vpack.c.bf16 %v3035, %v3034
      %3044 = vrot.lane.b32.xlu0 %v908, 40
      %v3045 = vpop.permute.xlu0 %3044
      %3046 = vrot.lane.b32.xlu0 %v909, 40
      %v3047 = vpop.permute.xlu0 %3046
      %3048 = vrot.lane.b32.xlu0 %v910, 40
      %v3049 = vpop.permute.xlu0 %3048
      %3050 = vrot.lane.b32.xlu0 %v911, 40
      %v3051 = vpop.permute.xlu0 %3050
      %v3057 = vsel %vm1119, %v3036, 0
      %v3060 = vsel %vm1119, %v3037, 0
      %v3063 = vsel %vm1119, %v3038, 0
      %v3066 = vsel %vm1119, %v3039, 0
      %3068 = vmatprep.subr.bf16.mxu0 0
      %3069 = vmatpush1.bf16.msra.mxu0 0
      %3070 = vmatprep.subr.bf16.mxu0 0
      %3071 = vmatpush1.bf16.msra.mxu0 0
      %3072 = vmatprep.subr.bf16.mxu0 0
      %3073 = vmatpush1.bf16.msra.mxu0 0
      %3074 = vmatprep.subr.bf16.mxu0 0
      %3075 = vmatpush1.bf16.msra.mxu0 0
      %3076 = vmatprep.subr.bf16.mxu0 0
      %3077 = vmatpush1.bf16.msra.mxu0 %v3051
      %3078 = vmatprep.subr.bf16.mxu0 0
      %3079 = vmatpush1.bf16.msra.mxu0 %v3049
      %3080 = vmatprep.subr.bf16.mxu0 0
      %3081 = vmatpush1.bf16.msra.mxu0 %v3047
      %3082 = vmatprep.subr.bf16.mxu0 0
      %3083 = vmatpush1.bf16.msra.mxu0 %v3045
      %3084 = vmatprep.subr.bf16.mxu0 0
      %3085 = vmatpush2.bf16.msra.mxu0 0
      %3086 = vmatprep.subr.bf16.mxu0 0
      %3087 = vmatpush2.bf16.msra.mxu0 0
      %3088 = vmatprep.subr.bf16.mxu0 0
      %3089 = vmatpush2.bf16.msra.mxu0 0
      %3090 = vmatprep.subr.bf16.mxu0 0
      %3091 = vmatpush2.bf16.msra.mxu0 0
      %3092 = vmatprep.subr.bf16.mxu0 0
      %3093 = vmatpush2.bf16.msra.mxu0 0
      %3094 = vmatprep.subr.bf16.mxu0 0
      %3095 = vmatpush2.bf16.msra.mxu0 0
      %3096 = vmatprep.subr.bf16.mxu0 0
      %3097 = vmatpush2.bf16.msra.mxu0 0
      %3098 = vmatprep.subr.bf16.mxu0 0
      %3099 = vmatpush2.bf16.msra.mxu0 0
      %3100 = vmatprep.mubr.bf16.mxu0 0
      %3101 = vmatmul.mubr.bf16.gmra.mxu0 %v3057
      %v3102 = vpop.f32.mrf.mxu0
      %v3103 = vadd.f32 0.0, %v3102
      %v3104 = vpop.f32.mrf.mxu0
      %v3105 = vpop.f32.mrf.mxu0
      %v3106 = vadd.f32 0.0, %v3105
      %v3107 = vpop.f32.mrf.mxu0
      %3108 = vmatprep.mubr.bf16.mxu0 0
      %3109 = vmatmul.mubr.bf16.gmra.mxu0 %v3060
      %v3110 = vpop.f32.mrf.mxu0
      %v3111 = vadd.f32 0.0, %v3110
      %v3112 = vpop.f32.mrf.mxu0
      %v3113 = vpop.f32.mrf.mxu0
      %v3114 = vadd.f32 0.0, %v3113
      %v3115 = vpop.f32.mrf.mxu0
      %3116 = vmatprep.mubr.bf16.mxu0 0
      %3117 = vmatmul.mubr.bf16.gmra.mxu0 %v3063
      %v3118 = vpop.f32.mrf.mxu0
      %v3119 = vadd.f32 0.0, %v3118
      %v3120 = vpop.f32.mrf.mxu0
      %v3121 = vpop.f32.mrf.mxu0
      %v3122 = vadd.f32 0.0, %v3121
      %v3123 = vpop.f32.mrf.mxu0
      %3124 = vmatprep.mubr.bf16.mxu0 0
      %3125 = vmatmul.mubr.bf16.gmra.mxu0 %v3066
      %v3126 = vpop.f32.mrf.mxu0
      %v3127 = vadd.f32 0.0, %v3126
      %v3128 = vpop.f32.mrf.mxu0
      %v3129 = vpop.f32.mrf.mxu0
      %v3130 = vadd.f32 0.0, %v3129
      %v3131 = vpop.f32.mrf.mxu0
      %3132 = vdwg.mxu0
      %3133 = vrot.lane.b32.xlu0 %v912, 40
      %v3134 = vpop.permute.xlu0 %3133
      %3135 = vrot.lane.b32.xlu0 %v913, 40
      %v3136 = vpop.permute.xlu0 %3135
      %3137 = vrot.lane.b32.xlu0 %v914, 40
      %v3138 = vpop.permute.xlu0 %3137
      %3139 = vrot.lane.b32.xlu0 %v915, 40
      %v3140 = vpop.permute.xlu0 %3139
      %v3146 = vsel %vm1119, %v3040, 0
      %v3149 = vsel %vm1119, %v3041, 0
      %v3152 = vsel %vm1119, %v3042, 0
      %v3155 = vsel %vm1119, %v3043, 0
      %3157 = vmatprep.subr.bf16.mxu0 0
      %3158 = vmatpush1.bf16.msra.mxu0 0
      %3159 = vmatprep.subr.bf16.mxu0 0
      %3160 = vmatpush1.bf16.msra.mxu0 0
      %3161 = vmatprep.subr.bf16.mxu0 0
      %3162 = vmatpush1.bf16.msra.mxu0 0
      %3163 = vmatprep.subr.bf16.mxu0 0
      %3164 = vmatpush1.bf16.msra.mxu0 0
      %3165 = vmatprep.subr.bf16.mxu0 0
      %3166 = vmatpush1.bf16.msra.mxu0 %v3140
      %3167 = vmatprep.subr.bf16.mxu0 0
      %3168 = vmatpush1.bf16.msra.mxu0 %v3138
      %3169 = vmatprep.subr.bf16.mxu0 0
      %3170 = vmatpush1.bf16.msra.mxu0 %v3136
      %3171 = vmatprep.subr.bf16.mxu0 0
      %3172 = vmatpush1.bf16.msra.mxu0 %v3134
      %3173 = vmatprep.subr.bf16.mxu0 0
      %3174 = vmatpush2.bf16.msra.mxu0 0
      %3175 = vmatprep.subr.bf16.mxu0 0
      %3176 = vmatpush2.bf16.msra.mxu0 0
      %3177 = vmatprep.subr.bf16.mxu0 0
      %3178 = vmatpush2.bf16.msra.mxu0 0
      %3179 = vmatprep.subr.bf16.mxu0 0
      %3180 = vmatpush2.bf16.msra.mxu0 0
      %3181 = vmatprep.subr.bf16.mxu0 0
      %3182 = vmatpush2.bf16.msra.mxu0 0
      %3183 = vmatprep.subr.bf16.mxu0 0
      %3184 = vmatpush2.bf16.msra.mxu0 0
      %3185 = vmatprep.subr.bf16.mxu0 0
      %3186 = vmatpush2.bf16.msra.mxu0 0
      %3187 = vmatprep.subr.bf16.mxu0 0
      %3188 = vmatpush2.bf16.msra.mxu0 0
      %3189 = vmatprep.mubr.bf16.mxu0 0
      %3190 = vmatmul.mubr.bf16.gmra.mxu0 %v3146
      %v3191 = vpop.f32.mrf.mxu0
      %v3192 = vadd.f32 0.0, %v3191
      %v3193 = vpop.f32.mrf.mxu0
      %v3194 = vpop.f32.mrf.mxu0
      %v3195 = vadd.f32 0.0, %v3194
      %v3196 = vpop.f32.mrf.mxu0
      %3197 = vmatprep.mubr.bf16.mxu0 0
      %3198 = vmatmul.mubr.bf16.gmra.mxu0 %v3149
      %v3199 = vpop.f32.mrf.mxu0
      %v3200 = vadd.f32 0.0, %v3199
      %v3201 = vpop.f32.mrf.mxu0
      %v3202 = vpop.f32.mrf.mxu0
      %v3203 = vadd.f32 0.0, %v3202
      %v3204 = vpop.f32.mrf.mxu0
      %3205 = vmatprep.mubr.bf16.mxu0 0
      %3206 = vmatmul.mubr.bf16.gmra.mxu0 %v3152
      %v3207 = vpop.f32.mrf.mxu0
      %v3208 = vadd.f32 0.0, %v3207
      %v3209 = vpop.f32.mrf.mxu0
      %v3210 = vpop.f32.mrf.mxu0
      %v3211 = vadd.f32 0.0, %v3210
      %v3212 = vpop.f32.mrf.mxu0
      %3213 = vmatprep.mubr.bf16.mxu0 0
      %3214 = vmatmul.mubr.bf16.gmra.mxu0 %v3155
      %v3215 = vpop.f32.mrf.mxu0
      %v3216 = vadd.f32 0.0, %v3215
      %v3217 = vpop.f32.mrf.mxu0
      %v3218 = vpop.f32.mrf.mxu0
      %v3219 = vadd.f32 0.0, %v3218
      %v3220 = vpop.f32.mrf.mxu0
      %3221 = vdwg.mxu0
      %v3222 = vpack.c.bf16 %v3106, %v3103
      %v3223 = vpack.c.bf16 %v3114, %v3111
      %v3224 = vpack.c.bf16 %v3122, %v3119
      %v3225 = vpack.c.bf16 %v3130, %v3127
      %v3226 = vpack.c.bf16 %v3195, %v3192
      %v3227 = vpack.c.bf16 %v3203, %v3200
      %v3228 = vpack.c.bf16 %v3211, %v3208
      %v3229 = vpack.c.bf16 %v3219, %v3216
      %3238 = vrot.lane.b32.xlu0 %v2062, 8
      %v3239 = vpop.permute.xlu0 %3238
      %3240 = vrot.lane.b32.xlu0 %v2063, 8
      %v3241 = vpop.permute.xlu0 %3240
      %3242 = vrot.lane.b32.xlu0 %v2064, 8
      %v3243 = vpop.permute.xlu0 %3242
      %3244 = vrot.lane.b32.xlu0 %v2065, 8
      %v3245 = vpop.permute.xlu0 %3244
      %3246 = vrot.lane.b32.xlu0 %v2066, 8
      %v3247 = vpop.permute.xlu0 %3246
      %3248 = vrot.lane.b32.xlu0 %v2067, 8
      %v3249 = vpop.permute.xlu0 %3248
      %3250 = vrot.lane.b32.xlu0 %v2068, 8
      %v3251 = vpop.permute.xlu0 %3250
      %3252 = vrot.lane.b32.xlu0 %v2069, 8
      %v3253 = vpop.permute.xlu0 %3252
      %3262 = vrot.lane.b32.xlu0 %v2642, 16
      %v3263 = vpop.permute.xlu0 %3262
      %3264 = vrot.lane.b32.xlu0 %v2643, 16
      %v3265 = vpop.permute.xlu0 %3264
      %3266 = vrot.lane.b32.xlu0 %v2644, 16
      %v3267 = vpop.permute.xlu0 %3266
      %3268 = vrot.lane.b32.xlu0 %v2645, 16
      %v3269 = vpop.permute.xlu0 %3268
      %3270 = vrot.lane.b32.xlu0 %v2646, 16
      %v3271 = vpop.permute.xlu0 %3270
      %3272 = vrot.lane.b32.xlu0 %v2647, 16
      %v3273 = vpop.permute.xlu0 %3272
      %3274 = vrot.lane.b32.xlu0 %v2648, 16
      %v3275 = vpop.permute.xlu0 %3274
      %3276 = vrot.lane.b32.xlu0 %v2649, 16
      %v3277 = vpop.permute.xlu0 %3276
      %3286 = vrot.lane.b32.xlu0 %v3222, 24
      %v3287 = vpop.permute.xlu0 %3286
      %3288 = vrot.lane.b32.xlu0 %v3223, 24
      %v3289 = vpop.permute.xlu0 %3288
      %3290 = vrot.lane.b32.xlu0 %v3224, 24
      %v3291 = vpop.permute.xlu0 %3290
      %3292 = vrot.lane.b32.xlu0 %v3225, 24
      %v3293 = vpop.permute.xlu0 %3292
      %3294 = vrot.lane.b32.xlu0 %v3226, 24
      %v3295 = vpop.permute.xlu0 %3294
      %3296 = vrot.lane.b32.xlu0 %v3227, 24
      %v3297 = vpop.permute.xlu0 %3296
      %3298 = vrot.lane.b32.xlu0 %v3228, 24
      %v3299 = vpop.permute.xlu0 %3298
      %3300 = vrot.lane.b32.xlu0 %v3229, 24
      %v3301 = vpop.permute.xlu0 %3300
      %v3304 = vsel %vm928, %v1482, %v3239
      %v3307 = vsel %vm928, %v1483, %v3241
      %v3310 = vsel %vm928, %v1484, %v3243
      %v3313 = vsel %vm928, %v1485, %v3245
      %v3316 = vsel %vm928, %v1486, %v3247
      %v3319 = vsel %vm928, %v1487, %v3249
      %v3322 = vsel %vm928, %v1488, %v3251
      %v3325 = vsel %vm928, %v1489, %v3253
      %vm3326 = vcmask 130048
      %v3328 = vsel %vm3326, %v3304, %v3263
      %v3330 = vsel %vm3326, %v3307, %v3265
      %v3332 = vsel %vm3326, %v3310, %v3267
      %v3334 = vsel %vm3326, %v3313, %v3269
      %v3336 = vsel %vm3326, %v3316, %v3271
      %v3338 = vsel %vm3326, %v3319, %v3273
      %v3340 = vsel %vm3326, %v3322, %v3275
      %v3342 = vsel %vm3326, %v3325, %v3277
      %vm3343 = vcmask 195584
      %v3345 = vsel %vm3343, %v3328, %v3287
      %v3347 = vsel %vm3343, %v3330, %v3289
      %v3349 = vsel %vm3343, %v3332, %v3291
      %v3351 = vsel %vm3343, %v3334, %v3293
      %v3353 = vsel %vm3343, %v3336, %v3295
      %v3355 = vsel %vm3343, %v3338, %v3297
      %v3357 = vsel %vm3343, %v3340, %v3299
      %v3359 = vsel %vm3343, %v3342, %v3301
      %v3360 = vld [vmem:[%s433] sm:$0xf]
      %v3361 = vld [vmem:[%s433 + $0x4] sm:$0xf]
      %v3362 = vld [vmem:[%s433 + $0x8] sm:$0xf]
      %v3363 = vld [vmem:[%s433 + $0xc] sm:$0xf]
      %v3364 = vlaneseq
      %v3365 = vshrl.u32 %v3364, 7
      %v3366 = vsub.s32 4, %v3365
      %v3367 = vrot.slane %v505, %v3366
      %v3372 = vunpack.c.l.b16 %v3360
      %v3373 = vunpack.c.l.b16 %v3361
      %v3374 = vunpack.c.l.b16 %v3362
      %v3375 = vunpack.c.l.b16 %v3363
      %v3376 = vpack.c.b16 %v3373, %v3372
      %v3377 = vpack.c.b16 %v3375, %v3374
      %v3380 = vsel %vm506, %v3345, 0
      %v3382 = vsel %vm506, %v3347, 0
      %v3384 = vsel %vm506, %v3349, 0
      %v3386 = vsel %vm506, %v3351, 0
      %v3388 = vsel %vm506, %v3353, 0
      %v3390 = vsel %vm506, %v3355, 0
      %v3392 = vsel %vm506, %v3357, 0
      %v3394 = vsel %vm506, %v3359, 0
      %3396 = vmatprep.subr.bf16.mxu0 0
      %3397 = vmatpush1.bf16.msra.mxu0 0
      %3398 = vmatprep.subr.bf16.mxu0 0
      %3399 = vmatpush1.bf16.msra.mxu0 0
      %3400 = vmatprep.subr.bf16.mxu0 0
      %3401 = vmatpush1.bf16.msra.mxu0 0
      %3402 = vmatprep.subr.bf16.mxu0 0
      %3403 = vmatpush1.bf16.msra.mxu0 0
      %3404 = vmatprep.subr.bf16.mxu0 0
      %3405 = vmatpush1.bf16.msra.mxu0 0
      %3406 = vmatprep.subr.bf16.mxu0 0
      %3407 = vmatpush1.bf16.msra.mxu0 0
      %3408 = vmatprep.subr.bf16.mxu0 0
      %3409 = vmatpush1.bf16.msra.mxu0 %v3377
      %3410 = vmatprep.subr.bf16.mxu0 0
      %3411 = vmatpush1.bf16.msra.mxu0 %v3376
      %3412 = vmatprep.subr.bf16.mxu0 0
      %3413 = vmatpush2.bf16.msra.mxu0 0
      %3414 = vmatprep.subr.bf16.mxu0 0
      %3415 = vmatpush2.bf16.msra.mxu0 0
      %3416 = vmatprep.subr.bf16.mxu0 0
      %3417 = vmatpush2.bf16.msra.mxu0 0
      %3418 = vmatprep.subr.bf16.mxu0 0
      %3419 = vmatpush2.bf16.msra.mxu0 0
      %3420 = vmatprep.subr.bf16.mxu0 0
      %3421 = vmatpush2.bf16.msra.mxu0 0
      %3422 = vmatprep.subr.bf16.mxu0 0
      %3423 = vmatpush2.bf16.msra.mxu0 0
      %3424 = vmatprep.subr.bf16.mxu0 0
      %3425 = vmatpush2.bf16.msra.mxu0 0
      %3426 = vmatprep.subr.bf16.mxu0 0
      %3427 = vmatpush2.bf16.msra.mxu0 0
      %3428 = vmatprep.mubr.bf16.mxu0 0
      %3429 = vmatmul.mubr.bf16.gmra.mxu0 %v3380
      %v3430 = vpop.f32.mrf.mxu0
      %v3431 = vadd.f32 %v3367, %v3430
      %v3432 = vpop.f32.mrf.mxu0
      %v3433 = vpop.f32.mrf.mxu0
      %v3434 = vadd.f32 %v3367, %v3433
      %v3435 = vpop.f32.mrf.mxu0
      %3436 = vmatprep.mubr.bf16.mxu0 0
      %3437 = vmatmul.mubr.bf16.gmra.mxu0 %v3382
      %v3438 = vpop.f32.mrf.mxu0
      %v3439 = vadd.f32 %v3367, %v3438
      %v3440 = vpop.f32.mrf.mxu0
      %v3441 = vpop.f32.mrf.mxu0
      %v3442 = vadd.f32 %v3367, %v3441
      %v3443 = vpop.f32.mrf.mxu0
      %3444 = vmatprep.mubr.bf16.mxu0 0
      %3445 = vmatmul.mubr.bf16.gmra.mxu0 %v3384
      %v3446 = vpop.f32.mrf.mxu0
      %v3447 = vadd.f32 %v3367, %v3446
      %v3448 = vpop.f32.mrf.mxu0
      %v3449 = vpop.f32.mrf.mxu0
      %v3450 = vadd.f32 %v3367, %v3449
      %v3451 = vpop.f32.mrf.mxu0
      %3452 = vmatprep.mubr.bf16.mxu0 0
      %3453 = vmatmul.mubr.bf16.gmra.mxu0 %v3386
      %v3454 = vpop.f32.mrf.mxu0
      %v3455 = vadd.f32 %v3367, %v3454
      %v3456 = vpop.f32.mrf.mxu0
      %v3457 = vpop.f32.mrf.mxu0
      %v3458 = vadd.f32 %v3367, %v3457
      %v3459 = vpop.f32.mrf.mxu0
      %3460 = vmatprep.mubr.bf16.mxu0 0
      %3461 = vmatmul.mubr.bf16.gmra.mxu0 %v3388
      %v3462 = vpop.f32.mrf.mxu0
      %v3463 = vadd.f32 %v3367, %v3462
      %v3464 = vpop.f32.mrf.mxu0
      %v3465 = vpop.f32.mrf.mxu0
      %v3466 = vadd.f32 %v3367, %v3465
      %v3467 = vpop.f32.mrf.mxu0
      %3468 = vmatprep.mubr.bf16.mxu0 0
      %3469 = vmatmul.mubr.bf16.gmra.mxu0 %v3390
      %v3470 = vpop.f32.mrf.mxu0
      %v3471 = vadd.f32 %v3367, %v3470
      %v3472 = vpop.f32.mrf.mxu0
      %v3473 = vpop.f32.mrf.mxu0
      %v3474 = vadd.f32 %v3367, %v3473
      %v3475 = vpop.f32.mrf.mxu0
      %3476 = vmatprep.mubr.bf16.mxu0 0
      %3477 = vmatmul.mubr.bf16.gmra.mxu0 %v3392
      %v3478 = vpop.f32.mrf.mxu0
      %v3479 = vadd.f32 %v3367, %v3478
      %v3480 = vpop.f32.mrf.mxu0
      %v3481 = vpop.f32.mrf.mxu0
      %v3482 = vadd.f32 %v3367, %v3481
      %v3483 = vpop.f32.mrf.mxu0
      %3484 = vmatprep.mubr.bf16.mxu0 0
      %3485 = vmatmul.mubr.bf16.gmra.mxu0 %v3394
      %v3486 = vpop.f32.mrf.mxu0
      %v3487 = vadd.f32 %v3367, %v3486
      %v3488 = vpop.f32.mrf.mxu0
      %v3489 = vpop.f32.mrf.mxu0
      %v3490 = vadd.f32 %v3367, %v3489
      %v3491 = vpop.f32.mrf.mxu0
      %3492 = vdwg.mxu0
      %v3493 = vadd.f32 %v489, %v3431
      %v3494 = vadd.f32 %v490, %v3434
      %v3495 = vadd.f32 %v491, %v3439
      %v3496 = vadd.f32 %v492, %v3442
      %v3497 = vadd.f32 %v493, %v3447
      %v3498 = vadd.f32 %v494, %v3450
      %v3499 = vadd.f32 %v495, %v3455
      %v3500 = vadd.f32 %v496, %v3458
      %v3501 = vadd.f32 %v497, %v3463
      %v3502 = vadd.f32 %v498, %v3466
      %v3503 = vadd.f32 %v499, %v3471
      %v3504 = vadd.f32 %v500, %v3474
      %v3505 = vadd.f32 %v501, %v3479
      %v3506 = vadd.f32 %v502, %v3482
      %v3507 = vadd.f32 %v503, %v3487
      %v3508 = vadd.f32 %v504, %v3490
      %v3509 = vsel %vm506, %v3493, 0.0
      %3510 = vadd.xlane.f32.xlu0 %v3509
      %v3511 = vpop.xlane.xlu0 %3510
      %v3512 = vsel %vm506, %v3494, 0.0
      %3513 = vadd.xlane.f32.xlu0 %v3512
      %v3514 = vpop.xlane.xlu0 %3513
      %v3515 = vsel %vm506, %v3495, 0.0
      %3516 = vadd.xlane.f32.xlu0 %v3515
      %v3517 = vpop.xlane.xlu0 %3516
      %v3518 = vsel %vm506, %v3496, 0.0
      %3519 = vadd.xlane.f32.xlu0 %v3518
      %v3520 = vpop.xlane.xlu0 %3519
      %v3521 = vsel %vm506, %v3497, 0.0
      %3522 = vadd.xlane.f32.xlu0 %v3521
      %v3523 = vpop.xlane.xlu0 %3522
      %v3524 = vsel %vm506, %v3498, 0.0
      %3525 = vadd.xlane.f32.xlu0 %v3524
      %v3526 = vpop.xlane.xlu0 %3525
      %v3527 = vsel %vm506, %v3499, 0.0
      %3528 = vadd.xlane.f32.xlu0 %v3527
      %v3529 = vpop.xlane.xlu0 %3528
      %v3530 = vsel %vm506, %v3500, 0.0
      %3531 = vadd.xlane.f32.xlu0 %v3530
      %v3532 = vpop.xlane.xlu0 %3531
      %v3533 = vsel %vm506, %v3501, 0.0
      %3534 = vadd.xlane.f32.xlu0 %v3533
      %v3535 = vpop.xlane.xlu0 %3534
      %v3536 = vsel %vm506, %v3502, 0.0
      %3537 = vadd.xlane.f32.xlu0 %v3536
      %v3538 = vpop.xlane.xlu0 %3537
      %v3539 = vsel %vm506, %v3503, 0.0
      %3540 = vadd.xlane.f32.xlu0 %v3539
      %v3541 = vpop.xlane.xlu0 %3540
      %v3542 = vsel %vm506, %v3504, 0.0
      %3543 = vadd.xlane.f32.xlu0 %v3542
      %v3544 = vpop.xlane.xlu0 %3543
      %v3545 = vsel %vm506, %v3505, 0.0
      %3546 = vadd.xlane.f32.xlu0 %v3545
      %v3547 = vpop.xlane.xlu0 %3546
      %v3548 = vsel %vm506, %v3506, 0.0
      %3549 = vadd.xlane.f32.xlu0 %v3548
      %v3550 = vpop.xlane.xlu0 %3549
      %v3551 = vsel %vm506, %v3507, 0.0
      %3552 = vadd.xlane.f32.xlu0 %v3551
      %v3553 = vpop.xlane.xlu0 %3552
      %v3554 = vsel %vm506, %v3508, 0.0
      %3555 = vadd.xlane.f32.xlu0 %v3554
      %v3556 = vpop.xlane.xlu0 %3555
      %v3557 = vmul.f32 %v3511, %v555
      %v3558 = vmul.f32 %v3514, %v555
      %v3559 = vmul.f32 %v3517, %v555
      %v3560 = vmul.f32 %v3520, %v555
      %v3561 = vmul.f32 %v3523, %v555
      %v3562 = vmul.f32 %v3526, %v555
      %v3563 = vmul.f32 %v3529, %v555
      %v3564 = vmul.f32 %v3532, %v555
      %v3565 = vmul.f32 %v3535, %v555
      %v3566 = vmul.f32 %v3538, %v555
      %v3567 = vmul.f32 %v3541, %v555
      %v3568 = vmul.f32 %v3544, %v555
      %v3569 = vmul.f32 %v3547, %v555
      %v3570 = vmul.f32 %v3550, %v555
      %v3571 = vmul.f32 %v3553, %v555
      %v3572 = vmul.f32 %v3556, %v555
      %v3573 = vsub.f32 %v3493, %v3557
      %v3574 = vsub.f32 %v3494, %v3558
      %v3575 = vsub.f32 %v3495, %v3559
      %v3576 = vsub.f32 %v3496, %v3560
      %v3577 = vsub.f32 %v3497, %v3561
      %v3578 = vsub.f32 %v3498, %v3562
      %v3579 = vsub.f32 %v3499, %v3563
      %v3580 = vsub.f32 %v3500, %v3564
      %v3581 = vsub.f32 %v3501, %v3565
      %v3582 = vsub.f32 %v3502, %v3566
      %v3583 = vsub.f32 %v3503, %v3567
      %v3584 = vsub.f32 %v3504, %v3568
      %v3585 = vsub.f32 %v3505, %v3569
      %v3586 = vsub.f32 %v3506, %v3570
      %v3587 = vsub.f32 %v3507, %v3571
      %v3588 = vsub.f32 %v3508, %v3572
      %v3589 = vmul.f32 %v3573, %v3573
      %v3590 = vmul.f32 %v3574, %v3574
      %v3591 = vmul.f32 %v3575, %v3575
      %v3592 = vmul.f32 %v3576, %v3576
      %v3593 = vmul.f32 %v3577, %v3577
      %v3594 = vmul.f32 %v3578, %v3578
      %v3595 = vmul.f32 %v3579, %v3579
      %v3596 = vmul.f32 %v3580, %v3580
      %v3597 = vmul.f32 %v3581, %v3581
      %v3598 = vmul.f32 %v3582, %v3582
      %v3599 = vmul.f32 %v3583, %v3583
      %v3600 = vmul.f32 %v3584, %v3584
      %v3601 = vmul.f32 %v3585, %v3585
      %v3602 = vmul.f32 %v3586, %v3586
      %v3603 = vmul.f32 %v3587, %v3587
      %v3604 = vmul.f32 %v3588, %v3588
      %v3605 = vsel %vm506, %v3589, 0.0
      %3606 = vadd.xlane.f32.xlu0 %v3605
      %v3607 = vpop.xlane.xlu0 %3606
      %v3608 = vsel %vm506, %v3590, 0.0
      %3609 = vadd.xlane.f32.xlu0 %v3608
      %v3610 = vpop.xlane.xlu0 %3609
      %v3611 = vsel %vm506, %v3591, 0.0
      %3612 = vadd.xlane.f32.xlu0 %v3611
      %v3613 = vpop.xlane.xlu0 %3612
      %v3614 = vsel %vm506, %v3592, 0.0
      %3615 = vadd.xlane.f32.xlu0 %v3614
      %v3616 = vpop.xlane.xlu0 %3615
      %v3617 = vsel %vm506, %v3593, 0.0
      %3618 = vadd.xlane.f32.xlu0 %v3617
      %v3619 = vpop.xlane.xlu0 %3618
      %v3620 = vsel %vm506, %v3594, 0.0
      %3621 = vadd.xlane.f32.xlu0 %v3620
      %v3622 = vpop.xlane.xlu0 %3621
      %v3623 = vsel %vm506, %v3595, 0.0
      %3624 = vadd.xlane.f32.xlu0 %v3623
      %v3625 = vpop.xlane.xlu0 %3624
      %v3626 = vsel %vm506, %v3596, 0.0
      %3627 = vadd.xlane.f32.xlu0 %v3626
      %v3628 = vpop.xlane.xlu0 %3627
      %v3629 = vsel %vm506, %v3597, 0.0
      %3630 = vadd.xlane.f32.xlu0 %v3629
      %v3631 = vpop.xlane.xlu0 %3630
      %v3632 = vsel %vm506, %v3598, 0.0
      %3633 = vadd.xlane.f32.xlu0 %v3632
      %v3634 = vpop.xlane.xlu0 %3633
      %v3635 = vsel %vm506, %v3599, 0.0
      %3636 = vadd.xlane.f32.xlu0 %v3635
      %v3637 = vpop.xlane.xlu0 %3636
      %v3638 = vsel %vm506, %v3600, 0.0
      %3639 = vadd.xlane.f32.xlu0 %v3638
      %v3640 = vpop.xlane.xlu0 %3639
      %v3641 = vsel %vm506, %v3601, 0.0
      %3642 = vadd.xlane.f32.xlu0 %v3641
      %v3643 = vpop.xlane.xlu0 %3642
      %v3644 = vsel %vm506, %v3602, 0.0
      %3645 = vadd.xlane.f32.xlu0 %v3644
      %v3646 = vpop.xlane.xlu0 %3645
      %v3647 = vsel %vm506, %v3603, 0.0
      %3648 = vadd.xlane.f32.xlu0 %v3647
      %v3649 = vpop.xlane.xlu0 %3648
      %v3650 = vsel %vm506, %v3604, 0.0
      %3651 = vadd.xlane.f32.xlu0 %v3650
      %v3652 = vpop.xlane.xlu0 %3651
      %v3653 = vmul.f32 %v3607, %v555
      %v3654 = vmul.f32 %v3610, %v555
      %v3655 = vmul.f32 %v3613, %v555
      %v3656 = vmul.f32 %v3616, %v555
      %v3657 = vmul.f32 %v3619, %v555
      %v3658 = vmul.f32 %v3622, %v555
      %v3659 = vmul.f32 %v3625, %v555
      %v3660 = vmul.f32 %v3628, %v555
      %v3661 = vmul.f32 %v3631, %v555
      %v3662 = vmul.f32 %v3634, %v555
      %v3663 = vmul.f32 %v3637, %v555
      %v3664 = vmul.f32 %v3640, %v555
      %v3665 = vmul.f32 %v3643, %v555
      %v3666 = vmul.f32 %v3646, %v555
      %v3667 = vmul.f32 %v3649, %v555
      %v3668 = vmul.f32 %v3652, %v555
      %v3669 = vadd.f32 %v3653, 1e-05
      %v3670 = vadd.f32 %v3654, 1e-05
      %v3671 = vadd.f32 %v3655, 1e-05
      %v3672 = vadd.f32 %v3656, 1e-05
      %v3673 = vadd.f32 %v3657, 1e-05
      %v3674 = vadd.f32 %v3658, 1e-05
      %v3675 = vadd.f32 %v3659, 1e-05
      %v3676 = vadd.f32 %v3660, 1e-05
      %v3677 = vadd.f32 %v3661, 1e-05
      %v3678 = vadd.f32 %v3662, 1e-05
      %v3679 = vadd.f32 %v3663, 1e-05
      %v3680 = vadd.f32 %v3664, 1e-05
      %v3681 = vadd.f32 %v3665, 1e-05
      %v3682 = vadd.f32 %v3666, 1e-05
      %v3683 = vadd.f32 %v3667, 1e-05
      %v3684 = vadd.f32 %v3668, 1e-05
      %v3685 = vrsqrt.pop %v3669
      %v3686 = vrsqrt.pop %v3670
      %v3687 = vrsqrt.pop %v3671
      %v3688 = vrsqrt.pop %v3672
      %v3689 = vrsqrt.pop %v3673
      %v3690 = vrsqrt.pop %v3674
      %v3691 = vrsqrt.pop %v3675
      %v3692 = vrsqrt.pop %v3676
      %v3693 = vrsqrt.pop %v3677
      %v3694 = vrsqrt.pop %v3678
      %v3695 = vrsqrt.pop %v3679
      %v3696 = vrsqrt.pop %v3680
      %v3697 = vrsqrt.pop %v3681
      %v3698 = vrsqrt.pop %v3682
      %v3699 = vrsqrt.pop %v3683
      %v3700 = vrsqrt.pop %v3684
      %v3701 = vmul.f32 %v3573, %v3685
      %v3702 = vmul.f32 %v3574, %v3686
      %v3703 = vmul.f32 %v3575, %v3687
      %v3704 = vmul.f32 %v3576, %v3688
      %v3705 = vmul.f32 %v3577, %v3689
      %v3706 = vmul.f32 %v3578, %v3690
      %v3707 = vmul.f32 %v3579, %v3691
      %v3708 = vmul.f32 %v3580, %v3692
      %v3709 = vmul.f32 %v3581, %v3693
      %v3710 = vmul.f32 %v3582, %v3694
      %v3711 = vmul.f32 %v3583, %v3695
      %v3712 = vmul.f32 %v3584, %v3696
      %v3713 = vmul.f32 %v3585, %v3697
      %v3714 = vmul.f32 %v3586, %v3698
      %v3715 = vmul.f32 %v3587, %v3699
      %v3716 = vmul.f32 %v3588, %v3700
      %v3717 = vlaneseq
      %v3718 = vshrl.u32 %v3717, 7
      %v3719 = vsub.s32 2, %v3718
      %v3720 = vrot.slane %v505, %v3719
      %v3721 = vmul.f32 %v3701, %v3720
      %v3722 = vmul.f32 %v3702, %v3720
      %v3723 = vmul.f32 %v3703, %v3720
      %v3724 = vmul.f32 %v3704, %v3720
      %v3725 = vmul.f32 %v3705, %v3720
      %v3726 = vmul.f32 %v3706, %v3720
      %v3727 = vmul.f32 %v3707, %v3720
      %v3728 = vmul.f32 %v3708, %v3720
      %v3729 = vmul.f32 %v3709, %v3720
      %v3730 = vmul.f32 %v3710, %v3720
      %v3731 = vmul.f32 %v3711, %v3720
      %v3732 = vmul.f32 %v3712, %v3720
      %v3733 = vmul.f32 %v3713, %v3720
      %v3734 = vmul.f32 %v3714, %v3720
      %v3735 = vmul.f32 %v3715, %v3720
      %v3736 = vmul.f32 %v3716, %v3720
      %v3737 = vlaneseq
      %v3738 = vshrl.u32 %v3737, 7
      %v3739 = vsub.s32 3, %v3738
      %v3740 = vrot.slane %v505, %v3739
      %v3741 = vadd.f32 %v3721, %v3740
      %v3742 = vadd.f32 %v3722, %v3740
      %v3743 = vadd.f32 %v3723, %v3740
      %v3744 = vadd.f32 %v3724, %v3740
      %v3745 = vadd.f32 %v3725, %v3740
      %v3746 = vadd.f32 %v3726, %v3740
      %v3747 = vadd.f32 %v3727, %v3740
      %v3748 = vadd.f32 %v3728, %v3740
      %v3749 = vadd.f32 %v3729, %v3740
      %v3750 = vadd.f32 %v3730, %v3740
      %v3751 = vadd.f32 %v3731, %v3740
      %v3752 = vadd.f32 %v3732, %v3740
      %v3753 = vadd.f32 %v3733, %v3740
      %v3754 = vadd.f32 %v3734, %v3740
      %v3755 = vadd.f32 %v3735, %v3740
      %v3756 = vadd.f32 %v3736, %v3740
      %v3757 = vpack.c.bf16 %v3742, %v3741
      %v3758 = vpack.c.bf16 %v3744, %v3743
      %v3759 = vpack.c.bf16 %v3746, %v3745
      %v3760 = vpack.c.bf16 %v3748, %v3747
      %v3761 = vpack.c.bf16 %v3750, %v3749
      %v3762 = vpack.c.bf16 %v3752, %v3751
      %v3763 = vpack.c.bf16 %v3754, %v3753
      %v3764 = vpack.c.bf16 %v3756, %v3755
      %v3765 = vld [vmem:[%s438] sm:$0xf]
      %v3766 = vld [vmem:[%s438 + $0x4] sm:$0xf]
      %v3767 = vld [vmem:[%s438 + $0x8] sm:$0xf]
      %v3768 = vld [vmem:[%s438 + $0xc] sm:$0xf]
      %v3769 = vld [vmem:[%s423] sm:$0x1]
      %v3771 = vlaneseq
      %v3772 = vshrl.u32 %v3771, 7
      %v3773 = vsub.s32 0, %v3772
      %v3774 = vrot.slane %v3769, %v3773
      %v3780 = vunpack.c.l.b16 %v3765
      %v3781 = vunpack.c.l.b16 %v3766
      %v3782 = vunpack.c.l.b16 %v3767
      %v3783 = vunpack.c.l.b16 %v3768
      %v3784 = vpack.c.b16 %v3781, %v3780
      %v3785 = vpack.c.b16 %v3783, %v3782
      %v3789 = vsel %vm506, %v3757, 0
      %v3792 = vsel %vm506, %v3758, 0
      %v3795 = vsel %vm506, %v3759, 0
      %v3798 = vsel %vm506, %v3760, 0
      %v3801 = vsel %vm506, %v3761, 0
      %v3804 = vsel %vm506, %v3762, 0
      %v3807 = vsel %vm506, %v3763, 0
      %v3810 = vsel %vm506, %v3764, 0
      %3812 = vmatprep.subr.bf16.mxu0 0
      %3813 = vmatpush1.bf16.msra.mxu0 0
      %3814 = vmatprep.subr.bf16.mxu0 0
      %3815 = vmatpush1.bf16.msra.mxu0 0
      %3816 = vmatprep.subr.bf16.mxu0 0
      %3817 = vmatpush1.bf16.msra.mxu0 0
      %3818 = vmatprep.subr.bf16.mxu0 0
      %3819 = vmatpush1.bf16.msra.mxu0 0
      %3820 = vmatprep.subr.bf16.mxu0 0
      %3821 = vmatpush1.bf16.msra.mxu0 0
      %3822 = vmatprep.subr.bf16.mxu0 0
      %3823 = vmatpush1.bf16.msra.mxu0 0
      %3824 = vmatprep.subr.bf16.mxu0 0
      %3825 = vmatpush1.bf16.msra.mxu0 %v3785
      %3826 = vmatprep.subr.bf16.mxu0 0
      %3827 = vmatpush1.bf16.msra.mxu0 %v3784
      %3828 = vmatprep.subr.bf16.mxu0 0
      %3829 = vmatpush2.bf16.msra.mxu0 0
      %3830 = vmatprep.subr.bf16.mxu0 0
      %3831 = vmatpush2.bf16.msra.mxu0 0
      %3832 = vmatprep.subr.bf16.mxu0 0
      %3833 = vmatpush2.bf16.msra.mxu0 0
      %3834 = vmatprep.subr.bf16.mxu0 0
      %3835 = vmatpush2.bf16.msra.mxu0 0
      %3836 = vmatprep.subr.bf16.mxu0 0
      %3837 = vmatpush2.bf16.msra.mxu0 0
      %3838 = vmatprep.subr.bf16.mxu0 0
      %3839 = vmatpush2.bf16.msra.mxu0 0
      %3840 = vmatprep.subr.bf16.mxu0 0
      %3841 = vmatpush2.bf16.msra.mxu0 0
      %3842 = vmatprep.subr.bf16.mxu0 0
      %3843 = vmatpush2.bf16.msra.mxu0 0
      %3844 = vmatprep.mubr.bf16.mxu0 0
      %3845 = vmatmul.mubr.bf16.gmra.mxu0 %v3789
      %v3846 = vpop.f32.mrf.mxu0
      %v3847 = vadd.f32 %v3774, %v3846
      %v3848 = vpop.f32.mrf.mxu0
      %v3849 = vpop.f32.mrf.mxu0
      %v3850 = vadd.f32 %v3774, %v3849
      %v3851 = vpop.f32.mrf.mxu0
      %3852 = vmatprep.mubr.bf16.mxu0 0
      %3853 = vmatmul.mubr.bf16.gmra.mxu0 %v3792
      %v3854 = vpop.f32.mrf.mxu0
      %v3855 = vadd.f32 %v3774, %v3854
      %v3856 = vpop.f32.mrf.mxu0
      %v3857 = vpop.f32.mrf.mxu0
      %v3858 = vadd.f32 %v3774, %v3857
      %v3859 = vpop.f32.mrf.mxu0
      %3860 = vmatprep.mubr.bf16.mxu0 0
      %3861 = vmatmul.mubr.bf16.gmra.mxu0 %v3795
      %v3862 = vpop.f32.mrf.mxu0
      %v3863 = vadd.f32 %v3774, %v3862
      %v3864 = vpop.f32.mrf.mxu0
      %v3865 = vpop.f32.mrf.mxu0
      %v3866 = vadd.f32 %v3774, %v3865
      %v3867 = vpop.f32.mrf.mxu0
      %3868 = vmatprep.mubr.bf16.mxu0 0
      %3869 = vmatmul.mubr.bf16.gmra.mxu0 %v3798
      %v3870 = vpop.f32.mrf.mxu0
      %v3871 = vadd.f32 %v3774, %v3870
      %v3872 = vpop.f32.mrf.mxu0
      %v3873 = vpop.f32.mrf.mxu0
      %v3874 = vadd.f32 %v3774, %v3873
      %v3875 = vpop.f32.mrf.mxu0
      %3876 = vmatprep.mubr.bf16.mxu0 0
      %3877 = vmatmul.mubr.bf16.gmra.mxu0 %v3801
      %v3878 = vpop.f32.mrf.mxu0
      %v3879 = vadd.f32 %v3774, %v3878
      %v3880 = vpop.f32.mrf.mxu0
      %v3881 = vpop.f32.mrf.mxu0
      %v3882 = vadd.f32 %v3774, %v3881
      %v3883 = vpop.f32.mrf.mxu0
      %3884 = vmatprep.mubr.bf16.mxu0 0
      %3885 = vmatmul.mubr.bf16.gmra.mxu0 %v3804
      %v3886 = vpop.f32.mrf.mxu0
      %v3887 = vadd.f32 %v3774, %v3886
      %v3888 = vpop.f32.mrf.mxu0
      %v3889 = vpop.f32.mrf.mxu0
      %v3890 = vadd.f32 %v3774, %v3889
      %v3891 = vpop.f32.mrf.mxu0
      %3892 = vmatprep.mubr.bf16.mxu0 0
      %3893 = vmatmul.mubr.bf16.gmra.mxu0 %v3807
      %v3894 = vpop.f32.mrf.mxu0
      %v3895 = vadd.f32 %v3774, %v3894
      %v3896 = vpop.f32.mrf.mxu0
      %v3897 = vpop.f32.mrf.mxu0
      %v3898 = vadd.f32 %v3774, %v3897
      %v3899 = vpop.f32.mrf.mxu0
      %3900 = vmatprep.mubr.bf16.mxu0 0
      %3901 = vmatmul.mubr.bf16.gmra.mxu0 %v3810
      %v3902 = vpop.f32.mrf.mxu0
      %v3903 = vadd.f32 %v3774, %v3902
      %v3904 = vpop.f32.mrf.mxu0
      %v3905 = vpop.f32.mrf.mxu0
      %v3906 = vadd.f32 %v3774, %v3905
      %v3907 = vpop.f32.mrf.mxu0
      %3908 = vdwg.mxu0
      %v3909 = vmul.f32 %v3847, %v3847
      %v3910 = vmul.f32 %v3850, %v3850
      %v3911 = vmul.f32 %v3855, %v3855
      %v3912 = vmul.f32 %v3858, %v3858
      %v3913 = vmul.f32 %v3863, %v3863
      %v3914 = vmul.f32 %v3866, %v3866
      %v3915 = vmul.f32 %v3871, %v3871
      %v3916 = vmul.f32 %v3874, %v3874
      %v3917 = vmul.f32 %v3879, %v3879
      %v3918 = vmul.f32 %v3882, %v3882
      %v3919 = vmul.f32 %v3887, %v3887
      %v3920 = vmul.f32 %v3890, %v3890
      %v3921 = vmul.f32 %v3895, %v3895
      %v3922 = vmul.f32 %v3898, %v3898
      %v3923 = vmul.f32 %v3903, %v3903
      %v3924 = vmul.f32 %v3906, %v3906
      %v3925 = vmul.f32 %v3847, %v3909
      %v3926 = vmul.f32 %v3850, %v3910
      %v3927 = vmul.f32 %v3855, %v3911
      %v3928 = vmul.f32 %v3858, %v3912
      %v3929 = vmul.f32 %v3863, %v3913
      %v3930 = vmul.f32 %v3866, %v3914
      %v3931 = vmul.f32 %v3871, %v3915
      %v3932 = vmul.f32 %v3874, %v3916
      %v3933 = vmul.f32 %v3879, %v3917
      %v3934 = vmul.f32 %v3882, %v3918
      %v3935 = vmul.f32 %v3887, %v3919
      %v3936 = vmul.f32 %v3890, %v3920
      %v3937 = vmul.f32 %v3895, %v3921
      %v3938 = vmul.f32 %v3898, %v3922
      %v3939 = vmul.f32 %v3903, %v3923
      %v3940 = vmul.f32 %v3906, %v3924
      %v3941 = vmul.f32 %v3925, 0.044715
      %v3942 = vmul.f32 %v3926, 0.044715
      %v3943 = vmul.f32 %v3927, 0.044715
      %v3944 = vmul.f32 %v3928, 0.044715
      %v3945 = vmul.f32 %v3929, 0.044715
      %v3946 = vmul.f32 %v3930, 0.044715
      %v3947 = vmul.f32 %v3931, 0.044715
      %v3948 = vmul.f32 %v3932, 0.044715
      %v3949 = vmul.f32 %v3933, 0.044715
      %v3950 = vmul.f32 %v3934, 0.044715
      %v3951 = vmul.f32 %v3935, 0.044715
      %v3952 = vmul.f32 %v3936, 0.044715
      %v3953 = vmul.f32 %v3937, 0.044715
      %v3954 = vmul.f32 %v3938, 0.044715
      %v3955 = vmul.f32 %v3939, 0.044715
      %v3956 = vmul.f32 %v3940, 0.044715
      %v3957 = vadd.f32 %v3847, %v3941
      %v3958 = vadd.f32 %v3850, %v3942
      %v3959 = vadd.f32 %v3855, %v3943
      %v3960 = vadd.f32 %v3858, %v3944
      %v3961 = vadd.f32 %v3863, %v3945
      %v3962 = vadd.f32 %v3866, %v3946
      %v3963 = vadd.f32 %v3871, %v3947
      %v3964 = vadd.f32 %v3874, %v3948
      %v3965 = vadd.f32 %v3879, %v3949
      %v3966 = vadd.f32 %v3882, %v3950
      %v3967 = vadd.f32 %v3887, %v3951
      %v3968 = vadd.f32 %v3890, %v3952
      %v3969 = vadd.f32 %v3895, %v3953
      %v3970 = vadd.f32 %v3898, %v3954
      %v3971 = vadd.f32 %v3903, %v3955
      %v3972 = vadd.f32 %v3906, %v3956
      %v3973 = vmul.f32 %v3957, 0.7978846
      %v3974 = vmul.f32 %v3958, 0.7978846
      %v3975 = vmul.f32 %v3959, 0.7978846
      %v3976 = vmul.f32 %v3960, 0.7978846
      %v3977 = vmul.f32 %v3961, 0.7978846
      %v3978 = vmul.f32 %v3962, 0.7978846
      %v3979 = vmul.f32 %v3963, 0.7978846
      %v3980 = vmul.f32 %v3964, 0.7978846
      %v3981 = vmul.f32 %v3965, 0.7978846
      %v3982 = vmul.f32 %v3966, 0.7978846
      %v3983 = vmul.f32 %v3967, 0.7978846
      %v3984 = vmul.f32 %v3968, 0.7978846
      %v3985 = vmul.f32 %v3969, 0.7978846
      %v3986 = vmul.f32 %v3970, 0.7978846
      %v3987 = vmul.f32 %v3971, 0.7978846
      %v3988 = vmul.f32 %v3972, 0.7978846
      %v3989 = vtanh.pop %v3973
      %v3990 = vtanh.pop %v3974
      %v3991 = vtanh.pop %v3975
      %v3992 = vtanh.pop %v3976
      %v3993 = vtanh.pop %v3977
      %v3994 = vtanh.pop %v3978
      %v3995 = vtanh.pop %v3979
      %v3996 = vtanh.pop %v3980
      %v3997 = vtanh.pop %v3981
      %v3998 = vtanh.pop %v3982
      %v3999 = vtanh.pop %v3983
      %v4000 = vtanh.pop %v3984
      %v4001 = vtanh.pop %v3985
      %v4002 = vtanh.pop %v3986
      %v4003 = vtanh.pop %v3987
      %v4004 = vtanh.pop %v3988
      %v4005 = vadd.f32 %v3989, 1.0
      %v4006 = vadd.f32 %v3990, 1.0
      %v4007 = vadd.f32 %v3991, 1.0
      %v4008 = vadd.f32 %v3992, 1.0
      %v4009 = vadd.f32 %v3993, 1.0
      %v4010 = vadd.f32 %v3994, 1.0
      %v4011 = vadd.f32 %v3995, 1.0
      %v4012 = vadd.f32 %v3996, 1.0
      %v4013 = vadd.f32 %v3997, 1.0
      %v4014 = vadd.f32 %v3998, 1.0
      %v4015 = vadd.f32 %v3999, 1.0
      %v4016 = vadd.f32 %v4000, 1.0
      %v4017 = vadd.f32 %v4001, 1.0
      %v4018 = vadd.f32 %v4002, 1.0
      %v4019 = vadd.f32 %v4003, 1.0
      %v4020 = vadd.f32 %v4004, 1.0
      %v4021 = vmul.f32 %v4005, 0.5
      %v4022 = vmul.f32 %v4006, 0.5
      %v4023 = vmul.f32 %v4007, 0.5
      %v4024 = vmul.f32 %v4008, 0.5
      %v4025 = vmul.f32 %v4009, 0.5
      %v4026 = vmul.f32 %v4010, 0.5
      %v4027 = vmul.f32 %v4011, 0.5
      %v4028 = vmul.f32 %v4012, 0.5
      %v4029 = vmul.f32 %v4013, 0.5
      %v4030 = vmul.f32 %v4014, 0.5
      %v4031 = vmul.f32 %v4015, 0.5
      %v4032 = vmul.f32 %v4016, 0.5
      %v4033 = vmul.f32 %v4017, 0.5
      %v4034 = vmul.f32 %v4018, 0.5
      %v4035 = vmul.f32 %v4019, 0.5
      %v4036 = vmul.f32 %v4020, 0.5
      %v4037 = vmul.f32 %v3847, %v4021
      %v4038 = vmul.f32 %v3850, %v4022
      %v4039 = vmul.f32 %v3855, %v4023
      %v4040 = vmul.f32 %v3858, %v4024
      %v4041 = vmul.f32 %v3863, %v4025
      %v4042 = vmul.f32 %v3866, %v4026
      %v4043 = vmul.f32 %v3871, %v4027
      %v4044 = vmul.f32 %v3874, %v4028
      %v4045 = vmul.f32 %v3879, %v4029
      %v4046 = vmul.f32 %v3882, %v4030
      %v4047 = vmul.f32 %v3887, %v4031
      %v4048 = vmul.f32 %v3890, %v4032
      %v4049 = vmul.f32 %v3895, %v4033
      %v4050 = vmul.f32 %v3898, %v4034
      %v4051 = vmul.f32 %v3903, %v4035
      %v4052 = vmul.f32 %v3906, %v4036
      %v4053 = vpack.c.bf16 %v4038, %v4037
      %v4054 = vpack.c.bf16 %v4040, %v4039
      %v4055 = vpack.c.bf16 %v4042, %v4041
      %v4056 = vpack.c.bf16 %v4044, %v4043
      %v4057 = vpack.c.bf16 %v4046, %v4045
      %v4058 = vpack.c.bf16 %v4048, %v4047
      %v4059 = vpack.c.bf16 %v4050, %v4049
      %v4060 = vpack.c.bf16 %v4052, %v4051
      %v4061 = vld [vmem:[%s443] sm:$0xf]
      %v4062 = vld [vmem:[%s443 + $0x4] sm:$0xf]
      %v4063 = vld [vmem:[%s443 + $0x8] sm:$0xf]
      %v4064 = vld [vmem:[%s443 + $0xc] sm:$0xf]
      %v4065 = vld [vmem:[%s443 + $0x10] sm:$0xf]
      %v4066 = vld [vmem:[%s443 + $0x14] sm:$0xf]
      %v4067 = vld [vmem:[%s443 + $0x18] sm:$0xf]
      %v4068 = vld [vmem:[%s443 + $0x1c] sm:$0xf]
      %v4069 = vlaneseq
      %v4070 = vshrl.u32 %v4069, 7
      %v4071 = vsub.s32 5, %v4070
      %v4072 = vrot.slane %v505, %v4071
      %v4081 = vunpack.c.l.b16 %v4061
      %v4082 = vunpack.c.l.b16 %v4062
      %v4083 = vunpack.c.l.b16 %v4063
      %v4084 = vunpack.c.l.b16 %v4064
      %v4085 = vunpack.c.l.b16 %v4065
      %v4086 = vunpack.c.l.b16 %v4066
      %v4087 = vunpack.c.l.b16 %v4067
      %v4088 = vunpack.c.l.b16 %v4068
      %v4089 = vpack.c.b16 %v4082, %v4081
      %v4090 = vpack.c.b16 %v4084, %v4083
      %v4091 = vpack.c.b16 %v4086, %v4085
      %v4092 = vpack.c.b16 %v4088, %v4087
      %v4098 = vsel %vm1119, %v4053, 0
      %v4101 = vsel %vm1119, %v4054, 0
      %v4104 = vsel %vm1119, %v4055, 0
      %v4107 = vsel %vm1119, %v4056, 0
      %v4110 = vsel %vm1119, %v4057, 0
      %v4113 = vsel %vm1119, %v4058, 0
      %v4116 = vsel %vm1119, %v4059, 0
      %v4119 = vsel %vm1119, %v4060, 0
      %4121 = vmatprep.subr.bf16.mxu0 0
      %4122 = vmatpush1.bf16.msra.mxu0 0
      %4123 = vmatprep.subr.bf16.mxu0 0
      %4124 = vmatpush1.bf16.msra.mxu0 0
      %4125 = vmatprep.subr.bf16.mxu0 0
      %4126 = vmatpush1.bf16.msra.mxu0 0
      %4127 = vmatprep.subr.bf16.mxu0 0
      %4128 = vmatpush1.bf16.msra.mxu0 0
      %4129 = vmatprep.subr.bf16.mxu0 0
      %4130 = vmatpush1.bf16.msra.mxu0 %v4092
      %4131 = vmatprep.subr.bf16.mxu0 0
      %4132 = vmatpush1.bf16.msra.mxu0 %v4091
      %4133 = vmatprep.subr.bf16.mxu0 0
      %4134 = vmatpush1.bf16.msra.mxu0 %v4090
      %4135 = vmatprep.subr.bf16.mxu0 0
      %4136 = vmatpush1.bf16.msra.mxu0 %v4089
      %4137 = vmatprep.subr.bf16.mxu0 0
      %4138 = vmatpush2.bf16.msra.mxu0 0
      %4139 = vmatprep.subr.bf16.mxu0 0
      %4140 = vmatpush2.bf16.msra.mxu0 0
      %4141 = vmatprep.subr.bf16.mxu0 0
      %4142 = vmatpush2.bf16.msra.mxu0 0
      %4143 = vmatprep.subr.bf16.mxu0 0
      %4144 = vmatpush2.bf16.msra.mxu0 0
      %4145 = vmatprep.subr.bf16.mxu0 0
      %4146 = vmatpush2.bf16.msra.mxu0 0
      %4147 = vmatprep.subr.bf16.mxu0 0
      %4148 = vmatpush2.bf16.msra.mxu0 0
      %4149 = vmatprep.subr.bf16.mxu0 0
      %4150 = vmatpush2.bf16.msra.mxu0 0
      %4151 = vmatprep.subr.bf16.mxu0 0
      %4152 = vmatpush2.bf16.msra.mxu0 0
      %4153 = vmatprep.mubr.bf16.mxu0 0
      %4154 = vmatmul.mubr.bf16.gmra.mxu0 %v4098
      %v4155 = vpop.f32.mrf.mxu0
      %v4156 = vadd.f32 %v4072, %v4155
      %v4157 = vpop.f32.mrf.mxu0
      %v4158 = vpop.f32.mrf.mxu0
      %v4159 = vadd.f32 %v4072, %v4158
      %v4160 = vpop.f32.mrf.mxu0
      %4161 = vmatprep.mubr.bf16.mxu0 0
      %4162 = vmatmul.mubr.bf16.gmra.mxu0 %v4101
      %v4163 = vpop.f32.mrf.mxu0
      %v4164 = vadd.f32 %v4072, %v4163
      %v4165 = vpop.f32.mrf.mxu0
      %v4166 = vpop.f32.mrf.mxu0
      %v4167 = vadd.f32 %v4072, %v4166
      %v4168 = vpop.f32.mrf.mxu0
      %4169 = vmatprep.mubr.bf16.mxu0 0
      %4170 = vmatmul.mubr.bf16.gmra.mxu0 %v4104
      %v4171 = vpop.f32.mrf.mxu0
      %v4172 = vadd.f32 %v4072, %v4171
      %v4173 = vpop.f32.mrf.mxu0
      %v4174 = vpop.f32.mrf.mxu0
      %v4175 = vadd.f32 %v4072, %v4174
      %v4176 = vpop.f32.mrf.mxu0
      %4177 = vmatprep.mubr.bf16.mxu0 0
      %4178 = vmatmul.mubr.bf16.gmra.mxu0 %v4107
      %v4179 = vpop.f32.mrf.mxu0
      %v4180 = vadd.f32 %v4072, %v4179
      %v4181 = vpop.f32.mrf.mxu0
      %v4182 = vpop.f32.mrf.mxu0
      %v4183 = vadd.f32 %v4072, %v4182
      %v4184 = vpop.f32.mrf.mxu0
      %4185 = vmatprep.mubr.bf16.mxu0 0
      %4186 = vmatmul.mubr.bf16.gmra.mxu0 %v4110
      %v4187 = vpop.f32.mrf.mxu0
      %v4188 = vadd.f32 %v4072, %v4187
      %v4189 = vpop.f32.mrf.mxu0
      %v4190 = vpop.f32.mrf.mxu0
      %v4191 = vadd.f32 %v4072, %v4190
      %v4192 = vpop.f32.mrf.mxu0
      %4193 = vmatprep.mubr.bf16.mxu0 0
      %4194 = vmatmul.mubr.bf16.gmra.mxu0 %v4113
      %v4195 = vpop.f32.mrf.mxu0
      %v4196 = vadd.f32 %v4072, %v4195
      %v4197 = vpop.f32.mrf.mxu0
      %v4198 = vpop.f32.mrf.mxu0
      %v4199 = vadd.f32 %v4072, %v4198
      %v4200 = vpop.f32.mrf.mxu0
      %4201 = vmatprep.mubr.bf16.mxu0 0
      %4202 = vmatmul.mubr.bf16.gmra.mxu0 %v4116
      %v4203 = vpop.f32.mrf.mxu0
      %v4204 = vadd.f32 %v4072, %v4203
      %v4205 = vpop.f32.mrf.mxu0
      %v4206 = vpop.f32.mrf.mxu0
      %v4207 = vadd.f32 %v4072, %v4206
      %v4208 = vpop.f32.mrf.mxu0
      %4209 = vmatprep.mubr.bf16.mxu0 0
      %4210 = vmatmul.mubr.bf16.gmra.mxu0 %v4119
      %v4211 = vpop.f32.mrf.mxu0
      %v4212 = vadd.f32 %v4072, %v4211
      %v4213 = vpop.f32.mrf.mxu0
      %v4214 = vpop.f32.mrf.mxu0
      %v4215 = vadd.f32 %v4072, %v4214
      %v4216 = vpop.f32.mrf.mxu0
      %4217 = vdwg.mxu0
      %v4218 = vadd.f32 %v3493, %v4156
      %v4219 = vadd.f32 %v3494, %v4159
      %v4220 = vadd.f32 %v3495, %v4164
      %v4221 = vadd.f32 %v3496, %v4167
      %v4222 = vadd.f32 %v3497, %v4172
      %v4223 = vadd.f32 %v3498, %v4175
      %v4224 = vadd.f32 %v3499, %v4180
      %v4225 = vadd.f32 %v3500, %v4183
      %v4226 = vadd.f32 %v3501, %v4188
      %v4227 = vadd.f32 %v3502, %v4191
      %v4228 = vadd.f32 %v3503, %v4196
      %v4229 = vadd.f32 %v3504, %v4199
      %v4230 = vadd.f32 %v3505, %v4204
      %v4231 = vadd.f32 %v3506, %v4207
      %v4232 = vadd.f32 %v3507, %v4212
      %v4233 = vadd.f32 %v3508, %v4215
      %4234 = vst.msk [vmem:[%s449] sm:$0xff] %vm506, %v4218
      %4235 = vst.msk [vmem:[%s449 + $0x8] sm:$0xff] %vm506, %v4219
      %4236 = vst.msk [vmem:[%s449 + $0x10] sm:$0xff] %vm506, %v4220
      %4237 = vst.msk [vmem:[%s449 + $0x18] sm:$0xff] %vm506, %v4221
      %4238 = vst.msk [vmem:[%s449 + $0x20] sm:$0xff] %vm506, %v4222
      %4239 = vst.msk [vmem:[%s449 + $0x28] sm:$0xff] %vm506, %v4223
      %4240 = vst.msk [vmem:[%s449 + $0x30] sm:$0xff] %vm506, %v4224
      %4241 = vst.msk [vmem:[%s449 + $0x38] sm:$0xff] %vm506, %v4225
      %4242 = vst.msk [vmem:[%s449 + $0x40] sm:$0xff] %vm506, %v4226
      %4243 = vst.msk [vmem:[%s449 + $0x48] sm:$0xff] %vm506, %v4227
      %4244 = vst.msk [vmem:[%s449 + $0x50] sm:$0xff] %vm506, %v4228
      %4245 = vst.msk [vmem:[%s449 + $0x58] sm:$0xff] %vm506, %v4229
      %4246 = vst.msk [vmem:[%s449 + $0x60] sm:$0xff] %vm506, %v4230
      %4247 = vst.msk [vmem:[%s449 + $0x68] sm:$0xff] %vm506, %v4231
      %4248 = vst.msk [vmem:[%s449 + $0x70] sm:$0xff] %vm506, %v4232
      %4249 = vst.msk [vmem:[%s449 + $0x78] sm:$0xff] %vm506, %v4233
      %s4250 = smul.u32 2, %s23
      %p4251 = scmp.lt.s32.totalorder %s4250, 3
      %s4252 = scalar_select %p4251, %s4250, 3
      %s4253 = smul.addr %s4252, 8
      %s4254 = smul.addr %s4253, 8
      %s4255 = scalar_lea.vmem %s8, %s4254
      // Predicated region
      $region57: #{tpu_custom_call.1} parent=51 // pred_check
        %p4256 = pneg %p257
      $region58: #{tpu_custom_call.1} parent=51 // pred_check_branch
        %4258 = sbr.rel (%p4256) target = $region60
      $region59: #{tpu_custom_call.1} parent=51 // pred_region
        %s4259 = smul.u32 2, %s23
      $region60: #{tpu_custom_call.1} parent=51 // pred_fallthru
        _
    $region52: #{tpu_custom_call.1} parent=5 // pred_fallthru
      _
    %p4260 = scmp.le.s32.totalorder 2, %s14
    // Predicated region
    $region61: #{tpu_custom_call.1} parent=5 // pred_check
      %p4261 = pneg %p4260
    $region62: #{tpu_custom_call.1} parent=5 // pred_check_branch
      %4263 = sbr.rel (%p4261) target = $region64
    $region63: #{tpu_custom_call.1} parent=5 // pred_region
      %s4264 = ssub.s32 %s14, 2
      // Predicated region
      $region65: #{tpu_custom_call.1} parent=63 // pred_check
        %p4265 = pneg %p263
      $region66: #{tpu_custom_call.1} parent=63 // pred_check_branch
        %4267 = sbr.rel (%p4265) target = $region68
      $region67: #{tpu_custom_call.1} parent=63 // pred_region
        %s4268 = smul.u32 2, %s25
        %p4269 = scmp.lt.s32.totalorder %s4268, 3
        %s4270 = scalar_select %p4269, %s4268, 3
        %s4271 = smul.addr %s4270, 8
        %s4272 = smul.addr %s4271, 8
        %s4273 = scalar_lea.vmem %s8, %s4272
      $region68: #{tpu_custom_call.1} parent=63 // pred_fallthru
        _
    $region64: #{tpu_custom_call.1} parent=5 // pred_fallthru
      _
  $region6: #{tpu_custom_call.1} parent=0 // loop_footer
    %s18 = sadd.s32 1, %s14
  $region7: #{tpu_custom_call.1} parent=0 // loop_footer_branch
    %13 = sbr.rel target = $region3
  $region8: #{tpu_custom_call.1} parent=0 // loop_exit
    _

</llo_original>
